<compile_context>
chip_gen: v7x
topology: tpu7x:2x2x1
jax: 0.10.0
libtpu: 0.0.40
codegen_flags: <defaults>
</compile_context>

<pallas_src>
import functools

import jax
import jax.numpy as jnp
from jax import lax
from jax.experimental import pallas as pl
from jax.experimental.pallas import tpu as pltpu

EPS = 1e-5
_NEG = -1e30  # bias for padded logit lanes (exp underflows to exactly 0)


# --------------------------------------------------------------------------
# Fused forward kernel: one grid step processes a tile of `tn` samples.
# Patch block rows are ordered (d1, e, t) [d1 = pool1 window, e = pool2
# window, t = sample]; patch lanes are (f, d2, tap) [f = final 2x2 position,
# d2 = conv2 tap, tap = conv1 3x3 tap], so every pool is a max of aligned
# row blocks and every layer is one batched matmul.
# --------------------------------------------------------------------------
def fused_forward_kernel(p_ref, w1_ref, b1_ref, w2_ref, b2_ref,
                         w3_ref, b3_ref, w4_ref, b4_ref, out_ref):
    tn = out_ref.shape[0]

    # ---- conv1 (3x3 stride 3) + folded bn1 + relu: ONE matmul, K=144 ----
    patches = p_ref[...]                                       # (16*tn, 144)
    h1 = jnp.dot(patches, w1_ref[...],
                 preferred_element_type=jnp.float32) + b1_ref[...]
    h1 = jnp.maximum(h1, 0.0)                                  # (16*tn, 1024)

    # ---- pool1: max over d1 -> four aligned row blocks of 4*tn rows ----
    b = 4 * tn
    f1 = jnp.maximum(jnp.maximum(h1[0:b], h1[b:2 * b]),
                     jnp.maximum(h1[2 * b:3 * b], h1[3 * b:4 * b]))  # (4*tn, 1024)

    # ---- conv2 (2x2 stride 2) + folded bn2 + relu: ONE matmul, K=1024 ----
    a2 = jnp.maximum(
        jnp.dot(f1, w2_ref[...], preferred_element_type=jnp.float32) + b2_ref[...],
        0.0)                                                   # (4*tn, 512), lanes (f, c2)

    # ---- pool2: max over e -> four aligned row blocks of tn rows.
    #      Result is already the fc1 input (flatten order baked into w3). ----
    flat = jnp.maximum(jnp.maximum(a2[0:tn], a2[tn:2 * tn]),
                       jnp.maximum(a2[2 * tn:3 * tn], a2[3 * tn:4 * tn]))  # (tn, 512)

    # ---- fc1 + folded bn3 + relu: ONE K=512 matmul ----
    h3 = jnp.maximum(
        jnp.dot(flat, w3_ref[...], preferred_element_type=jnp.float32) + b3_ref[...],
        0.0)                                                   # (tn, 256)

    # ---- fc2 + folded bn4 + log_softmax over 128 lane-padded logits ----
    z = jnp.dot(h3, w4_ref[...], preferred_element_type=jnp.float32) + b4_ref[...]
    m = jnp.max(z, axis=-1, keepdims=True)
    lse = jnp.log(jnp.sum(jnp.exp(z - m), axis=-1, keepdims=True)) + m
    out_ref[...] = z - lse                                     # (tn, 128) unmasked store


# --------------------------------------------------------------------------
# Parameter construction / preparation.
# --------------------------------------------------------------------------
def init_params(r=7):
    keys = jax.random.split(jax.random.PRNGKey(42), 24)

    def nrm(k, shape, s=0.05):
        return jax.random.normal(k, shape, jnp.float32) * s

    def bn(kg, kb, km, kv, c):
        gamma = 1.0 + nrm(kg, (c,))
        beta = nrm(kb, (c,))
        rmean = nrm(km, (c,))
        rvar = 0.5 + jax.random.uniform(kv, (c,), jnp.float32)
        return gamma, beta, rmean, rvar

    return {
        "conv1_w": nrm(keys[0], (64, 1, 3, 3)),
        "conv1_b": nrm(keys[1], (64,)),
        "conv2_w": nrm(keys[2], (128, 64, 2, 2)),
        "conv2_b": nrm(keys[3], (128,)),
        "fc1_w": nrm(keys[4], (256, 512)),
        "fc1_b": nrm(keys[5], (256,)),
        "fc2_w": nrm(keys[6], (r, 256)),
        "fc2_b": nrm(keys[7], (r,)),
        "bn1": bn(keys[8], keys[9], keys[10], keys[11], 64),
        "bn2": bn(keys[12], keys[13], keys[14], keys[15], 128),
        "bn3": bn(keys[16], keys[17], keys[18], keys[19], 256),
        "bn4": bn(keys[20], keys[21], keys[22], keys[23], r),
    }


def bn_fold(gamma, beta, rmean, rvar):
    scale = gamma / jnp.sqrt(rvar + EPS)
    shift = beta - rmean * scale
    return scale, shift


def prepare_params(p):
    """Fold eval-mode BN into weights/biases and build the block-diagonal
    matmul weights (one-time cost, zero per-step work)."""
    s1, t1 = bn_fold(*p["bn1"])
    s2, t2 = bn_fold(*p["bn2"])
    s3, t3 = bn_fold(*p["bn3"])
    s4, t4 = bn_fold(*p["bn4"])
    r = p["fc2_w"].shape[0]

    # conv1 core: (9, 64) [tap, c1]; block-diag over the 16 (f, d2) lane groups.
    w1 = p["conv1_w"].reshape(64, 9).T * s1[None, :]
    W1 = jnp.kron(jnp.eye(16, dtype=jnp.float32), w1)                       # (144, 1024)
    b1 = jnp.tile(p["conv1_b"] * s1 + t1, 16).reshape(1, 1024)

    # conv2 core: (256, 128) [(d2, c1), c2]; block-diag over the 4 f groups.
    w2 = p["conv2_w"].transpose(2, 3, 1, 0).reshape(256, 128) * s2[None, :]
    W2 = jnp.kron(jnp.eye(4, dtype=jnp.float32), w2)                        # (1024, 512)
    b2 = jnp.tile(p["conv2_b"] * s2 + t2, 4).reshape(1, 512)

    # fc1: kernel flat index = f*128 + c2; PyTorch flatten index = c2*4 + f.
    W3 = (p["fc1_w"] * s3[:, None]).T.reshape(128, 4, 256).transpose(1, 0, 2)
    W3 = W3.reshape(512, 256)
    b3 = (p["fc1_b"] * s3 + t3).reshape(1, 256)

    # fc2, lane-padded to 128 logits (padded columns get a huge negative bias).
    W4 = jnp.zeros((256, 128), jnp.float32).at[:, :r].set(p["fc2_w"].T * s4[None, :])
    b4 = jnp.full((1, 128), _NEG, jnp.float32).at[0, :r].set(p["fc2_b"] * s4 + t4)

    return dict(W1=W1, b1=b1, W2=W2, b2=b2, W3=W3, b3=b3, W4=W4, b4=b4)


# --------------------------------------------------------------------------
# Input patch layout: pure reshape + transpose (no gather).
# Row within a block  = (d1*4 + e) * tn + t     (d1 = pool1 window, e = pool2
#                                                window, t = sample in tile)
# Lane                = f*36 + d2*9 + r*3 + c   (f = final 2x2 pos, d2 = conv2
#                                                tap, (r, c) = conv1 tap)
# --------------------------------------------------------------------------
def _build_patches(x, tn):
    n = x.shape[0]
    nb = n // tn
    xr = x.reshape(nb, tn, 2, 2, 2, 2, 3, 2, 2, 2, 2, 3)
    #              (B,  t, qh,eh,kh,dh, r, qw,ew,kw,dw, c)
    xt = xr.transpose(0, 5, 10, 3, 8, 1, 2, 7, 4, 9, 6, 11)
    #   -> (B, dh, dw, eh, ew, t, qh, qw, kh, kw, r, c)
    return xt.reshape(nb, 16 * tn, 144)


def _round_up(a, b):
    return (a + b - 1) // b * b


# --------------------------------------------------------------------------
# Forward wrapper (single fused pallas_call, grid over batch tiles).
# --------------------------------------------------------------------------
def forward(prep, x, *, r):
    n = x.shape[0]
    # Batch tile: multiple of 8 sublanes; 64 keeps VMEM ~17 MiB worst case
    # (safe on v5e/v6e/v7x) and gives >=2 grid steps for batches >= 128 so
    # both v7x TensorCores are used.  Raise to 128-256 on v5e/v6e if desired.
    tn = min(64, _round_up(n, 8))
    n_pad = _round_up(n, tn)
    if n_pad != n:
        x = jnp.pad(x, ((0, n_pad - n), (0, 0), (0, 0), (0, 0)))
    patches = _build_patches(x, tn)                   # (nb, 16*tn, 144), contiguous blocks
    nb = n_pad // tn

    const2 = lambda i: (0, 0)
    grid_spec = pltpu.PrefetchScalarGridSpec(
        num_scalar_prefetch=0,
        grid=(nb,),
        in_specs=[
            pl.BlockSpec((None, 16 * tn, 144), lambda i: (i, 0, 0)),  # patch tile
            pl.BlockSpec((144, 1024), const2),                        # conv1 (resident)
            pl.BlockSpec((1, 1024), const2),
            pl.BlockSpec((1024, 512), const2),                        # conv2 (resident)
            pl.BlockSpec((1, 512), const2),
            pl.BlockSpec((512, 256), const2),                         # fc1 (resident)
            pl.BlockSpec((1, 256), const2),
            pl.BlockSpec((256, 128), const2),                         # fc2 (resident)
            pl.BlockSpec((1, 128), const2),
        ],
        out_specs=pl.BlockSpec((tn, 128), lambda i: (i, 0)),
    )
    out = pl.pallas_call(
        fused_forward_kernel,
        out_shape=jax.ShapeDtypeStruct((n_pad, 128), jnp.float32),
        grid_spec=grid_spec,
        compiler_params=pltpu.CompilerParams(
            dimension_semantics=("parallel",),
            vmem_limit_bytes=32 * 1024 * 1024,
        ),
    )(patches, prep["W1"], prep["b1"], prep["W2"], prep["b2"],
      prep["W3"], prep["b3"], prep["W4"], prep["b4"])
    return out[:n, :r]


# --------------------------------------------------------------------------
# Pure-JAX (XLA) reference of the PyTorch module in eval mode, for checking.
# --------------------------------------------------------------------------
def reference_forward(p, x):
    hp = lax.Precision.HIGHEST

    def bn(y, bn_p):
        gamma, beta, rmean, rvar = bn_p
        shp = [1, -1] + [1] * (y.ndim - 2)
        return ((y - rmean.reshape(shp)) / jnp.sqrt(rvar.reshape(shp) + EPS)
                * gamma.reshape(shp) + beta.reshape(shp))

    n = x.shape[0]
    y = lax.conv_general_dilated(x, p["conv1_w"], (3, 3), "VALID",
                                 dimension_numbers=("NCHW", "OIHW", "NCHW"),
                                 precision=hp)
    y = y + p["conv1_b"].reshape(1, -1, 1, 1)
    y = jnp.maximum(bn(y, p["bn1"]), 0.0)
    y = y.reshape(n, 64, 8, 2, 8, 2).max(axis=(3, 5))
    y = lax.conv_general_dilated(y, p["conv2_w"], (2, 2), "VALID",
                                 dimension_numbers=("NCHW", "OIHW", "NCHW"),
                                 precision=hp)
    y = y + p["conv2_b"].reshape(1, -1, 1, 1)
    y = jnp.maximum(bn(y, p["bn2"]), 0.0)
    y = y.reshape(n, 128, 2, 2, 2, 2).max(axis=(3, 5))
    flat = y.reshape(n, 512)
    h = jnp.dot(flat, p["fc1_w"].T, precision=hp) + p["fc1_b"]
    h = jnp.maximum(bn(h, p["bn3"]), 0.0)
    z = jnp.dot(h, p["fc2_w"].T, precision=hp) + p["fc2_b"]
    z = bn(z, p["bn4"])
    return jax.nn.log_softmax(z, axis=-1)


if __name__ == "__main__":
    params = init_params(r=7)
    prep = prepare_params(params)
    x = jax.random.normal(jax.random.PRNGKey(0), (2, 1, 48, 48), jnp.float32)

    fwd = jax.jit(forward, static_argnames=("r",))
    out = jax.block_until_ready(fwd(prep, x, r=7))
    ref = jax.block_until_ready(reference_forward(params, x))

    assert out.shape == (2, 7)
    assert bool(jnp.all(jnp.isfinite(out)))
    # log_softmax rows must sum to 1 in probability space
    assert bool(jnp.allclose(jnp.sum(jnp.exp(out), axis=1), 1.0, atol=1e-4))
    err = float(jnp.max(jnp.abs(out - ref)))
    assert err < 5e-3, f"kernel/reference mismatch: max abs err {err}"
    print("KERNEL_OK")
</pallas_src>

<mosaic_0001>
module attributes {stable_mosaic.version = 11 : i64} {
  func.func @fused_forward_kernel(%arg0: i32, %arg1: memref<1x128x144xf32, #tpu.memory_space<vmem>>, %arg2: memref<144x1024xf32, #tpu.memory_space<vmem>>, %arg3: memref<1x1024xf32, #tpu.memory_space<vmem>>, %arg4: memref<1024x512xf32, #tpu.memory_space<vmem>>, %arg5: memref<1x512xf32, #tpu.memory_space<vmem>>, %arg6: memref<512x256xf32, #tpu.memory_space<vmem>>, %arg7: memref<1x256xf32, #tpu.memory_space<vmem>>, %arg8: memref<256x128xf32, #tpu.memory_space<vmem>>, %arg9: memref<1x128xf32, #tpu.memory_space<vmem>>, %arg10: memref<8x128xf32, #tpu.memory_space<vmem>>) attributes {dimension_semantics = [#tpu.dimension_semantics<parallel>], iteration_bounds = array<i64: 1>, scalar_prefetch = 0 : i64, scratch_operands = 0 : i64, tpu.core_type = #tpu.core_type<tc>, window_params = [{transform_indices = @transform_0, window_bounds = array<i64: 1, 128, 144>}, {pipeline_mode = #tpu.pipeline_mode<synchronous>, transform_indices = @transform_1, window_bounds = array<i64: 144, 1024>}, {pipeline_mode = #tpu.pipeline_mode<synchronous>, transform_indices = @transform_2, window_bounds = array<i64: 1, 1024>}, {pipeline_mode = #tpu.pipeline_mode<synchronous>, transform_indices = @transform_3, window_bounds = array<i64: 1024, 512>}, {pipeline_mode = #tpu.pipeline_mode<synchronous>, transform_indices = @transform_4, window_bounds = array<i64: 1, 512>}, {pipeline_mode = #tpu.pipeline_mode<synchronous>, transform_indices = @transform_5, window_bounds = array<i64: 512, 256>}, {pipeline_mode = #tpu.pipeline_mode<synchronous>, transform_indices = @transform_6, window_bounds = array<i64: 1, 256>}, {pipeline_mode = #tpu.pipeline_mode<synchronous>, transform_indices = @transform_7, window_bounds = array<i64: 256, 128>}, {pipeline_mode = #tpu.pipeline_mode<synchronous>, transform_indices = @transform_8, window_bounds = array<i64: 1, 128>}, {transform_indices = @transform_9, window_bounds = array<i64: 8, 128>}]} {
    %c0 = arith.constant 0 : index
    %c0_0 = arith.constant 0 : index
    %c0_1 = arith.constant 0 : index
    %0 = vector.load %arg1[%c0, %c0_0, %c0_1] : memref<1x128x144xf32, #tpu.memory_space<vmem>>, vector<1x128x144xf32>
    %1 = vector.shape_cast %0 : vector<1x128x144xf32> to vector<128x144xf32>
    %c0_2 = arith.constant 0 : index
    %c0_3 = arith.constant 0 : index
    %2 = vector.load %arg2[%c0_2, %c0_3] : memref<144x1024xf32, #tpu.memory_space<vmem>>, vector<144x1024xf32>
    %cst = arith.constant dense<0.000000e+00> : vector<128x1024xf32>
    %3 = tpu.matmul %1, %2, %cst {dimension_numbers = #tpu.dot_dimension_numbers<[1], [0], [0], [1], [0, 0, 1, 1], [], []>} : vector<128x144xf32>, vector<144x1024xf32>, vector<128x1024xf32> -> vector<128x1024xf32>
    %c0_4 = arith.constant 0 : index
    %c0_5 = arith.constant 0 : index
    %4 = vector.load %arg3[%c0_4, %c0_5] : memref<1x1024xf32, #tpu.memory_space<vmem>>, vector<1x1024xf32>
    %5 = vector.broadcast %4 : vector<1x1024xf32> to vector<128x1024xf32>
    %6 = arith.addf %3, %5 : vector<128x1024xf32>
    %cst_6 = arith.constant 0.000000e+00 : f32
    %7 = vector.broadcast %cst_6 : f32 to vector<128x1024xf32>
    %8 = arith.maximumf %6, %7 : vector<128x1024xf32>
    %9 = vector.extract_strided_slice %8 {offsets = [0, 0], sizes = [32, 1024], strides = [1, 1]} : vector<128x1024xf32> to vector<32x1024xf32>
    %10 = vector.extract_strided_slice %8 {offsets = [32, 0], sizes = [32, 1024], strides = [1, 1]} : vector<128x1024xf32> to vector<32x1024xf32>
    %11 = arith.maximumf %9, %10 : vector<32x1024xf32>
    %12 = vector.extract_strided_slice %8 {offsets = [64, 0], sizes = [32, 1024], strides = [1, 1]} : vector<128x1024xf32> to vector<32x1024xf32>
    %13 = vector.extract_strided_slice %8 {offsets = [96, 0], sizes = [32, 1024], strides = [1, 1]} : vector<128x1024xf32> to vector<32x1024xf32>
    %14 = arith.maximumf %12, %13 : vector<32x1024xf32>
    %15 = arith.maximumf %11, %14 : vector<32x1024xf32>
    %c0_7 = arith.constant 0 : index
    %c0_8 = arith.constant 0 : index
    %16 = vector.load %arg4[%c0_7, %c0_8] : memref<1024x512xf32, #tpu.memory_space<vmem>>, vector<1024x512xf32>
    %cst_9 = arith.constant dense<0.000000e+00> : vector<32x512xf32>
    %17 = tpu.matmul %15, %16, %cst_9 {dimension_numbers = #tpu.dot_dimension_numbers<[1], [0], [0], [1], [0, 0, 1, 1], [], []>} : vector<32x1024xf32>, vector<1024x512xf32>, vector<32x512xf32> -> vector<32x512xf32>
    %c0_10 = arith.constant 0 : index
    %c0_11 = arith.constant 0 : index
    %18 = vector.load %arg5[%c0_10, %c0_11] : memref<1x512xf32, #tpu.memory_space<vmem>>, vector<1x512xf32>
    %19 = vector.broadcast %18 : vector<1x512xf32> to vector<32x512xf32>
    %20 = arith.addf %17, %19 : vector<32x512xf32>
    %cst_12 = arith.constant 0.000000e+00 : f32
    %21 = vector.broadcast %cst_12 : f32 to vector<32x512xf32>
    %22 = arith.maximumf %20, %21 : vector<32x512xf32>
    %23 = vector.extract_strided_slice %22 {offsets = [0, 0], sizes = [8, 512], strides = [1, 1]} : vector<32x512xf32> to vector<8x512xf32>
    %24 = vector.extract_strided_slice %22 {offsets = [8, 0], sizes = [8, 512], strides = [1, 1]} : vector<32x512xf32> to vector<8x512xf32>
    %25 = arith.maximumf %23, %24 : vector<8x512xf32>
    %26 = vector.extract_strided_slice %22 {offsets = [16, 0], sizes = [8, 512], strides = [1, 1]} : vector<32x512xf32> to vector<8x512xf32>
    %27 = vector.extract_strided_slice %22 {offsets = [24, 0], sizes = [8, 512], strides = [1, 1]} : vector<32x512xf32> to vector<8x512xf32>
    %28 = arith.maximumf %26, %27 : vector<8x512xf32>
    %29 = arith.maximumf %25, %28 : vector<8x512xf32>
    %c0_13 = arith.constant 0 : index
    %c0_14 = arith.constant 0 : index
    %30 = vector.load %arg6[%c0_13, %c0_14] : memref<512x256xf32, #tpu.memory_space<vmem>>, vector<512x256xf32>
    %cst_15 = arith.constant dense<0.000000e+00> : vector<8x256xf32>
    %31 = tpu.matmul %29, %30, %cst_15 {dimension_numbers = #tpu.dot_dimension_numbers<[1], [0], [0], [1], [0, 0, 1, 1], [], []>} : vector<8x512xf32>, vector<512x256xf32>, vector<8x256xf32> -> vector<8x256xf32>
    %c0_16 = arith.constant 0 : index
    %c0_17 = arith.constant 0 : index
    %32 = vector.load %arg7[%c0_16, %c0_17] : memref<1x256xf32, #tpu.memory_space<vmem>>, vector<1x256xf32>
    %33 = vector.broadcast %32 : vector<1x256xf32> to vector<8x256xf32>
    %34 = arith.addf %31, %33 : vector<8x256xf32>
    %cst_18 = arith.constant 0.000000e+00 : f32
    %35 = vector.broadcast %cst_18 : f32 to vector<8x256xf32>
    %36 = arith.maximumf %34, %35 : vector<8x256xf32>
    %c0_19 = arith.constant 0 : index
    %c0_20 = arith.constant 0 : index
    %37 = vector.load %arg8[%c0_19, %c0_20] : memref<256x128xf32, #tpu.memory_space<vmem>>, vector<256x128xf32>
    %cst_21 = arith.constant dense<0.000000e+00> : vector<8x128xf32>
    %38 = tpu.matmul %36, %37, %cst_21 {dimension_numbers = #tpu.dot_dimension_numbers<[1], [0], [0], [1], [0, 0, 1, 1], [], []>} : vector<8x256xf32>, vector<256x128xf32>, vector<8x128xf32> -> vector<8x128xf32>
    %c0_22 = arith.constant 0 : index
    %c0_23 = arith.constant 0 : index
    %39 = vector.load %arg9[%c0_22, %c0_23] : memref<1x128xf32, #tpu.memory_space<vmem>>, vector<1x128xf32>
    %40 = vector.broadcast %39 : vector<1x128xf32> to vector<8x128xf32>
    %41 = arith.addf %38, %40 : vector<8x128xf32>
    %cst_24 = arith.constant dense<0xFF800000> : vector<8xf32>
    %42 = vector.multi_reduction <maximumf>, %41, %cst_24 [1] : vector<8x128xf32> to vector<8xf32>
    %43 = vector.shape_cast %42 : vector<8xf32> to vector<8x1xf32>
    %44 = vector.broadcast %43 : vector<8x1xf32> to vector<8x128xf32>
    %45 = arith.subf %41, %44 : vector<8x128xf32>
    %46 = math.exp %45 : vector<8x128xf32>
    %cst_25 = arith.constant dense<0.000000e+00> : vector<8xf32>
    %47 = vector.multi_reduction <add>, %46, %cst_25 [1] : vector<8x128xf32> to vector<8xf32>
    %48 = vector.shape_cast %47 : vector<8xf32> to vector<8x1xf32>
    %49 = math.log %48 : vector<8x1xf32>
    %50 = arith.addf %49, %43 : vector<8x1xf32>
    %51 = vector.broadcast %50 : vector<8x1xf32> to vector<8x128xf32>
    %52 = arith.subf %41, %51 : vector<8x128xf32>
    %c0_26 = arith.constant 0 : index
    %c0_27 = arith.constant 0 : index
    %53 = vector.load %arg10[%c0_26, %c0_27] : memref<8x128xf32, #tpu.memory_space<vmem>>, vector<8x128xf32>
    tpu.vector_store %arg10[%c0_26, %c0_27], %52 {strides = array<i32>} : memref<8x128xf32, #tpu.memory_space<vmem>>, vector<8x128xf32>,
    return
  }
  func.func @transform_0(%arg0: i32) -> (i32, i32, i32) {
    %c0_i32 = arith.constant 0 : i32
    %c0_i32_0 = arith.constant 0 : i32
    %c0_i32_1 = arith.constant 0 : i32
    return %arg0, %c0_i32, %c0_i32_0 : i32, i32, i32
  }
  func.func @transform_1(%arg0: i32) -> (i32, i32) {
    %c0_i32 = arith.constant 0 : i32
    %c0_i32_0 = arith.constant 0 : i32
    %c0_i32_1 = arith.constant 0 : i32
    return %c0_i32, %c0_i32_0 : i32, i32
  }
  func.func @transform_2(%arg0: i32) -> (i32, i32) {
    %c0_i32 = arith.constant 0 : i32
    %c0_i32_0 = arith.constant 0 : i32
    %c0_i32_1 = arith.constant 0 : i32
    return %c0_i32, %c0_i32_0 : i32, i32
  }
  func.func @transform_3(%arg0: i32) -> (i32, i32) {
    %c0_i32 = arith.constant 0 : i32
    %c0_i32_0 = arith.constant 0 : i32
    %c0_i32_1 = arith.constant 0 : i32
    return %c0_i32, %c0_i32_0 : i32, i32
  }
  func.func @transform_4(%arg0: i32) -> (i32, i32) {
    %c0_i32 = arith.constant 0 : i32
    %c0_i32_0 = arith.constant 0 : i32
    %c0_i32_1 = arith.constant 0 : i32
    return %c0_i32, %c0_i32_0 : i32, i32
  }
  func.func @transform_5(%arg0: i32) -> (i32, i32) {
    %c0_i32 = arith.constant 0 : i32
    %c0_i32_0 = arith.constant 0 : i32
    %c0_i32_1 = arith.constant 0 : i32
    return %c0_i32, %c0_i32_0 : i32, i32
  }
  func.func @transform_6(%arg0: i32) -> (i32, i32) {
    %c0_i32 = arith.constant 0 : i32
    %c0_i32_0 = arith.constant 0 : i32
    %c0_i32_1 = arith.constant 0 : i32
    return %c0_i32, %c0_i32_0 : i32, i32
  }
  func.func @transform_7(%arg0: i32) -> (i32, i32) {
    %c0_i32 = arith.constant 0 : i32
    %c0_i32_0 = arith.constant 0 : i32
    %c0_i32_1 = arith.constant 0 : i32
    return %c0_i32, %c0_i32_0 : i32, i32
  }
  func.func @transform_8(%arg0: i32) -> (i32, i32) {
    %c0_i32 = arith.constant 0 : i32
    %c0_i32_0 = arith.constant 0 : i32
    %c0_i32_1 = arith.constant 0 : i32
    return %c0_i32, %c0_i32_0 : i32, i32
  }
  func.func @transform_9(%arg0: i32) -> (i32, i32) {
    %c0_i32 = arith.constant 0 : i32
    %c0_i32_0 = arith.constant 0 : i32
    return %arg0, %c0_i32 : i32, i32
  }
}

</mosaic_0001>

<llo_original>
// kernel: forward.1
$region0: #{forward.1}
  #allocation0 [shape = 'u32[]', space=smem, size = 0x4, offset = 0x4, fixed_abs, tag = 'smem constant byte address 0x4 - core index']
  #allocation1 [shape = 'u32[144,128]{1,0:T(1,128)}', space=vmem, size = 0x12000, scoped, tag = 'internal scratch']
  %s0 = inlined_call_operand.vmem [shape: f32[1,128,144], index: 0, kind: input, shape index: {}]
  %s1 = inlined_call_operand.vmem [shape: f32[144,1024], index: 1, kind: input, shape index: {}]
  %s2 = inlined_call_operand.vmem [shape: f32[1,1024], index: 2, kind: input, shape index: {}]
  %s3 = inlined_call_operand.vmem [shape: f32[1024,512], index: 3, kind: input, shape index: {}]
  %s4 = inlined_call_operand.vmem [shape: f32[1,512], index: 4, kind: input, shape index: {}]
  %s5 = inlined_call_operand.vmem [shape: f32[512,256], index: 5, kind: input, shape index: {}]
  %s6 = inlined_call_operand.vmem [shape: f32[1,256], index: 6, kind: input, shape index: {}]
  %s7 = inlined_call_operand.vmem [shape: f32[256,128], index: 7, kind: input, shape index: {}]
  %s8 = inlined_call_operand.vmem [shape: f32[1,128], index: 8, kind: input, shape index: {}]
  %s9 = inlined_call_operand.vmem [shape: f32[8,128], index: 9, kind: output, shape index: {}]
  %s10 = sld [smem:[#allocation0]]
  $region46: #{forward.1} parent=0
    _
  %s12 = ssub.s32 1, %s10
  %s13 = scalar_select 0, %s12, %s10
  // Predicated region
  $region2: #{forward.1} parent=0 // pred_check
    _
  $region3: #{forward.1} parent=0 // pred_check_branch
    %15 = sbr.rel (0) target = $region5
  $region4: #{forward.1} parent=0 // pred_region
    _
  $region5: #{forward.1} parent=0 // pred_fallthru
    _
  // Predicated region
  $region6: #{forward.1} parent=0 // pred_check
    _
  $region7: #{forward.1} parent=0 // pred_check_branch
    %17 = sbr.rel (0) target = $region9
  $region8: #{forward.1} parent=0 // pred_region
    _
  $region9: #{forward.1} parent=0 // pred_fallthru
    _
  // Predicated region
  $region10: #{forward.1} parent=0 // pred_check
    _
  $region11: #{forward.1} parent=0 // pred_check_branch
    %19 = sbr.rel (0) target = $region13
  $region12: #{forward.1} parent=0 // pred_region
    _
  $region13: #{forward.1} parent=0 // pred_fallthru
    _
  // Predicated region
  $region14: #{forward.1} parent=0 // pred_check
    _
  $region15: #{forward.1} parent=0 // pred_check_branch
    %21 = sbr.rel (0) target = $region17
  $region16: #{forward.1} parent=0 // pred_region
    _
  $region17: #{forward.1} parent=0 // pred_fallthru
    _
  // Predicated region
  $region18: #{forward.1} parent=0 // pred_check
    _
  $region19: #{forward.1} parent=0 // pred_check_branch
    %23 = sbr.rel (0) target = $region21
  $region20: #{forward.1} parent=0 // pred_region
    _
  $region21: #{forward.1} parent=0 // pred_fallthru
    _
  // Predicated region
  $region22: #{forward.1} parent=0 // pred_check
    _
  $region23: #{forward.1} parent=0 // pred_check_branch
    %25 = sbr.rel (0) target = $region25
  $region24: #{forward.1} parent=0 // pred_region
    _
  $region25: #{forward.1} parent=0 // pred_fallthru
    _
  // Predicated region
  $region26: #{forward.1} parent=0 // pred_check
    _
  $region27: #{forward.1} parent=0 // pred_check_branch
    %27 = sbr.rel (0) target = $region29
  $region28: #{forward.1} parent=0 // pred_region
    _
  $region29: #{forward.1} parent=0 // pred_fallthru
    _
  // Predicated region
  $region30: #{forward.1} parent=0 // pred_check
    _
  $region31: #{forward.1} parent=0 // pred_check_branch
    %29 = sbr.rel (0) target = $region33
  $region32: #{forward.1} parent=0 // pred_region
    _
  $region33: #{forward.1} parent=0 // pred_fallthru
    _
  // Predicated region
  $region34: #{forward.1} parent=0 // pred_check
    _
  $region35: #{forward.1} parent=0 // pred_check_branch
    %31 = sbr.rel (0) target = $region37
  $region36: #{forward.1} parent=0 // pred_region
    _
  $region37: #{forward.1} parent=0 // pred_fallthru
    _
  %v32 = vld [vmem:[%s0] sm:$0xff]
  %v33 = vld [vmem:[%s0 + $0x8] sm:$0xff]
  %v34 = vld [vmem:[%s0 + $0x10] sm:$0xff]
  %v35 = vld [vmem:[%s0 + $0x18] sm:$0xff]
  %v36 = vld [vmem:[%s0 + $0x20] sm:$0xff]
  %v37 = vld [vmem:[%s0 + $0x28] sm:$0xff]
  %v38 = vld [vmem:[%s0 + $0x30] sm:$0xff]
  %v39 = vld [vmem:[%s0 + $0x38] sm:$0xff]
  %v40 = vld [vmem:[%s0 + $0x40] sm:$0xff]
  %v41 = vld [vmem:[%s0 + $0x48] sm:$0xff]
  %v42 = vld [vmem:[%s0 + $0x50] sm:$0xff]
  %v43 = vld [vmem:[%s0 + $0x58] sm:$0xff]
  %v44 = vld [vmem:[%s0 + $0x60] sm:$0xff]
  %v45 = vld [vmem:[%s0 + $0x68] sm:$0xff]
  %v46 = vld [vmem:[%s0 + $0x70] sm:$0xff]
  %v47 = vld [vmem:[%s0 + $0x78] sm:$0xff]
  %v48 = vld [vmem:[%s0 + $0x80] sm:$0xff]
  %v49 = vld [vmem:[%s0 + $0x88] sm:$0xff]
  %v50 = vld [vmem:[%s0 + $0x90] sm:$0xff]
  %v51 = vld [vmem:[%s0 + $0x98] sm:$0xff]
  %v52 = vld [vmem:[%s0 + $0xa0] sm:$0xff]
  %v53 = vld [vmem:[%s0 + $0xa8] sm:$0xff]
  %v54 = vld [vmem:[%s0 + $0xb0] sm:$0xff]
  %v55 = vld [vmem:[%s0 + $0xb8] sm:$0xff]
  %v56 = vld [vmem:[%s0 + $0xc0] sm:$0xff]
  %v57 = vld [vmem:[%s0 + $0xc8] sm:$0xff]
  %v58 = vld [vmem:[%s0 + $0xd0] sm:$0xff]
  %v59 = vld [vmem:[%s0 + $0xd8] sm:$0xff]
  %v60 = vld [vmem:[%s0 + $0xe0] sm:$0xff]
  %v61 = vld [vmem:[%s0 + $0xe8] sm:$0xff]
  %v62 = vld [vmem:[%s0 + $0xf0] sm:$0xff]
  %v63 = vld [vmem:[%s0 + $0xf8] sm:$0xff]
  %v64 = vld [vmem:[%s1] sm:$0xff]
  %v65 = vld [vmem:[%s1 + $0x8] sm:$0xff]
  %v66 = vld [vmem:[%s1 + $0x10] sm:$0xff]
  %v67 = vld [vmem:[%s1 + $0x18] sm:$0xff]
  %v68 = vld [vmem:[%s1 + $0x20] sm:$0xff]
  %v69 = vld [vmem:[%s1 + $0x28] sm:$0xff]
  %v70 = vld [vmem:[%s1 + $0x30] sm:$0xff]
  %v71 = vld [vmem:[%s1 + $0x38] sm:$0xff]
  %v72 = vld [vmem:[%s1 + $0x40] sm:$0xff]
  %v73 = vld [vmem:[%s1 + $0x48] sm:$0xff]
  %v74 = vld [vmem:[%s1 + $0x50] sm:$0xff]
  %v75 = vld [vmem:[%s1 + $0x58] sm:$0xff]
  %v76 = vld [vmem:[%s1 + $0x60] sm:$0xff]
  %v77 = vld [vmem:[%s1 + $0x68] sm:$0xff]
  %v78 = vld [vmem:[%s1 + $0x70] sm:$0xff]
  %v79 = vld [vmem:[%s1 + $0x78] sm:$0xff]
  %v80 = vld [vmem:[%s1 + $0x80] sm:$0xff]
  %v81 = vld [vmem:[%s1 + $0x88] sm:$0xff]
  %v82 = vld [vmem:[%s1 + $0x90] sm:$0xff]
  %v83 = vld [vmem:[%s1 + $0x98] sm:$0xff]
  %v84 = vld [vmem:[%s1 + $0xa0] sm:$0xff]
  %v85 = vld [vmem:[%s1 + $0xa8] sm:$0xff]
  %v86 = vld [vmem:[%s1 + $0xb0] sm:$0xff]
  %v87 = vld [vmem:[%s1 + $0xb8] sm:$0xff]
  %v88 = vld [vmem:[%s1 + $0xc0] sm:$0xff]
  %v89 = vld [vmem:[%s1 + $0xc8] sm:$0xff]
  %v90 = vld [vmem:[%s1 + $0xd0] sm:$0xff]
  %v91 = vld [vmem:[%s1 + $0xd8] sm:$0xff]
  %v92 = vld [vmem:[%s1 + $0xe0] sm:$0xff]
  %v93 = vld [vmem:[%s1 + $0xe8] sm:$0xff]
  %v94 = vld [vmem:[%s1 + $0xf0] sm:$0xff]
  %v95 = vld [vmem:[%s1 + $0xf8] sm:$0xff]
  %v96 = vld [vmem:[%s1 + $0x100] sm:$0xff]
  %v97 = vld [vmem:[%s1 + $0x108] sm:$0xff]
  %v98 = vld [vmem:[%s1 + $0x110] sm:$0xff]
  %v99 = vld [vmem:[%s1 + $0x118] sm:$0xff]
  %v100 = vld [vmem:[%s1 + $0x120] sm:$0xff]
  %v101 = vld [vmem:[%s1 + $0x128] sm:$0xff]
  %v102 = vld [vmem:[%s1 + $0x130] sm:$0xff]
  %v103 = vld [vmem:[%s1 + $0x138] sm:$0xff]
  %v104 = vld [vmem:[%s1 + $0x140] sm:$0xff]
  %v105 = vld [vmem:[%s1 + $0x148] sm:$0xff]
  %v106 = vld [vmem:[%s1 + $0x150] sm:$0xff]
  %v107 = vld [vmem:[%s1 + $0x158] sm:$0xff]
  %v108 = vld [vmem:[%s1 + $0x160] sm:$0xff]
  %v109 = vld [vmem:[%s1 + $0x168] sm:$0xff]
  %v110 = vld [vmem:[%s1 + $0x170] sm:$0xff]
  %v111 = vld [vmem:[%s1 + $0x178] sm:$0xff]
  %v112 = vld [vmem:[%s1 + $0x180] sm:$0xff]
  %v113 = vld [vmem:[%s1 + $0x188] sm:$0xff]
  %v114 = vld [vmem:[%s1 + $0x190] sm:$0xff]
  %v115 = vld [vmem:[%s1 + $0x198] sm:$0xff]
  %v116 = vld [vmem:[%s1 + $0x1a0] sm:$0xff]
  %v117 = vld [vmem:[%s1 + $0x1a8] sm:$0xff]
  %v118 = vld [vmem:[%s1 + $0x1b0] sm:$0xff]
  %v119 = vld [vmem:[%s1 + $0x1b8] sm:$0xff]
  %v120 = vld [vmem:[%s1 + $0x1c0] sm:$0xff]
  %v121 = vld [vmem:[%s1 + $0x1c8] sm:$0xff]
  %v122 = vld [vmem:[%s1 + $0x1d0] sm:$0xff]
  %v123 = vld [vmem:[%s1 + $0x1d8] sm:$0xff]
  %v124 = vld [vmem:[%s1 + $0x1e0] sm:$0xff]
  %v125 = vld [vmem:[%s1 + $0x1e8] sm:$0xff]
  %v126 = vld [vmem:[%s1 + $0x1f0] sm:$0xff]
  %v127 = vld [vmem:[%s1 + $0x1f8] sm:$0xff]
  %v128 = vld [vmem:[%s1 + $0x200] sm:$0xff]
  %v129 = vld [vmem:[%s1 + $0x208] sm:$0xff]
  %v130 = vld [vmem:[%s1 + $0x210] sm:$0xff]
  %v131 = vld [vmem:[%s1 + $0x218] sm:$0xff]
  %v132 = vld [vmem:[%s1 + $0x220] sm:$0xff]
  %v133 = vld [vmem:[%s1 + $0x228] sm:$0xff]
  %v134 = vld [vmem:[%s1 + $0x230] sm:$0xff]
  %v135 = vld [vmem:[%s1 + $0x238] sm:$0xff]
  %v136 = vld [vmem:[%s1 + $0x240] sm:$0xff]
  %v137 = vld [vmem:[%s1 + $0x248] sm:$0xff]
  %v138 = vld [vmem:[%s1 + $0x250] sm:$0xff]
  %v139 = vld [vmem:[%s1 + $0x258] sm:$0xff]
  %v140 = vld [vmem:[%s1 + $0x260] sm:$0xff]
  %v141 = vld [vmem:[%s1 + $0x268] sm:$0xff]
  %v142 = vld [vmem:[%s1 + $0x270] sm:$0xff]
  %v143 = vld [vmem:[%s1 + $0x278] sm:$0xff]
  %v144 = vld [vmem:[%s1 + $0x280] sm:$0xff]
  %v145 = vld [vmem:[%s1 + $0x288] sm:$0xff]
  %v146 = vld [vmem:[%s1 + $0x290] sm:$0xff]
  %v147 = vld [vmem:[%s1 + $0x298] sm:$0xff]
  %v148 = vld [vmem:[%s1 + $0x2a0] sm:$0xff]
  %v149 = vld [vmem:[%s1 + $0x2a8] sm:$0xff]
  %v150 = vld [vmem:[%s1 + $0x2b0] sm:$0xff]
  %v151 = vld [vmem:[%s1 + $0x2b8] sm:$0xff]
  %v152 = vld [vmem:[%s1 + $0x2c0] sm:$0xff]
  %v153 = vld [vmem:[%s1 + $0x2c8] sm:$0xff]
  %v154 = vld [vmem:[%s1 + $0x2d0] sm:$0xff]
  %v155 = vld [vmem:[%s1 + $0x2d8] sm:$0xff]
  %v156 = vld [vmem:[%s1 + $0x2e0] sm:$0xff]
  %v157 = vld [vmem:[%s1 + $0x2e8] sm:$0xff]
  %v158 = vld [vmem:[%s1 + $0x2f0] sm:$0xff]
  %v159 = vld [vmem:[%s1 + $0x2f8] sm:$0xff]
  %v160 = vld [vmem:[%s1 + $0x300] sm:$0xff]
  %v161 = vld [vmem:[%s1 + $0x308] sm:$0xff]
  %v162 = vld [vmem:[%s1 + $0x310] sm:$0xff]
  %v163 = vld [vmem:[%s1 + $0x318] sm:$0xff]
  %v164 = vld [vmem:[%s1 + $0x320] sm:$0xff]
  %v165 = vld [vmem:[%s1 + $0x328] sm:$0xff]
  %v166 = vld [vmem:[%s1 + $0x330] sm:$0xff]
  %v167 = vld [vmem:[%s1 + $0x338] sm:$0xff]
  %v168 = vld [vmem:[%s1 + $0x340] sm:$0xff]
  %v169 = vld [vmem:[%s1 + $0x348] sm:$0xff]
  %v170 = vld [vmem:[%s1 + $0x350] sm:$0xff]
  %v171 = vld [vmem:[%s1 + $0x358] sm:$0xff]
  %v172 = vld [vmem:[%s1 + $0x360] sm:$0xff]
  %v173 = vld [vmem:[%s1 + $0x368] sm:$0xff]
  %v174 = vld [vmem:[%s1 + $0x370] sm:$0xff]
  %v175 = vld [vmem:[%s1 + $0x378] sm:$0xff]
  %v176 = vld [vmem:[%s1 + $0x380] sm:$0xff]
  %v177 = vld [vmem:[%s1 + $0x388] sm:$0xff]
  %v178 = vld [vmem:[%s1 + $0x390] sm:$0xff]
  %v179 = vld [vmem:[%s1 + $0x398] sm:$0xff]
  %v180 = vld [vmem:[%s1 + $0x3a0] sm:$0xff]
  %v181 = vld [vmem:[%s1 + $0x3a8] sm:$0xff]
  %v182 = vld [vmem:[%s1 + $0x3b0] sm:$0xff]
  %v183 = vld [vmem:[%s1 + $0x3b8] sm:$0xff]
  %v184 = vld [vmem:[%s1 + $0x3c0] sm:$0xff]
  %v185 = vld [vmem:[%s1 + $0x3c8] sm:$0xff]
  %v186 = vld [vmem:[%s1 + $0x3d0] sm:$0xff]
  %v187 = vld [vmem:[%s1 + $0x3d8] sm:$0xff]
  %v188 = vld [vmem:[%s1 + $0x3e0] sm:$0xff]
  %v189 = vld [vmem:[%s1 + $0x3e8] sm:$0xff]
  %v190 = vld [vmem:[%s1 + $0x3f0] sm:$0xff]
  %v191 = vld [vmem:[%s1 + $0x3f8] sm:$0xff]
  %v192 = vld [vmem:[%s1 + $0x400] sm:$0xff]
  %v193 = vld [vmem:[%s1 + $0x408] sm:$0xff]
  %v194 = vld [vmem:[%s1 + $0x410] sm:$0xff]
  %v195 = vld [vmem:[%s1 + $0x418] sm:$0xff]
  %v196 = vld [vmem:[%s1 + $0x420] sm:$0xff]
  %v197 = vld [vmem:[%s1 + $0x428] sm:$0xff]
  %v198 = vld [vmem:[%s1 + $0x430] sm:$0xff]
  %v199 = vld [vmem:[%s1 + $0x438] sm:$0xff]
  %v200 = vld [vmem:[%s1 + $0x440] sm:$0xff]
  %v201 = vld [vmem:[%s1 + $0x448] sm:$0xff]
  %v202 = vld [vmem:[%s1 + $0x450] sm:$0xff]
  %v203 = vld [vmem:[%s1 + $0x458] sm:$0xff]
  %v204 = vld [vmem:[%s1 + $0x460] sm:$0xff]
  %v205 = vld [vmem:[%s1 + $0x468] sm:$0xff]
  %v206 = vld [vmem:[%s1 + $0x470] sm:$0xff]
  %v207 = vld [vmem:[%s1 + $0x478] sm:$0xff]
  %v208 = vld [vmem:[%s2] sm:$0xff]
  %v210 = vlaneseq
  %v211 = vshrl.u32 %v210, 7
  %v212 = vsub.s32 0, %v211
  %v213 = vrot.slane %v208, %v212
  %v214 = vlaneseq
  %v215 = vshrl.u32 %v214, 7
  %v216 = vsub.s32 1, %v215
  %v217 = vrot.slane %v208, %v216
  %v218 = vlaneseq
  %v219 = vshrl.u32 %v218, 7
  %v220 = vsub.s32 2, %v219
  %v221 = vrot.slane %v208, %v220
  %v222 = vlaneseq
  %v223 = vshrl.u32 %v222, 7
  %v224 = vsub.s32 3, %v223
  %v225 = vrot.slane %v208, %v224
  %v226 = vlaneseq
  %v227 = vshrl.u32 %v226, 7
  %v228 = vsub.s32 4, %v227
  %v229 = vrot.slane %v208, %v228
  %v230 = vlaneseq
  %v231 = vshrl.u32 %v230, 7
  %v232 = vsub.s32 5, %v231
  %v233 = vrot.slane %v208, %v232
  %v234 = vlaneseq
  %v235 = vshrl.u32 %v234, 7
  %v236 = vsub.s32 6, %v235
  %v237 = vrot.slane %v208, %v236
  %v238 = vlaneseq
  %v239 = vshrl.u32 %v238, 7
  %v240 = vsub.s32 7, %v239
  %v241 = vrot.slane %v208, %v240
  %vm250 = vcmask 130048
  %v252 = vsel %vm250, %v33, 0
  %v255 = vsel %vm250, %v35, 0
  %v258 = vsel %vm250, %v37, 0
  %v261 = vsel %vm250, %v39, 0
  %v264 = vsel %vm250, %v41, 0
  %v267 = vsel %vm250, %v43, 0
  %v270 = vsel %vm250, %v45, 0
  %v273 = vsel %vm250, %v47, 0
  %v276 = vsel %vm250, %v49, 0
  %v279 = vsel %vm250, %v51, 0
  %v282 = vsel %vm250, %v53, 0
  %v285 = vsel %vm250, %v55, 0
  %v288 = vsel %vm250, %v57, 0
  %v291 = vsel %vm250, %v59, 0
  %v294 = vsel %vm250, %v61, 0
  %v297 = vsel %vm250, %v63, 0
  %299 = vmatprep.subr.mxu0 %v65
  %300 = vmatpush1.msra.mxu0 %v64
  %301 = vmatprep.subr.mxu0 %v73
  %302 = vmatpush1.msra.mxu0 %v72
  %303 = vmatprep.subr.mxu0 %v81
  %304 = vmatpush1.msra.mxu0 %v80
  %305 = vmatprep.subr.mxu0 %v89
  %306 = vmatpush1.msra.mxu0 %v88
  %307 = vmatprep.subr.mxu0 %v97
  %308 = vmatpush1.msra.mxu0 %v96
  %309 = vmatprep.subr.mxu0 %v105
  %310 = vmatpush1.msra.mxu0 %v104
  %311 = vmatprep.subr.mxu0 %v113
  %312 = vmatpush1.msra.mxu0 %v112
  %313 = vmatprep.subr.mxu0 %v121
  %314 = vmatpush1.msra.mxu0 %v120
  %315 = vmatprep.subr.mxu0 %v129
  %316 = vmatpush1.msra.mxu0 %v128
  %317 = vmatprep.subr.mxu0 %v137
  %318 = vmatpush1.msra.mxu0 %v136
  %319 = vmatprep.subr.mxu0 %v145
  %320 = vmatpush1.msra.mxu0 %v144
  %321 = vmatprep.subr.mxu0 %v153
  %322 = vmatpush1.msra.mxu0 %v152
  %323 = vmatprep.subr.mxu0 %v161
  %324 = vmatpush1.msra.mxu0 %v160
  %325 = vmatprep.subr.mxu0 %v169
  %326 = vmatpush1.msra.mxu0 %v168
  %327 = vmatprep.subr.mxu0 %v177
  %328 = vmatpush1.msra.mxu0 %v176
  %329 = vmatprep.subr.mxu0 %v185
  %330 = vmatpush1.msra.mxu0 %v184
  %331 = vmatprep.subr.mxu0 %v193
  %332 = vmatpush1.msra.mxu0 %v192
  %333 = vmatprep.subr.mxu0 %v201
  %334 = vmatpush1.msra.mxu0 %v200
  %335 = vmatprep.subr.mxu0 0.0
  %336 = vmatpush1.msra.mxu0 0.0
  %337 = vmatprep.subr.mxu0 0.0
  %338 = vmatpush1.msra.mxu0 0.0
  %339 = vmatprep.subr.mxu0 0.0
  %340 = vmatpush1.msra.mxu0 0.0
  %341 = vmatprep.subr.mxu0 0.0
  %342 = vmatpush1.msra.mxu0 0.0
  %343 = vmatprep.subr.mxu0 0.0
  %344 = vmatpush1.msra.mxu0 0.0
  %345 = vmatprep.subr.mxu0 0.0
  %346 = vmatpush1.msra.mxu0 0.0
  %347 = vmatprep.subr.mxu0 0.0
  %348 = vmatpush1.msra.mxu0 0.0
  %349 = vmatprep.subr.mxu0 0.0
  %350 = vmatpush1.msra.mxu0 0.0
  %351 = vmatprep.subr.mxu0 0.0
  %352 = vmatpush1.msra.mxu0 0.0
  %353 = vmatprep.subr.mxu0 0.0
  %354 = vmatpush1.msra.mxu0 0.0
  %355 = vmatprep.subr.mxu0 0.0
  %356 = vmatpush1.msra.mxu0 0.0
  %357 = vmatprep.subr.mxu0 0.0
  %358 = vmatpush1.msra.mxu0 0.0
  %359 = vmatprep.subr.mxu0 0.0
  %360 = vmatpush1.msra.mxu0 0.0
  %361 = vmatprep.subr.mxu0 0.0
  %362 = vmatpush1.msra.mxu0 0.0
  %363 = vmatprep.mubr.f32.mxu0 %v252
  %364 = vmatmul.mubr.f32.gmra.mrb[0].mxu0 %v32
  %v365 = vpop.f32.mrb[0].mxu0
  %v366 = vadd.f32 %v213, %v365
  %v367 = vpop.f32.mrb[0].mxu0
  %v368 = vadd.f32 %v217, %v367
  %369 = vmatprep.mubr.f32.mxu0 %v255
  %370 = vmatmul.mubr.f32.gmra.mrb[0].mxu0 %v34
  %v371 = vpop.f32.mrb[0].mxu0
  %v372 = vadd.f32 %v213, %v371
  %v373 = vpop.f32.mrb[0].mxu0
  %v374 = vadd.f32 %v217, %v373
  %375 = vmatprep.mubr.f32.mxu0 %v258
  %376 = vmatmul.mubr.f32.gmra.mrb[0].mxu0 %v36
  %v377 = vpop.f32.mrb[0].mxu0
  %v378 = vadd.f32 %v213, %v377
  %v379 = vpop.f32.mrb[0].mxu0
  %v380 = vadd.f32 %v217, %v379
  %381 = vmatprep.mubr.f32.mxu0 %v261
  %382 = vmatmul.mubr.f32.gmra.mrb[0].mxu0 %v38
  %v383 = vpop.f32.mrb[0].mxu0
  %v384 = vadd.f32 %v213, %v383
  %v385 = vpop.f32.mrb[0].mxu0
  %v386 = vadd.f32 %v217, %v385
  %387 = vmatprep.mubr.f32.mxu0 %v264
  %388 = vmatmul.mubr.f32.gmra.mrb[0].mxu0 %v40
  %v389 = vpop.f32.mrb[0].mxu0
  %v390 = vadd.f32 %v213, %v389
  %v391 = vpop.f32.mrb[0].mxu0
  %v392 = vadd.f32 %v217, %v391
  %393 = vmatprep.mubr.f32.mxu0 %v267
  %394 = vmatmul.mubr.f32.gmra.mrb[0].mxu0 %v42
  %v395 = vpop.f32.mrb[0].mxu0
  %v396 = vadd.f32 %v213, %v395
  %v397 = vpop.f32.mrb[0].mxu0
  %v398 = vadd.f32 %v217, %v397
  %399 = vmatprep.mubr.f32.mxu0 %v270
  %400 = vmatmul.mubr.f32.gmra.mrb[0].mxu0 %v44
  %v401 = vpop.f32.mrb[0].mxu0
  %v402 = vadd.f32 %v213, %v401
  %v403 = vpop.f32.mrb[0].mxu0
  %v404 = vadd.f32 %v217, %v403
  %405 = vmatprep.mubr.f32.mxu0 %v273
  %406 = vmatmul.mubr.f32.gmra.mrb[0].mxu0 %v46
  %v407 = vpop.f32.mrb[0].mxu0
  %v408 = vadd.f32 %v213, %v407
  %v409 = vpop.f32.mrb[0].mxu0
  %v410 = vadd.f32 %v217, %v409
  %411 = vmatprep.mubr.f32.mxu0 %v276
  %412 = vmatmul.mubr.f32.gmra.mrb[0].mxu0 %v48
  %v413 = vpop.f32.mrb[0].mxu0
  %v414 = vadd.f32 %v213, %v413
  %v415 = vpop.f32.mrb[0].mxu0
  %v416 = vadd.f32 %v217, %v415
  %417 = vmatprep.mubr.f32.mxu0 %v279
  %418 = vmatmul.mubr.f32.gmra.mrb[0].mxu0 %v50
  %v419 = vpop.f32.mrb[0].mxu0
  %v420 = vadd.f32 %v213, %v419
  %v421 = vpop.f32.mrb[0].mxu0
  %v422 = vadd.f32 %v217, %v421
  %423 = vmatprep.mubr.f32.mxu0 %v282
  %424 = vmatmul.mubr.f32.gmra.mrb[0].mxu0 %v52
  %v425 = vpop.f32.mrb[0].mxu0
  %v426 = vadd.f32 %v213, %v425
  %v427 = vpop.f32.mrb[0].mxu0
  %v428 = vadd.f32 %v217, %v427
  %429 = vmatprep.mubr.f32.mxu0 %v285
  %430 = vmatmul.mubr.f32.gmra.mrb[0].mxu0 %v54
  %v431 = vpop.f32.mrb[0].mxu0
  %v432 = vadd.f32 %v213, %v431
  %v433 = vpop.f32.mrb[0].mxu0
  %v434 = vadd.f32 %v217, %v433
  %435 = vmatprep.mubr.f32.mxu0 %v288
  %436 = vmatmul.mubr.f32.gmra.mrb[0].mxu0 %v56
  %v437 = vpop.f32.mrb[0].mxu0
  %v438 = vadd.f32 %v213, %v437
  %v439 = vpop.f32.mrb[0].mxu0
  %v440 = vadd.f32 %v217, %v439
  %441 = vmatprep.mubr.f32.mxu0 %v291
  %442 = vmatmul.mubr.f32.gmra.mrb[0].mxu0 %v58
  %v443 = vpop.f32.mrb[0].mxu0
  %v444 = vadd.f32 %v213, %v443
  %v445 = vpop.f32.mrb[0].mxu0
  %v446 = vadd.f32 %v217, %v445
  %447 = vmatprep.mubr.f32.mxu0 %v294
  %448 = vmatmul.mubr.f32.gmra.mrb[0].mxu0 %v60
  %v449 = vpop.f32.mrb[0].mxu0
  %v450 = vadd.f32 %v213, %v449
  %v451 = vpop.f32.mrb[0].mxu0
  %v452 = vadd.f32 %v217, %v451
  %453 = vmatprep.mubr.f32.mxu0 %v297
  %454 = vmatmul.mubr.f32.gmra.mrb[0].mxu0 %v62
  %v455 = vpop.f32.mrb[0].mxu0
  %v456 = vadd.f32 %v213, %v455
  %v457 = vpop.f32.mrb[0].mxu0
  %v458 = vadd.f32 %v217, %v457
  %459 = vdwg.mxu0
  %460 = vmatprep.subr.mxu0 %v67
  %461 = vmatpush1.msra.mxu0 %v66
  %462 = vmatprep.subr.mxu0 %v75
  %463 = vmatpush1.msra.mxu0 %v74
  %464 = vmatprep.subr.mxu0 %v83
  %465 = vmatpush1.msra.mxu0 %v82
  %466 = vmatprep.subr.mxu0 %v91
  %467 = vmatpush1.msra.mxu0 %v90
  %468 = vmatprep.subr.mxu0 %v99
  %469 = vmatpush1.msra.mxu0 %v98
  %470 = vmatprep.subr.mxu0 %v107
  %471 = vmatpush1.msra.mxu0 %v106
  %472 = vmatprep.subr.mxu0 %v115
  %473 = vmatpush1.msra.mxu0 %v114
  %474 = vmatprep.subr.mxu0 %v123
  %475 = vmatpush1.msra.mxu0 %v122
  %476 = vmatprep.subr.mxu0 %v131
  %477 = vmatpush1.msra.mxu0 %v130
  %478 = vmatprep.subr.mxu0 %v139
  %479 = vmatpush1.msra.mxu0 %v138
  %480 = vmatprep.subr.mxu0 %v147
  %481 = vmatpush1.msra.mxu0 %v146
  %482 = vmatprep.subr.mxu0 %v155
  %483 = vmatpush1.msra.mxu0 %v154
  %484 = vmatprep.subr.mxu0 %v163
  %485 = vmatpush1.msra.mxu0 %v162
  %486 = vmatprep.subr.mxu0 %v171
  %487 = vmatpush1.msra.mxu0 %v170
  %488 = vmatprep.subr.mxu0 %v179
  %489 = vmatpush1.msra.mxu0 %v178
  %490 = vmatprep.subr.mxu0 %v187
  %491 = vmatpush1.msra.mxu0 %v186
  %492 = vmatprep.subr.mxu0 %v195
  %493 = vmatpush1.msra.mxu0 %v194
  %494 = vmatprep.subr.mxu0 %v203
  %495 = vmatpush1.msra.mxu0 %v202
  %496 = vmatprep.subr.mxu0 0.0
  %497 = vmatpush1.msra.mxu0 0.0
  %498 = vmatprep.subr.mxu0 0.0
  %499 = vmatpush1.msra.mxu0 0.0
  %500 = vmatprep.subr.mxu0 0.0
  %501 = vmatpush1.msra.mxu0 0.0
  %502 = vmatprep.subr.mxu0 0.0
  %503 = vmatpush1.msra.mxu0 0.0
  %504 = vmatprep.subr.mxu0 0.0
  %505 = vmatpush1.msra.mxu0 0.0
  %506 = vmatprep.subr.mxu0 0.0
  %507 = vmatpush1.msra.mxu0 0.0
  %508 = vmatprep.subr.mxu0 0.0
  %509 = vmatpush1.msra.mxu0 0.0
  %510 = vmatprep.subr.mxu0 0.0
  %511 = vmatpush1.msra.mxu0 0.0
  %512 = vmatprep.subr.mxu0 0.0
  %513 = vmatpush1.msra.mxu0 0.0
  %514 = vmatprep.subr.mxu0 0.0
  %515 = vmatpush1.msra.mxu0 0.0
  %516 = vmatprep.subr.mxu0 0.0
  %517 = vmatpush1.msra.mxu0 0.0
  %518 = vmatprep.subr.mxu0 0.0
  %519 = vmatpush1.msra.mxu0 0.0
  %520 = vmatprep.subr.mxu0 0.0
  %521 = vmatpush1.msra.mxu0 0.0
  %522 = vmatprep.subr.mxu0 0.0
  %523 = vmatpush1.msra.mxu0 0.0
  %524 = vmatprep.mubr.f32.mxu0 %v252
  %525 = vmatmul.mubr.f32.gmra.mrb[0].mxu0 %v32
  %v526 = vpop.f32.mrb[0].mxu0
  %v527 = vadd.f32 %v221, %v526
  %v528 = vpop.f32.mrb[0].mxu0
  %v529 = vadd.f32 %v225, %v528
  %530 = vmatprep.mubr.f32.mxu0 %v255
  %531 = vmatmul.mubr.f32.gmra.mrb[0].mxu0 %v34
  %v532 = vpop.f32.mrb[0].mxu0
  %v533 = vadd.f32 %v221, %v532
  %v534 = vpop.f32.mrb[0].mxu0
  %v535 = vadd.f32 %v225, %v534
  %536 = vmatprep.mubr.f32.mxu0 %v258
  %537 = vmatmul.mubr.f32.gmra.mrb[0].mxu0 %v36
  %v538 = vpop.f32.mrb[0].mxu0
  %v539 = vadd.f32 %v221, %v538
  %v540 = vpop.f32.mrb[0].mxu0
  %v541 = vadd.f32 %v225, %v540
  %542 = vmatprep.mubr.f32.mxu0 %v261
  %543 = vmatmul.mubr.f32.gmra.mrb[0].mxu0 %v38
  %v544 = vpop.f32.mrb[0].mxu0
  %v545 = vadd.f32 %v221, %v544
  %v546 = vpop.f32.mrb[0].mxu0
  %v547 = vadd.f32 %v225, %v546
  %548 = vmatprep.mubr.f32.mxu0 %v264
  %549 = vmatmul.mubr.f32.gmra.mrb[0].mxu0 %v40
  %v550 = vpop.f32.mrb[0].mxu0
  %v551 = vadd.f32 %v221, %v550
  %v552 = vpop.f32.mrb[0].mxu0
  %v553 = vadd.f32 %v225, %v552
  %554 = vmatprep.mubr.f32.mxu0 %v267
  %555 = vmatmul.mubr.f32.gmra.mrb[0].mxu0 %v42
  %v556 = vpop.f32.mrb[0].mxu0
  %v557 = vadd.f32 %v221, %v556
  %v558 = vpop.f32.mrb[0].mxu0
  %v559 = vadd.f32 %v225, %v558
  %560 = vmatprep.mubr.f32.mxu0 %v270
  %561 = vmatmul.mubr.f32.gmra.mrb[0].mxu0 %v44
  %v562 = vpop.f32.mrb[0].mxu0
  %v563 = vadd.f32 %v221, %v562
  %v564 = vpop.f32.mrb[0].mxu0
  %v565 = vadd.f32 %v225, %v564
  %566 = vmatprep.mubr.f32.mxu0 %v273
  %567 = vmatmul.mubr.f32.gmra.mrb[0].mxu0 %v46
  %v568 = vpop.f32.mrb[0].mxu0
  %v569 = vadd.f32 %v221, %v568
  %v570 = vpop.f32.mrb[0].mxu0
  %v571 = vadd.f32 %v225, %v570
  %572 = vmatprep.mubr.f32.mxu0 %v276
  %573 = vmatmul.mubr.f32.gmra.mrb[0].mxu0 %v48
  %v574 = vpop.f32.mrb[0].mxu0
  %v575 = vadd.f32 %v221, %v574
  %v576 = vpop.f32.mrb[0].mxu0
  %v577 = vadd.f32 %v225, %v576
  %578 = vmatprep.mubr.f32.mxu0 %v279
  %579 = vmatmul.mubr.f32.gmra.mrb[0].mxu0 %v50
  %v580 = vpop.f32.mrb[0].mxu0
  %v581 = vadd.f32 %v221, %v580
  %v582 = vpop.f32.mrb[0].mxu0
  %v583 = vadd.f32 %v225, %v582
  %584 = vmatprep.mubr.f32.mxu0 %v282
  %585 = vmatmul.mubr.f32.gmra.mrb[0].mxu0 %v52
  %v586 = vpop.f32.mrb[0].mxu0
  %v587 = vadd.f32 %v221, %v586
  %v588 = vpop.f32.mrb[0].mxu0
  %v589 = vadd.f32 %v225, %v588
  %590 = vmatprep.mubr.f32.mxu0 %v285
  %591 = vmatmul.mubr.f32.gmra.mrb[0].mxu0 %v54
  %v592 = vpop.f32.mrb[0].mxu0
  %v593 = vadd.f32 %v221, %v592
  %v594 = vpop.f32.mrb[0].mxu0
  %v595 = vadd.f32 %v225, %v594
  %596 = vmatprep.mubr.f32.mxu0 %v288
  %597 = vmatmul.mubr.f32.gmra.mrb[0].mxu0 %v56
  %v598 = vpop.f32.mrb[0].mxu0
  %v599 = vadd.f32 %v221, %v598
  %v600 = vpop.f32.mrb[0].mxu0
  %v601 = vadd.f32 %v225, %v600
  %602 = vmatprep.mubr.f32.mxu0 %v291
  %603 = vmatmul.mubr.f32.gmra.mrb[0].mxu0 %v58
  %v604 = vpop.f32.mrb[0].mxu0
  %v605 = vadd.f32 %v221, %v604
  %v606 = vpop.f32.mrb[0].mxu0
  %v607 = vadd.f32 %v225, %v606
  %608 = vmatprep.mubr.f32.mxu0 %v294
  %609 = vmatmul.mubr.f32.gmra.mrb[0].mxu0 %v60
  %v610 = vpop.f32.mrb[0].mxu0
  %v611 = vadd.f32 %v221, %v610
  %v612 = vpop.f32.mrb[0].mxu0
  %v613 = vadd.f32 %v225, %v612
  %614 = vmatprep.mubr.f32.mxu0 %v297
  %615 = vmatmul.mubr.f32.gmra.mrb[0].mxu0 %v62
  %v616 = vpop.f32.mrb[0].mxu0
  %v617 = vadd.f32 %v221, %v616
  %v618 = vpop.f32.mrb[0].mxu0
  %v619 = vadd.f32 %v225, %v618
  %620 = vdwg.mxu0
  %621 = vmatprep.subr.mxu0 %v69
  %622 = vmatpush1.msra.mxu0 %v68
  %623 = vmatprep.subr.mxu0 %v77
  %624 = vmatpush1.msra.mxu0 %v76
  %625 = vmatprep.subr.mxu0 %v85
  %626 = vmatpush1.msra.mxu0 %v84
  %627 = vmatprep.subr.mxu0 %v93
  %628 = vmatpush1.msra.mxu0 %v92
  %629 = vmatprep.subr.mxu0 %v101
  %630 = vmatpush1.msra.mxu0 %v100
  %631 = vmatprep.subr.mxu0 %v109
  %632 = vmatpush1.msra.mxu0 %v108
  %633 = vmatprep.subr.mxu0 %v117
  %634 = vmatpush1.msra.mxu0 %v116
  %635 = vmatprep.subr.mxu0 %v125
  %636 = vmatpush1.msra.mxu0 %v124
  %637 = vmatprep.subr.mxu0 %v133
  %638 = vmatpush1.msra.mxu0 %v132
  %639 = vmatprep.subr.mxu0 %v141
  %640 = vmatpush1.msra.mxu0 %v140
  %641 = vmatprep.subr.mxu0 %v149
  %642 = vmatpush1.msra.mxu0 %v148
  %643 = vmatprep.subr.mxu0 %v157
  %644 = vmatpush1.msra.mxu0 %v156
  %645 = vmatprep.subr.mxu0 %v165
  %646 = vmatpush1.msra.mxu0 %v164
  %647 = vmatprep.subr.mxu0 %v173
  %648 = vmatpush1.msra.mxu0 %v172
  %649 = vmatprep.subr.mxu0 %v181
  %650 = vmatpush1.msra.mxu0 %v180
  %651 = vmatprep.subr.mxu0 %v189
  %652 = vmatpush1.msra.mxu0 %v188
  %653 = vmatprep.subr.mxu0 %v197
  %654 = vmatpush1.msra.mxu0 %v196
  %655 = vmatprep.subr.mxu0 %v205
  %656 = vmatpush1.msra.mxu0 %v204
  %657 = vmatprep.subr.mxu0 0.0
  %658 = vmatpush1.msra.mxu0 0.0
  %659 = vmatprep.subr.mxu0 0.0
  %660 = vmatpush1.msra.mxu0 0.0
  %661 = vmatprep.subr.mxu0 0.0
  %662 = vmatpush1.msra.mxu0 0.0
  %663 = vmatprep.subr.mxu0 0.0
  %664 = vmatpush1.msra.mxu0 0.0
  %665 = vmatprep.subr.mxu0 0.0
  %666 = vmatpush1.msra.mxu0 0.0
  %667 = vmatprep.subr.mxu0 0.0
  %668 = vmatpush1.msra.mxu0 0.0
  %669 = vmatprep.subr.mxu0 0.0
  %670 = vmatpush1.msra.mxu0 0.0
  %671 = vmatprep.subr.mxu0 0.0
  %672 = vmatpush1.msra.mxu0 0.0
  %673 = vmatprep.subr.mxu0 0.0
  %674 = vmatpush1.msra.mxu0 0.0
  %675 = vmatprep.subr.mxu0 0.0
  %676 = vmatpush1.msra.mxu0 0.0
  %677 = vmatprep.subr.mxu0 0.0
  %678 = vmatpush1.msra.mxu0 0.0
  %679 = vmatprep.subr.mxu0 0.0
  %680 = vmatpush1.msra.mxu0 0.0
  %681 = vmatprep.subr.mxu0 0.0
  %682 = vmatpush1.msra.mxu0 0.0
  %683 = vmatprep.subr.mxu0 0.0
  %684 = vmatpush1.msra.mxu0 0.0
  %685 = vmatprep.mubr.f32.mxu0 %v252
  %686 = vmatmul.mubr.f32.gmra.mrb[0].mxu0 %v32
  %v687 = vpop.f32.mrb[0].mxu0
  %v688 = vadd.f32 %v229, %v687
  %v689 = vpop.f32.mrb[0].mxu0
  %v690 = vadd.f32 %v233, %v689
  %691 = vmatprep.mubr.f32.mxu0 %v255
  %692 = vmatmul.mubr.f32.gmra.mrb[0].mxu0 %v34
  %v693 = vpop.f32.mrb[0].mxu0
  %v694 = vadd.f32 %v229, %v693
  %v695 = vpop.f32.mrb[0].mxu0
  %v696 = vadd.f32 %v233, %v695
  %697 = vmatprep.mubr.f32.mxu0 %v258
  %698 = vmatmul.mubr.f32.gmra.mrb[0].mxu0 %v36
  %v699 = vpop.f32.mrb[0].mxu0
  %v700 = vadd.f32 %v229, %v699
  %v701 = vpop.f32.mrb[0].mxu0
  %v702 = vadd.f32 %v233, %v701
  %703 = vmatprep.mubr.f32.mxu0 %v261
  %704 = vmatmul.mubr.f32.gmra.mrb[0].mxu0 %v38
  %v705 = vpop.f32.mrb[0].mxu0
  %v706 = vadd.f32 %v229, %v705
  %v707 = vpop.f32.mrb[0].mxu0
  %v708 = vadd.f32 %v233, %v707
  %709 = vmatprep.mubr.f32.mxu0 %v264
  %710 = vmatmul.mubr.f32.gmra.mrb[0].mxu0 %v40
  %v711 = vpop.f32.mrb[0].mxu0
  %v712 = vadd.f32 %v229, %v711
  %v713 = vpop.f32.mrb[0].mxu0
  %v714 = vadd.f32 %v233, %v713
  %715 = vmatprep.mubr.f32.mxu0 %v267
  %716 = vmatmul.mubr.f32.gmra.mrb[0].mxu0 %v42
  %v717 = vpop.f32.mrb[0].mxu0
  %v718 = vadd.f32 %v229, %v717
  %v719 = vpop.f32.mrb[0].mxu0
  %v720 = vadd.f32 %v233, %v719
  %721 = vmatprep.mubr.f32.mxu0 %v270
  %722 = vmatmul.mubr.f32.gmra.mrb[0].mxu0 %v44
  %v723 = vpop.f32.mrb[0].mxu0
  %v724 = vadd.f32 %v229, %v723
  %v725 = vpop.f32.mrb[0].mxu0
  %v726 = vadd.f32 %v233, %v725
  %727 = vmatprep.mubr.f32.mxu0 %v273
  %728 = vmatmul.mubr.f32.gmra.mrb[0].mxu0 %v46
  %v729 = vpop.f32.mrb[0].mxu0
  %v730 = vadd.f32 %v229, %v729
  %v731 = vpop.f32.mrb[0].mxu0
  %v732 = vadd.f32 %v233, %v731
  %733 = vmatprep.mubr.f32.mxu0 %v276
  %734 = vmatmul.mubr.f32.gmra.mrb[0].mxu0 %v48
  %v735 = vpop.f32.mrb[0].mxu0
  %v736 = vadd.f32 %v229, %v735
  %v737 = vpop.f32.mrb[0].mxu0
  %v738 = vadd.f32 %v233, %v737
  %739 = vmatprep.mubr.f32.mxu0 %v279
  %740 = vmatmul.mubr.f32.gmra.mrb[0].mxu0 %v50
  %v741 = vpop.f32.mrb[0].mxu0
  %v742 = vadd.f32 %v229, %v741
  %v743 = vpop.f32.mrb[0].mxu0
  %v744 = vadd.f32 %v233, %v743
  %745 = vmatprep.mubr.f32.mxu0 %v282
  %746 = vmatmul.mubr.f32.gmra.mrb[0].mxu0 %v52
  %v747 = vpop.f32.mrb[0].mxu0
  %v748 = vadd.f32 %v229, %v747
  %v749 = vpop.f32.mrb[0].mxu0
  %v750 = vadd.f32 %v233, %v749
  %751 = vmatprep.mubr.f32.mxu0 %v285
  %752 = vmatmul.mubr.f32.gmra.mrb[0].mxu0 %v54
  %v753 = vpop.f32.mrb[0].mxu0
  %v754 = vadd.f32 %v229, %v753
  %v755 = vpop.f32.mrb[0].mxu0
  %v756 = vadd.f32 %v233, %v755
  %757 = vmatprep.mubr.f32.mxu0 %v288
  %758 = vmatmul.mubr.f32.gmra.mrb[0].mxu0 %v56
  %v759 = vpop.f32.mrb[0].mxu0
  %v760 = vadd.f32 %v229, %v759
  %v761 = vpop.f32.mrb[0].mxu0
  %v762 = vadd.f32 %v233, %v761
  %763 = vmatprep.mubr.f32.mxu0 %v291
  %764 = vmatmul.mubr.f32.gmra.mrb[0].mxu0 %v58
  %v765 = vpop.f32.mrb[0].mxu0
  %v766 = vadd.f32 %v229, %v765
  %v767 = vpop.f32.mrb[0].mxu0
  %v768 = vadd.f32 %v233, %v767
  %769 = vmatprep.mubr.f32.mxu0 %v294
  %770 = vmatmul.mubr.f32.gmra.mrb[0].mxu0 %v60
  %v771 = vpop.f32.mrb[0].mxu0
  %v772 = vadd.f32 %v229, %v771
  %v773 = vpop.f32.mrb[0].mxu0
  %v774 = vadd.f32 %v233, %v773
  %775 = vmatprep.mubr.f32.mxu0 %v297
  %776 = vmatmul.mubr.f32.gmra.mrb[0].mxu0 %v62
  %v777 = vpop.f32.mrb[0].mxu0
  %v778 = vadd.f32 %v229, %v777
  %v779 = vpop.f32.mrb[0].mxu0
  %v780 = vadd.f32 %v233, %v779
  %781 = vdwg.mxu0
  %782 = vmatprep.subr.mxu0 %v71
  %783 = vmatpush1.msra.mxu0 %v70
  %784 = vmatprep.subr.mxu0 %v79
  %785 = vmatpush1.msra.mxu0 %v78
  %786 = vmatprep.subr.mxu0 %v87
  %787 = vmatpush1.msra.mxu0 %v86
  %788 = vmatprep.subr.mxu0 %v95
  %789 = vmatpush1.msra.mxu0 %v94
  %790 = vmatprep.subr.mxu0 %v103
  %791 = vmatpush1.msra.mxu0 %v102
  %792 = vmatprep.subr.mxu0 %v111
  %793 = vmatpush1.msra.mxu0 %v110
  %794 = vmatprep.subr.mxu0 %v119
  %795 = vmatpush1.msra.mxu0 %v118
  %796 = vmatprep.subr.mxu0 %v127
  %797 = vmatpush1.msra.mxu0 %v126
  %798 = vmatprep.subr.mxu0 %v135
  %799 = vmatpush1.msra.mxu0 %v134
  %800 = vmatprep.subr.mxu0 %v143
  %801 = vmatpush1.msra.mxu0 %v142
  %802 = vmatprep.subr.mxu0 %v151
  %803 = vmatpush1.msra.mxu0 %v150
  %804 = vmatprep.subr.mxu0 %v159
  %805 = vmatpush1.msra.mxu0 %v158
  %806 = vmatprep.subr.mxu0 %v167
  %807 = vmatpush1.msra.mxu0 %v166
  %808 = vmatprep.subr.mxu0 %v175
  %809 = vmatpush1.msra.mxu0 %v174
  %810 = vmatprep.subr.mxu0 %v183
  %811 = vmatpush1.msra.mxu0 %v182
  %812 = vmatprep.subr.mxu0 %v191
  %813 = vmatpush1.msra.mxu0 %v190
  %814 = vmatprep.subr.mxu0 %v199
  %815 = vmatpush1.msra.mxu0 %v198
  %816 = vmatprep.subr.mxu0 %v207
  %817 = vmatpush1.msra.mxu0 %v206
  %818 = vmatprep.subr.mxu0 0.0
  %819 = vmatpush1.msra.mxu0 0.0
  %820 = vmatprep.subr.mxu0 0.0
  %821 = vmatpush1.msra.mxu0 0.0
  %822 = vmatprep.subr.mxu0 0.0
  %823 = vmatpush1.msra.mxu0 0.0
  %824 = vmatprep.subr.mxu0 0.0
  %825 = vmatpush1.msra.mxu0 0.0
  %826 = vmatprep.subr.mxu0 0.0
  %827 = vmatpush1.msra.mxu0 0.0
  %828 = vmatprep.subr.mxu0 0.0
  %829 = vmatpush1.msra.mxu0 0.0
  %830 = vmatprep.subr.mxu0 0.0
  %831 = vmatpush1.msra.mxu0 0.0
  %832 = vmatprep.subr.mxu0 0.0
  %833 = vmatpush1.msra.mxu0 0.0
  %834 = vmatprep.subr.mxu0 0.0
  %835 = vmatpush1.msra.mxu0 0.0
  %836 = vmatprep.subr.mxu0 0.0
  %837 = vmatpush1.msra.mxu0 0.0
  %838 = vmatprep.subr.mxu0 0.0
  %839 = vmatpush1.msra.mxu0 0.0
  %840 = vmatprep.subr.mxu0 0.0
  %841 = vmatpush1.msra.mxu0 0.0
  %842 = vmatprep.subr.mxu0 0.0
  %843 = vmatpush1.msra.mxu0 0.0
  %844 = vmatprep.subr.mxu0 0.0
  %845 = vmatpush1.msra.mxu0 0.0
  %846 = vmatprep.mubr.f32.mxu0 %v252
  %847 = vmatmul.mubr.f32.gmra.mrb[0].mxu0 %v32
  %v848 = vpop.f32.mrb[0].mxu0
  %v849 = vadd.f32 %v237, %v848
  %v850 = vpop.f32.mrb[0].mxu0
  %v851 = vadd.f32 %v241, %v850
  %852 = vmatprep.mubr.f32.mxu0 %v255
  %853 = vmatmul.mubr.f32.gmra.mrb[0].mxu0 %v34
  %v854 = vpop.f32.mrb[0].mxu0
  %v855 = vadd.f32 %v237, %v854
  %v856 = vpop.f32.mrb[0].mxu0
  %v857 = vadd.f32 %v241, %v856
  %858 = vmatprep.mubr.f32.mxu0 %v258
  %859 = vmatmul.mubr.f32.gmra.mrb[0].mxu0 %v36
  %v860 = vpop.f32.mrb[0].mxu0
  %v861 = vadd.f32 %v237, %v860
  %v862 = vpop.f32.mrb[0].mxu0
  %v863 = vadd.f32 %v241, %v862
  %864 = vmatprep.mubr.f32.mxu0 %v261
  %865 = vmatmul.mubr.f32.gmra.mrb[0].mxu0 %v38
  %v866 = vpop.f32.mrb[0].mxu0
  %v867 = vadd.f32 %v237, %v866
  %v868 = vpop.f32.mrb[0].mxu0
  %v869 = vadd.f32 %v241, %v868
  %870 = vmatprep.mubr.f32.mxu0 %v264
  %871 = vmatmul.mubr.f32.gmra.mrb[0].mxu0 %v40
  %v872 = vpop.f32.mrb[0].mxu0
  %v873 = vadd.f32 %v237, %v872
  %v874 = vpop.f32.mrb[0].mxu0
  %v875 = vadd.f32 %v241, %v874
  %876 = vmatprep.mubr.f32.mxu0 %v267
  %877 = vmatmul.mubr.f32.gmra.mrb[0].mxu0 %v42
  %v878 = vpop.f32.mrb[0].mxu0
  %v879 = vadd.f32 %v237, %v878
  %v880 = vpop.f32.mrb[0].mxu0
  %v881 = vadd.f32 %v241, %v880
  %882 = vmatprep.mubr.f32.mxu0 %v270
  %883 = vmatmul.mubr.f32.gmra.mrb[0].mxu0 %v44
  %v884 = vpop.f32.mrb[0].mxu0
  %v885 = vadd.f32 %v237, %v884
  %v886 = vpop.f32.mrb[0].mxu0
  %v887 = vadd.f32 %v241, %v886
  %888 = vmatprep.mubr.f32.mxu0 %v273
  %889 = vmatmul.mubr.f32.gmra.mrb[0].mxu0 %v46
  %v890 = vpop.f32.mrb[0].mxu0
  %v891 = vadd.f32 %v237, %v890
  %v892 = vpop.f32.mrb[0].mxu0
  %v893 = vadd.f32 %v241, %v892
  %894 = vmatprep.mubr.f32.mxu0 %v276
  %895 = vmatmul.mubr.f32.gmra.mrb[0].mxu0 %v48
  %v896 = vpop.f32.mrb[0].mxu0
  %v897 = vadd.f32 %v237, %v896
  %v898 = vpop.f32.mrb[0].mxu0
  %v899 = vadd.f32 %v241, %v898
  %900 = vmatprep.mubr.f32.mxu0 %v279
  %901 = vmatmul.mubr.f32.gmra.mrb[0].mxu0 %v50
  %v902 = vpop.f32.mrb[0].mxu0
  %v903 = vadd.f32 %v237, %v902
  %v904 = vpop.f32.mrb[0].mxu0
  %v905 = vadd.f32 %v241, %v904
  %906 = vmatprep.mubr.f32.mxu0 %v282
  %907 = vmatmul.mubr.f32.gmra.mrb[0].mxu0 %v52
  %v908 = vpop.f32.mrb[0].mxu0
  %v909 = vadd.f32 %v237, %v908
  %v910 = vpop.f32.mrb[0].mxu0
  %v911 = vadd.f32 %v241, %v910
  %912 = vmatprep.mubr.f32.mxu0 %v285
  %913 = vmatmul.mubr.f32.gmra.mrb[0].mxu0 %v54
  %v914 = vpop.f32.mrb[0].mxu0
  %v915 = vadd.f32 %v237, %v914
  %v916 = vpop.f32.mrb[0].mxu0
  %v917 = vadd.f32 %v241, %v916
  %918 = vmatprep.mubr.f32.mxu0 %v288
  %919 = vmatmul.mubr.f32.gmra.mrb[0].mxu0 %v56
  %v920 = vpop.f32.mrb[0].mxu0
  %v921 = vadd.f32 %v237, %v920
  %v922 = vpop.f32.mrb[0].mxu0
  %v923 = vadd.f32 %v241, %v922
  %924 = vmatprep.mubr.f32.mxu0 %v291
  %925 = vmatmul.mubr.f32.gmra.mrb[0].mxu0 %v58
  %v926 = vpop.f32.mrb[0].mxu0
  %v927 = vadd.f32 %v237, %v926
  %v928 = vpop.f32.mrb[0].mxu0
  %v929 = vadd.f32 %v241, %v928
  %930 = vmatprep.mubr.f32.mxu0 %v294
  %931 = vmatmul.mubr.f32.gmra.mrb[0].mxu0 %v60
  %v932 = vpop.f32.mrb[0].mxu0
  %v933 = vadd.f32 %v237, %v932
  %v934 = vpop.f32.mrb[0].mxu0
  %v935 = vadd.f32 %v241, %v934
  %936 = vmatprep.mubr.f32.mxu0 %v297
  %937 = vmatmul.mubr.f32.gmra.mrb[0].mxu0 %v62
  %v938 = vpop.f32.mrb[0].mxu0
  %v939 = vadd.f32 %v237, %v938
  %v940 = vpop.f32.mrb[0].mxu0
  %v941 = vadd.f32 %v241, %v940
  %942 = vdwg.mxu0
  %v943 = vmax.f32 %v366, 0.0
  %v944 = vmax.f32 %v368, 0.0
  %v945 = vmax.f32 %v527, 0.0
  %v946 = vmax.f32 %v529, 0.0
  %v947 = vmax.f32 %v688, 0.0
  %v948 = vmax.f32 %v690, 0.0
  %v949 = vmax.f32 %v849, 0.0
  %v950 = vmax.f32 %v851, 0.0
  %v951 = vmax.f32 %v372, 0.0
  %v952 = vmax.f32 %v374, 0.0
  %v953 = vmax.f32 %v533, 0.0
  %v954 = vmax.f32 %v535, 0.0
  %v955 = vmax.f32 %v694, 0.0
  %v956 = vmax.f32 %v696, 0.0
  %v957 = vmax.f32 %v855, 0.0
  %v958 = vmax.f32 %v857, 0.0
  %v959 = vmax.f32 %v378, 0.0
  %v960 = vmax.f32 %v380, 0.0
  %v961 = vmax.f32 %v539, 0.0
  %v962 = vmax.f32 %v541, 0.0
  %v963 = vmax.f32 %v700, 0.0
  %v964 = vmax.f32 %v702, 0.0
  %v965 = vmax.f32 %v861, 0.0
  %v966 = vmax.f32 %v863, 0.0
  %v967 = vmax.f32 %v384, 0.0
  %v968 = vmax.f32 %v386, 0.0
  %v969 = vmax.f32 %v545, 0.0
  %v970 = vmax.f32 %v547, 0.0
  %v971 = vmax.f32 %v706, 0.0
  %v972 = vmax.f32 %v708, 0.0
  %v973 = vmax.f32 %v867, 0.0
  %v974 = vmax.f32 %v869, 0.0
  %v975 = vmax.f32 %v390, 0.0
  %v976 = vmax.f32 %v392, 0.0
  %v977 = vmax.f32 %v551, 0.0
  %v978 = vmax.f32 %v553, 0.0
  %v979 = vmax.f32 %v712, 0.0
  %v980 = vmax.f32 %v714, 0.0
  %v981 = vmax.f32 %v873, 0.0
  %v982 = vmax.f32 %v875, 0.0
  %v983 = vmax.f32 %v396, 0.0
  %v984 = vmax.f32 %v398, 0.0
  %v985 = vmax.f32 %v557, 0.0
  %v986 = vmax.f32 %v559, 0.0
  %v987 = vmax.f32 %v718, 0.0
  %v988 = vmax.f32 %v720, 0.0
  %v989 = vmax.f32 %v879, 0.0
  %v990 = vmax.f32 %v881, 0.0
  %v991 = vmax.f32 %v402, 0.0
  %v992 = vmax.f32 %v404, 0.0
  %v993 = vmax.f32 %v563, 0.0
  %v994 = vmax.f32 %v565, 0.0
  %v995 = vmax.f32 %v724, 0.0
  %v996 = vmax.f32 %v726, 0.0
  %v997 = vmax.f32 %v885, 0.0
  %v998 = vmax.f32 %v887, 0.0
  %v999 = vmax.f32 %v408, 0.0
  %v1000 = vmax.f32 %v410, 0.0
  %v1001 = vmax.f32 %v569, 0.0
  %v1002 = vmax.f32 %v571, 0.0
  %v1003 = vmax.f32 %v730, 0.0
  %v1004 = vmax.f32 %v732, 0.0
  %v1005 = vmax.f32 %v891, 0.0
  %v1006 = vmax.f32 %v893, 0.0
  %v1007 = vmax.f32 %v414, 0.0
  %v1008 = vmax.f32 %v416, 0.0
  %v1009 = vmax.f32 %v575, 0.0
  %v1010 = vmax.f32 %v577, 0.0
  %v1011 = vmax.f32 %v736, 0.0
  %v1012 = vmax.f32 %v738, 0.0
  %v1013 = vmax.f32 %v897, 0.0
  %v1014 = vmax.f32 %v899, 0.0
  %v1015 = vmax.f32 %v420, 0.0
  %v1016 = vmax.f32 %v422, 0.0
  %v1017 = vmax.f32 %v581, 0.0
  %v1018 = vmax.f32 %v583, 0.0
  %v1019 = vmax.f32 %v742, 0.0
  %v1020 = vmax.f32 %v744, 0.0
  %v1021 = vmax.f32 %v903, 0.0
  %v1022 = vmax.f32 %v905, 0.0
  %v1023 = vmax.f32 %v426, 0.0
  %v1024 = vmax.f32 %v428, 0.0
  %v1025 = vmax.f32 %v587, 0.0
  %v1026 = vmax.f32 %v589, 0.0
  %v1027 = vmax.f32 %v748, 0.0
  %v1028 = vmax.f32 %v750, 0.0
  %v1029 = vmax.f32 %v909, 0.0
  %v1030 = vmax.f32 %v911, 0.0
  %v1031 = vmax.f32 %v432, 0.0
  %v1032 = vmax.f32 %v434, 0.0
  %v1033 = vmax.f32 %v593, 0.0
  %v1034 = vmax.f32 %v595, 0.0
  %v1035 = vmax.f32 %v754, 0.0
  %v1036 = vmax.f32 %v756, 0.0
  %v1037 = vmax.f32 %v915, 0.0
  %v1038 = vmax.f32 %v917, 0.0
  %v1039 = vmax.f32 %v438, 0.0
  %v1040 = vmax.f32 %v440, 0.0
  %v1041 = vmax.f32 %v599, 0.0
  %v1042 = vmax.f32 %v601, 0.0
  %v1043 = vmax.f32 %v760, 0.0
  %v1044 = vmax.f32 %v762, 0.0
  %v1045 = vmax.f32 %v921, 0.0
  %v1046 = vmax.f32 %v923, 0.0
  %v1047 = vmax.f32 %v444, 0.0
  %v1048 = vmax.f32 %v446, 0.0
  %v1049 = vmax.f32 %v605, 0.0
  %v1050 = vmax.f32 %v607, 0.0
  %v1051 = vmax.f32 %v766, 0.0
  %v1052 = vmax.f32 %v768, 0.0
  %v1053 = vmax.f32 %v927, 0.0
  %v1054 = vmax.f32 %v929, 0.0
  %v1055 = vmax.f32 %v450, 0.0
  %v1056 = vmax.f32 %v452, 0.0
  %v1057 = vmax.f32 %v611, 0.0
  %v1058 = vmax.f32 %v613, 0.0
  %v1059 = vmax.f32 %v772, 0.0
  %v1060 = vmax.f32 %v774, 0.0
  %v1061 = vmax.f32 %v933, 0.0
  %v1062 = vmax.f32 %v935, 0.0
  %v1063 = vmax.f32 %v456, 0.0
  %v1064 = vmax.f32 %v458, 0.0
  %v1065 = vmax.f32 %v617, 0.0
  %v1066 = vmax.f32 %v619, 0.0
  %v1067 = vmax.f32 %v778, 0.0
  %v1068 = vmax.f32 %v780, 0.0
  %v1069 = vmax.f32 %v939, 0.0
  %v1070 = vmax.f32 %v941, 0.0
  %v1071 = vmax.f32 %v943, %v975
  %v1072 = vmax.f32 %v944, %v976
  %v1073 = vmax.f32 %v945, %v977
  %v1074 = vmax.f32 %v946, %v978
  %v1075 = vmax.f32 %v947, %v979
  %v1076 = vmax.f32 %v948, %v980
  %v1077 = vmax.f32 %v949, %v981
  %v1078 = vmax.f32 %v950, %v982
  %v1079 = vmax.f32 %v951, %v983
  %v1080 = vmax.f32 %v952, %v984
  %v1081 = vmax.f32 %v953, %v985
  %v1082 = vmax.f32 %v954, %v986
  %v1083 = vmax.f32 %v955, %v987
  %v1084 = vmax.f32 %v956, %v988
  %v1085 = vmax.f32 %v957, %v989
  %v1086 = vmax.f32 %v958, %v990
  %v1087 = vmax.f32 %v959, %v991
  %v1088 = vmax.f32 %v960, %v992
  %v1089 = vmax.f32 %v961, %v993
  %v1090 = vmax.f32 %v962, %v994
  %v1091 = vmax.f32 %v963, %v995
  %v1092 = vmax.f32 %v964, %v996
  %v1093 = vmax.f32 %v965, %v997
  %v1094 = vmax.f32 %v966, %v998
  %v1095 = vmax.f32 %v967, %v999
  %v1096 = vmax.f32 %v968, %v1000
  %v1097 = vmax.f32 %v969, %v1001
  %v1098 = vmax.f32 %v970, %v1002
  %v1099 = vmax.f32 %v971, %v1003
  %v1100 = vmax.f32 %v972, %v1004
  %v1101 = vmax.f32 %v973, %v1005
  %v1102 = vmax.f32 %v974, %v1006
  %v1103 = vmax.f32 %v1007, %v1039
  %v1104 = vmax.f32 %v1008, %v1040
  %v1105 = vmax.f32 %v1009, %v1041
  %v1106 = vmax.f32 %v1010, %v1042
  %v1107 = vmax.f32 %v1011, %v1043
  %v1108 = vmax.f32 %v1012, %v1044
  %v1109 = vmax.f32 %v1013, %v1045
  %v1110 = vmax.f32 %v1014, %v1046
  %v1111 = vmax.f32 %v1015, %v1047
  %v1112 = vmax.f32 %v1016, %v1048
  %v1113 = vmax.f32 %v1017, %v1049
  %v1114 = vmax.f32 %v1018, %v1050
  %v1115 = vmax.f32 %v1019, %v1051
  %v1116 = vmax.f32 %v1020, %v1052
  %v1117 = vmax.f32 %v1021, %v1053
  %v1118 = vmax.f32 %v1022, %v1054
  %v1119 = vmax.f32 %v1023, %v1055
  %v1120 = vmax.f32 %v1024, %v1056
  %v1121 = vmax.f32 %v1025, %v1057
  %v1122 = vmax.f32 %v1026, %v1058
  %v1123 = vmax.f32 %v1027, %v1059
  %v1124 = vmax.f32 %v1028, %v1060
  %v1125 = vmax.f32 %v1029, %v1061
  %v1126 = vmax.f32 %v1030, %v1062
  %v1127 = vmax.f32 %v1031, %v1063
  %v1128 = vmax.f32 %v1032, %v1064
  %v1129 = vmax.f32 %v1033, %v1065
  %v1130 = vmax.f32 %v1034, %v1066
  %v1131 = vmax.f32 %v1035, %v1067
  %v1132 = vmax.f32 %v1036, %v1068
  %v1133 = vmax.f32 %v1037, %v1069
  %v1134 = vmax.f32 %v1038, %v1070
  %v1135 = vmax.f32 %v1071, %v1103
  %v1136 = vmax.f32 %v1072, %v1104
  %v1137 = vmax.f32 %v1073, %v1105
  %v1138 = vmax.f32 %v1074, %v1106
  %v1139 = vmax.f32 %v1075, %v1107
  %v1140 = vmax.f32 %v1076, %v1108
  %v1141 = vmax.f32 %v1077, %v1109
  %v1142 = vmax.f32 %v1078, %v1110
  %v1143 = vmax.f32 %v1079, %v1111
  %v1144 = vmax.f32 %v1080, %v1112
  %v1145 = vmax.f32 %v1081, %v1113
  %v1146 = vmax.f32 %v1082, %v1114
  %v1147 = vmax.f32 %v1083, %v1115
  %v1148 = vmax.f32 %v1084, %v1116
  %v1149 = vmax.f32 %v1085, %v1117
  %v1150 = vmax.f32 %v1086, %v1118
  %v1151 = vmax.f32 %v1087, %v1119
  %v1152 = vmax.f32 %v1088, %v1120
  %v1153 = vmax.f32 %v1089, %v1121
  %v1154 = vmax.f32 %v1090, %v1122
  %v1155 = vmax.f32 %v1091, %v1123
  %v1156 = vmax.f32 %v1092, %v1124
  %v1157 = vmax.f32 %v1093, %v1125
  %v1158 = vmax.f32 %v1094, %v1126
  %v1159 = vmax.f32 %v1095, %v1127
  %v1160 = vmax.f32 %v1096, %v1128
  %v1161 = vmax.f32 %v1097, %v1129
  %v1162 = vmax.f32 %v1098, %v1130
  %v1163 = vmax.f32 %v1099, %v1131
  %v1164 = vmax.f32 %v1100, %v1132
  %v1165 = vmax.f32 %v1101, %v1133
  %v1166 = vmax.f32 %v1102, %v1134
  %v1167 = vld [vmem:[%s3] sm:$0xff]
  %v1168 = vld [vmem:[%s3 + $0x8] sm:$0xff]
  %v1169 = vld [vmem:[%s3 + $0x10] sm:$0xff]
  %v1170 = vld [vmem:[%s3 + $0x18] sm:$0xff]
  %v1171 = vld [vmem:[%s3 + $0x20] sm:$0xff]
  %v1172 = vld [vmem:[%s3 + $0x28] sm:$0xff]
  %v1173 = vld [vmem:[%s3 + $0x30] sm:$0xff]
  %v1174 = vld [vmem:[%s3 + $0x38] sm:$0xff]
  %v1175 = vld [vmem:[%s3 + $0x40] sm:$0xff]
  %v1176 = vld [vmem:[%s3 + $0x48] sm:$0xff]
  %v1177 = vld [vmem:[%s3 + $0x50] sm:$0xff]
  %v1178 = vld [vmem:[%s3 + $0x58] sm:$0xff]
  %v1179 = vld [vmem:[%s3 + $0x60] sm:$0xff]
  %v1180 = vld [vmem:[%s3 + $0x68] sm:$0xff]
  %v1181 = vld [vmem:[%s3 + $0x70] sm:$0xff]
  %v1182 = vld [vmem:[%s3 + $0x78] sm:$0xff]
  %v1183 = vld [vmem:[%s3 + $0x80] sm:$0xff]
  %v1184 = vld [vmem:[%s3 + $0x88] sm:$0xff]
  %v1185 = vld [vmem:[%s3 + $0x90] sm:$0xff]
  %v1186 = vld [vmem:[%s3 + $0x98] sm:$0xff]
  %v1187 = vld [vmem:[%s3 + $0xa0] sm:$0xff]
  %v1188 = vld [vmem:[%s3 + $0xa8] sm:$0xff]
  %v1189 = vld [vmem:[%s3 + $0xb0] sm:$0xff]
  %v1190 = vld [vmem:[%s3 + $0xb8] sm:$0xff]
  %v1191 = vld [vmem:[%s3 + $0xc0] sm:$0xff]
  %v1192 = vld [vmem:[%s3 + $0xc8] sm:$0xff]
  %v1193 = vld [vmem:[%s3 + $0xd0] sm:$0xff]
  %v1194 = vld [vmem:[%s3 + $0xd8] sm:$0xff]
  %v1195 = vld [vmem:[%s3 + $0xe0] sm:$0xff]
  %v1196 = vld [vmem:[%s3 + $0xe8] sm:$0xff]
  %v1197 = vld [vmem:[%s3 + $0xf0] sm:$0xff]
  %v1198 = vld [vmem:[%s3 + $0xf8] sm:$0xff]
  %v1199 = vld [vmem:[%s3 + $0x100] sm:$0xff]
  %v1200 = vld [vmem:[%s3 + $0x108] sm:$0xff]
  %v1201 = vld [vmem:[%s3 + $0x110] sm:$0xff]
  %v1202 = vld [vmem:[%s3 + $0x118] sm:$0xff]
  %v1203 = vld [vmem:[%s3 + $0x120] sm:$0xff]
  %v1204 = vld [vmem:[%s3 + $0x128] sm:$0xff]
  %v1205 = vld [vmem:[%s3 + $0x130] sm:$0xff]
  %v1206 = vld [vmem:[%s3 + $0x138] sm:$0xff]
  %v1207 = vld [vmem:[%s3 + $0x140] sm:$0xff]
  %v1208 = vld [vmem:[%s3 + $0x148] sm:$0xff]
  %v1209 = vld [vmem:[%s3 + $0x150] sm:$0xff]
  %v1210 = vld [vmem:[%s3 + $0x158] sm:$0xff]
  %v1211 = vld [vmem:[%s3 + $0x160] sm:$0xff]
  %v1212 = vld [vmem:[%s3 + $0x168] sm:$0xff]
  %v1213 = vld [vmem:[%s3 + $0x170] sm:$0xff]
  %v1214 = vld [vmem:[%s3 + $0x178] sm:$0xff]
  %v1215 = vld [vmem:[%s3 + $0x180] sm:$0xff]
  %v1216 = vld [vmem:[%s3 + $0x188] sm:$0xff]
  %v1217 = vld [vmem:[%s3 + $0x190] sm:$0xff]
  %v1218 = vld [vmem:[%s3 + $0x198] sm:$0xff]
  %v1219 = vld [vmem:[%s3 + $0x1a0] sm:$0xff]
  %v1220 = vld [vmem:[%s3 + $0x1a8] sm:$0xff]
  %v1221 = vld [vmem:[%s3 + $0x1b0] sm:$0xff]
  %v1222 = vld [vmem:[%s3 + $0x1b8] sm:$0xff]
  %v1223 = vld [vmem:[%s3 + $0x1c0] sm:$0xff]
  %v1224 = vld [vmem:[%s3 + $0x1c8] sm:$0xff]
  %v1225 = vld [vmem:[%s3 + $0x1d0] sm:$0xff]
  %v1226 = vld [vmem:[%s3 + $0x1d8] sm:$0xff]
  %v1227 = vld [vmem:[%s3 + $0x1e0] sm:$0xff]
  %v1228 = vld [vmem:[%s3 + $0x1e8] sm:$0xff]
  %v1229 = vld [vmem:[%s3 + $0x1f0] sm:$0xff]
  %v1230 = vld [vmem:[%s3 + $0x1f8] sm:$0xff]
  %v1231 = vld [vmem:[%s3 + $0x200] sm:$0xff]
  %v1232 = vld [vmem:[%s3 + $0x208] sm:$0xff]
  %v1233 = vld [vmem:[%s3 + $0x210] sm:$0xff]
  %v1234 = vld [vmem:[%s3 + $0x218] sm:$0xff]
  %v1235 = vld [vmem:[%s3 + $0x220] sm:$0xff]
  %v1236 = vld [vmem:[%s3 + $0x228] sm:$0xff]
  %v1237 = vld [vmem:[%s3 + $0x230] sm:$0xff]
  %v1238 = vld [vmem:[%s3 + $0x238] sm:$0xff]
  %v1239 = vld [vmem:[%s3 + $0x240] sm:$0xff]
  %v1240 = vld [vmem:[%s3 + $0x248] sm:$0xff]
  %v1241 = vld [vmem:[%s3 + $0x250] sm:$0xff]
  %v1242 = vld [vmem:[%s3 + $0x258] sm:$0xff]
  %v1243 = vld [vmem:[%s3 + $0x260] sm:$0xff]
  %v1244 = vld [vmem:[%s3 + $0x268] sm:$0xff]
  %v1245 = vld [vmem:[%s3 + $0x270] sm:$0xff]
  %v1246 = vld [vmem:[%s3 + $0x278] sm:$0xff]
  %v1247 = vld [vmem:[%s3 + $0x280] sm:$0xff]
  %v1248 = vld [vmem:[%s3 + $0x288] sm:$0xff]
  %v1249 = vld [vmem:[%s3 + $0x290] sm:$0xff]
  %v1250 = vld [vmem:[%s3 + $0x298] sm:$0xff]
  %v1251 = vld [vmem:[%s3 + $0x2a0] sm:$0xff]
  %v1252 = vld [vmem:[%s3 + $0x2a8] sm:$0xff]
  %v1253 = vld [vmem:[%s3 + $0x2b0] sm:$0xff]
  %v1254 = vld [vmem:[%s3 + $0x2b8] sm:$0xff]
  %v1255 = vld [vmem:[%s3 + $0x2c0] sm:$0xff]
  %v1256 = vld [vmem:[%s3 + $0x2c8] sm:$0xff]
  %v1257 = vld [vmem:[%s3 + $0x2d0] sm:$0xff]
  %v1258 = vld [vmem:[%s3 + $0x2d8] sm:$0xff]
  %v1259 = vld [vmem:[%s3 + $0x2e0] sm:$0xff]
  %v1260 = vld [vmem:[%s3 + $0x2e8] sm:$0xff]
  %v1261 = vld [vmem:[%s3 + $0x2f0] sm:$0xff]
  %v1262 = vld [vmem:[%s3 + $0x2f8] sm:$0xff]
  %v1263 = vld [vmem:[%s3 + $0x300] sm:$0xff]
  %v1264 = vld [vmem:[%s3 + $0x308] sm:$0xff]
  %v1265 = vld [vmem:[%s3 + $0x310] sm:$0xff]
  %v1266 = vld [vmem:[%s3 + $0x318] sm:$0xff]
  %v1267 = vld [vmem:[%s3 + $0x320] sm:$0xff]
  %v1268 = vld [vmem:[%s3 + $0x328] sm:$0xff]
  %v1269 = vld [vmem:[%s3 + $0x330] sm:$0xff]
  %v1270 = vld [vmem:[%s3 + $0x338] sm:$0xff]
  %v1271 = vld [vmem:[%s3 + $0x340] sm:$0xff]
  %v1272 = vld [vmem:[%s3 + $0x348] sm:$0xff]
  %v1273 = vld [vmem:[%s3 + $0x350] sm:$0xff]
  %v1274 = vld [vmem:[%s3 + $0x358] sm:$0xff]
  %v1275 = vld [vmem:[%s3 + $0x360] sm:$0xff]
  %v1276 = vld [vmem:[%s3 + $0x368] sm:$0xff]
  %v1277 = vld [vmem:[%s3 + $0x370] sm:$0xff]
  %v1278 = vld [vmem:[%s3 + $0x378] sm:$0xff]
  %v1279 = vld [vmem:[%s3 + $0x380] sm:$0xff]
  %v1280 = vld [vmem:[%s3 + $0x388] sm:$0xff]
  %v1281 = vld [vmem:[%s3 + $0x390] sm:$0xff]
  %v1282 = vld [vmem:[%s3 + $0x398] sm:$0xff]
  %v1283 = vld [vmem:[%s3 + $0x3a0] sm:$0xff]
  %v1284 = vld [vmem:[%s3 + $0x3a8] sm:$0xff]
  %v1285 = vld [vmem:[%s3 + $0x3b0] sm:$0xff]
  %v1286 = vld [vmem:[%s3 + $0x3b8] sm:$0xff]
  %v1287 = vld [vmem:[%s3 + $0x3c0] sm:$0xff]
  %v1288 = vld [vmem:[%s3 + $0x3c8] sm:$0xff]
  %v1289 = vld [vmem:[%s3 + $0x3d0] sm:$0xff]
  %v1290 = vld [vmem:[%s3 + $0x3d8] sm:$0xff]
  %v1291 = vld [vmem:[%s3 + $0x3e0] sm:$0xff]
  %v1292 = vld [vmem:[%s3 + $0x3e8] sm:$0xff]
  %v1293 = vld [vmem:[%s3 + $0x3f0] sm:$0xff]
  %v1294 = vld [vmem:[%s3 + $0x3f8] sm:$0xff]
  %v1295 = vld [vmem:[%s3 + $0x400] sm:$0xff]
  %v1296 = vld [vmem:[%s3 + $0x408] sm:$0xff]
  %v1297 = vld [vmem:[%s3 + $0x410] sm:$0xff]
  %v1298 = vld [vmem:[%s3 + $0x418] sm:$0xff]
  %v1299 = vld [vmem:[%s3 + $0x420] sm:$0xff]
  %v1300 = vld [vmem:[%s3 + $0x428] sm:$0xff]
  %v1301 = vld [vmem:[%s3 + $0x430] sm:$0xff]
  %v1302 = vld [vmem:[%s3 + $0x438] sm:$0xff]
  %v1303 = vld [vmem:[%s3 + $0x440] sm:$0xff]
  %v1304 = vld [vmem:[%s3 + $0x448] sm:$0xff]
  %v1305 = vld [vmem:[%s3 + $0x450] sm:$0xff]
  %v1306 = vld [vmem:[%s3 + $0x458] sm:$0xff]
  %v1307 = vld [vmem:[%s3 + $0x460] sm:$0xff]
  %v1308 = vld [vmem:[%s3 + $0x468] sm:$0xff]
  %v1309 = vld [vmem:[%s3 + $0x470] sm:$0xff]
  %v1310 = vld [vmem:[%s3 + $0x478] sm:$0xff]
  %v1311 = vld [vmem:[%s3 + $0x480] sm:$0xff]
  %v1312 = vld [vmem:[%s3 + $0x488] sm:$0xff]
  %v1313 = vld [vmem:[%s3 + $0x490] sm:$0xff]
  %v1314 = vld [vmem:[%s3 + $0x498] sm:$0xff]
  %v1315 = vld [vmem:[%s3 + $0x4a0] sm:$0xff]
  %v1316 = vld [vmem:[%s3 + $0x4a8] sm:$0xff]
  %v1317 = vld [vmem:[%s3 + $0x4b0] sm:$0xff]
  %v1318 = vld [vmem:[%s3 + $0x4b8] sm:$0xff]
  %v1319 = vld [vmem:[%s3 + $0x4c0] sm:$0xff]
  %v1320 = vld [vmem:[%s3 + $0x4c8] sm:$0xff]
  %v1321 = vld [vmem:[%s3 + $0x4d0] sm:$0xff]
  %v1322 = vld [vmem:[%s3 + $0x4d8] sm:$0xff]
  %v1323 = vld [vmem:[%s3 + $0x4e0] sm:$0xff]
  %v1324 = vld [vmem:[%s3 + $0x4e8] sm:$0xff]
  %v1325 = vld [vmem:[%s3 + $0x4f0] sm:$0xff]
  %v1326 = vld [vmem:[%s3 + $0x4f8] sm:$0xff]
  %v1327 = vld [vmem:[%s3 + $0x500] sm:$0xff]
  %v1328 = vld [vmem:[%s3 + $0x508] sm:$0xff]
  %v1329 = vld [vmem:[%s3 + $0x510] sm:$0xff]
  %v1330 = vld [vmem:[%s3 + $0x518] sm:$0xff]
  %v1331 = vld [vmem:[%s3 + $0x520] sm:$0xff]
  %v1332 = vld [vmem:[%s3 + $0x528] sm:$0xff]
  %v1333 = vld [vmem:[%s3 + $0x530] sm:$0xff]
  %v1334 = vld [vmem:[%s3 + $0x538] sm:$0xff]
  %v1335 = vld [vmem:[%s3 + $0x540] sm:$0xff]
  %v1336 = vld [vmem:[%s3 + $0x548] sm:$0xff]
  %v1337 = vld [vmem:[%s3 + $0x550] sm:$0xff]
  %v1338 = vld [vmem:[%s3 + $0x558] sm:$0xff]
  %v1339 = vld [vmem:[%s3 + $0x560] sm:$0xff]
  %v1340 = vld [vmem:[%s3 + $0x568] sm:$0xff]
  %v1341 = vld [vmem:[%s3 + $0x570] sm:$0xff]
  %v1342 = vld [vmem:[%s3 + $0x578] sm:$0xff]
  %v1343 = vld [vmem:[%s3 + $0x580] sm:$0xff]
  %v1344 = vld [vmem:[%s3 + $0x588] sm:$0xff]
  %v1345 = vld [vmem:[%s3 + $0x590] sm:$0xff]
  %v1346 = vld [vmem:[%s3 + $0x598] sm:$0xff]
  %v1347 = vld [vmem:[%s3 + $0x5a0] sm:$0xff]
  %v1348 = vld [vmem:[%s3 + $0x5a8] sm:$0xff]
  %v1349 = vld [vmem:[%s3 + $0x5b0] sm:$0xff]
  %v1350 = vld [vmem:[%s3 + $0x5b8] sm:$0xff]
  %v1351 = vld [vmem:[%s3 + $0x5c0] sm:$0xff]
  %v1352 = vld [vmem:[%s3 + $0x5c8] sm:$0xff]
  %v1353 = vld [vmem:[%s3 + $0x5d0] sm:$0xff]
  %v1354 = vld [vmem:[%s3 + $0x5d8] sm:$0xff]
  %v1355 = vld [vmem:[%s3 + $0x5e0] sm:$0xff]
  %v1356 = vld [vmem:[%s3 + $0x5e8] sm:$0xff]
  %v1357 = vld [vmem:[%s3 + $0x5f0] sm:$0xff]
  %v1358 = vld [vmem:[%s3 + $0x5f8] sm:$0xff]
  %v1359 = vld [vmem:[%s3 + $0x600] sm:$0xff]
  %v1360 = vld [vmem:[%s3 + $0x608] sm:$0xff]
  %v1361 = vld [vmem:[%s3 + $0x610] sm:$0xff]
  %v1362 = vld [vmem:[%s3 + $0x618] sm:$0xff]
  %v1363 = vld [vmem:[%s3 + $0x620] sm:$0xff]
  %v1364 = vld [vmem:[%s3 + $0x628] sm:$0xff]
  %v1365 = vld [vmem:[%s3 + $0x630] sm:$0xff]
  %v1366 = vld [vmem:[%s3 + $0x638] sm:$0xff]
  %v1367 = vld [vmem:[%s3 + $0x640] sm:$0xff]
  %v1368 = vld [vmem:[%s3 + $0x648] sm:$0xff]
  %v1369 = vld [vmem:[%s3 + $0x650] sm:$0xff]
  %v1370 = vld [vmem:[%s3 + $0x658] sm:$0xff]
  %v1371 = vld [vmem:[%s3 + $0x660] sm:$0xff]
  %v1372 = vld [vmem:[%s3 + $0x668] sm:$0xff]
  %v1373 = vld [vmem:[%s3 + $0x670] sm:$0xff]
  %v1374 = vld [vmem:[%s3 + $0x678] sm:$0xff]
  %v1375 = vld [vmem:[%s3 + $0x680] sm:$0xff]
  %v1376 = vld [vmem:[%s3 + $0x688] sm:$0xff]
  %v1377 = vld [vmem:[%s3 + $0x690] sm:$0xff]
  %v1378 = vld [vmem:[%s3 + $0x698] sm:$0xff]
  %v1379 = vld [vmem:[%s3 + $0x6a0] sm:$0xff]
  %v1380 = vld [vmem:[%s3 + $0x6a8] sm:$0xff]
  %v1381 = vld [vmem:[%s3 + $0x6b0] sm:$0xff]
  %v1382 = vld [vmem:[%s3 + $0x6b8] sm:$0xff]
  %v1383 = vld [vmem:[%s3 + $0x6c0] sm:$0xff]
  %v1384 = vld [vmem:[%s3 + $0x6c8] sm:$0xff]
  %v1385 = vld [vmem:[%s3 + $0x6d0] sm:$0xff]
  %v1386 = vld [vmem:[%s3 + $0x6d8] sm:$0xff]
  %v1387 = vld [vmem:[%s3 + $0x6e0] sm:$0xff]
  %v1388 = vld [vmem:[%s3 + $0x6e8] sm:$0xff]
  %v1389 = vld [vmem:[%s3 + $0x6f0] sm:$0xff]
  %v1390 = vld [vmem:[%s3 + $0x6f8] sm:$0xff]
  %v1391 = vld [vmem:[%s3 + $0x700] sm:$0xff]
  %v1392 = vld [vmem:[%s3 + $0x708] sm:$0xff]
  %v1393 = vld [vmem:[%s3 + $0x710] sm:$0xff]
  %v1394 = vld [vmem:[%s3 + $0x718] sm:$0xff]
  %v1395 = vld [vmem:[%s3 + $0x720] sm:$0xff]
  %v1396 = vld [vmem:[%s3 + $0x728] sm:$0xff]
  %v1397 = vld [vmem:[%s3 + $0x730] sm:$0xff]
  %v1398 = vld [vmem:[%s3 + $0x738] sm:$0xff]
  %v1399 = vld [vmem:[%s3 + $0x740] sm:$0xff]
  %v1400 = vld [vmem:[%s3 + $0x748] sm:$0xff]
  %v1401 = vld [vmem:[%s3 + $0x750] sm:$0xff]
  %v1402 = vld [vmem:[%s3 + $0x758] sm:$0xff]
  %v1403 = vld [vmem:[%s3 + $0x760] sm:$0xff]
  %v1404 = vld [vmem:[%s3 + $0x768] sm:$0xff]
  %v1405 = vld [vmem:[%s3 + $0x770] sm:$0xff]
  %v1406 = vld [vmem:[%s3 + $0x778] sm:$0xff]
  %v1407 = vld [vmem:[%s3 + $0x780] sm:$0xff]
  %v1408 = vld [vmem:[%s3 + $0x788] sm:$0xff]
  %v1409 = vld [vmem:[%s3 + $0x790] sm:$0xff]
  %v1410 = vld [vmem:[%s3 + $0x798] sm:$0xff]
  %v1411 = vld [vmem:[%s3 + $0x7a0] sm:$0xff]
  %v1412 = vld [vmem:[%s3 + $0x7a8] sm:$0xff]
  %v1413 = vld [vmem:[%s3 + $0x7b0] sm:$0xff]
  %v1414 = vld [vmem:[%s3 + $0x7b8] sm:$0xff]
  %v1415 = vld [vmem:[%s3 + $0x7c0] sm:$0xff]
  %v1416 = vld [vmem:[%s3 + $0x7c8] sm:$0xff]
  %v1417 = vld [vmem:[%s3 + $0x7d0] sm:$0xff]
  %v1418 = vld [vmem:[%s3 + $0x7d8] sm:$0xff]
  %v1419 = vld [vmem:[%s3 + $0x7e0] sm:$0xff]
  %v1420 = vld [vmem:[%s3 + $0x7e8] sm:$0xff]
  %v1421 = vld [vmem:[%s3 + $0x7f0] sm:$0xff]
  %v1422 = vld [vmem:[%s3 + $0x7f8] sm:$0xff]
  %v1423 = vld [vmem:[%s3 + $0x800] sm:$0xff]
  %v1424 = vld [vmem:[%s3 + $0x808] sm:$0xff]
  %v1425 = vld [vmem:[%s3 + $0x810] sm:$0xff]
  %v1426 = vld [vmem:[%s3 + $0x818] sm:$0xff]
  %v1427 = vld [vmem:[%s3 + $0x820] sm:$0xff]
  %v1428 = vld [vmem:[%s3 + $0x828] sm:$0xff]
  %v1429 = vld [vmem:[%s3 + $0x830] sm:$0xff]
  %v1430 = vld [vmem:[%s3 + $0x838] sm:$0xff]
  %v1431 = vld [vmem:[%s3 + $0x840] sm:$0xff]
  %v1432 = vld [vmem:[%s3 + $0x848] sm:$0xff]
  %v1433 = vld [vmem:[%s3 + $0x850] sm:$0xff]
  %v1434 = vld [vmem:[%s3 + $0x858] sm:$0xff]
  %v1435 = vld [vmem:[%s3 + $0x860] sm:$0xff]
  %v1436 = vld [vmem:[%s3 + $0x868] sm:$0xff]
  %v1437 = vld [vmem:[%s3 + $0x870] sm:$0xff]
  %v1438 = vld [vmem:[%s3 + $0x878] sm:$0xff]
  %v1439 = vld [vmem:[%s3 + $0x880] sm:$0xff]
  %v1440 = vld [vmem:[%s3 + $0x888] sm:$0xff]
  %v1441 = vld [vmem:[%s3 + $0x890] sm:$0xff]
  %v1442 = vld [vmem:[%s3 + $0x898] sm:$0xff]
  %v1443 = vld [vmem:[%s3 + $0x8a0] sm:$0xff]
  %v1444 = vld [vmem:[%s3 + $0x8a8] sm:$0xff]
  %v1445 = vld [vmem:[%s3 + $0x8b0] sm:$0xff]
  %v1446 = vld [vmem:[%s3 + $0x8b8] sm:$0xff]
  %v1447 = vld [vmem:[%s3 + $0x8c0] sm:$0xff]
  %v1448 = vld [vmem:[%s3 + $0x8c8] sm:$0xff]
  %v1449 = vld [vmem:[%s3 + $0x8d0] sm:$0xff]
  %v1450 = vld [vmem:[%s3 + $0x8d8] sm:$0xff]
  %v1451 = vld [vmem:[%s3 + $0x8e0] sm:$0xff]
  %v1452 = vld [vmem:[%s3 + $0x8e8] sm:$0xff]
  %v1453 = vld [vmem:[%s3 + $0x8f0] sm:$0xff]
  %v1454 = vld [vmem:[%s3 + $0x8f8] sm:$0xff]
  %v1455 = vld [vmem:[%s3 + $0x900] sm:$0xff]
  %v1456 = vld [vmem:[%s3 + $0x908] sm:$0xff]
  %v1457 = vld [vmem:[%s3 + $0x910] sm:$0xff]
  %v1458 = vld [vmem:[%s3 + $0x918] sm:$0xff]
  %v1459 = vld [vmem:[%s3 + $0x920] sm:$0xff]
  %v1460 = vld [vmem:[%s3 + $0x928] sm:$0xff]
  %v1461 = vld [vmem:[%s3 + $0x930] sm:$0xff]
  %v1462 = vld [vmem:[%s3 + $0x938] sm:$0xff]
  %v1463 = vld [vmem:[%s3 + $0x940] sm:$0xff]
  %v1464 = vld [vmem:[%s3 + $0x948] sm:$0xff]
  %v1465 = vld [vmem:[%s3 + $0x950] sm:$0xff]
  %v1466 = vld [vmem:[%s3 + $0x958] sm:$0xff]
  %v1467 = vld [vmem:[%s3 + $0x960] sm:$0xff]
  %v1468 = vld [vmem:[%s3 + $0x968] sm:$0xff]
  %v1469 = vld [vmem:[%s3 + $0x970] sm:$0xff]
  %v1470 = vld [vmem:[%s3 + $0x978] sm:$0xff]
  %v1471 = vld [vmem:[%s3 + $0x980] sm:$0xff]
  %v1472 = vld [vmem:[%s3 + $0x988] sm:$0xff]
  %v1473 = vld [vmem:[%s3 + $0x990] sm:$0xff]
  %v1474 = vld [vmem:[%s3 + $0x998] sm:$0xff]
  %v1475 = vld [vmem:[%s3 + $0x9a0] sm:$0xff]
  %v1476 = vld [vmem:[%s3 + $0x9a8] sm:$0xff]
  %v1477 = vld [vmem:[%s3 + $0x9b0] sm:$0xff]
  %v1478 = vld [vmem:[%s3 + $0x9b8] sm:$0xff]
  %v1479 = vld [vmem:[%s3 + $0x9c0] sm:$0xff]
  %v1480 = vld [vmem:[%s3 + $0x9c8] sm:$0xff]
  %v1481 = vld [vmem:[%s3 + $0x9d0] sm:$0xff]
  %v1482 = vld [vmem:[%s3 + $0x9d8] sm:$0xff]
  %v1483 = vld [vmem:[%s3 + $0x9e0] sm:$0xff]
  %v1484 = vld [vmem:[%s3 + $0x9e8] sm:$0xff]
  %v1485 = vld [vmem:[%s3 + $0x9f0] sm:$0xff]
  %v1486 = vld [vmem:[%s3 + $0x9f8] sm:$0xff]
  %v1487 = vld [vmem:[%s3 + $0xa00] sm:$0xff]
  %v1488 = vld [vmem:[%s3 + $0xa08] sm:$0xff]
  %v1489 = vld [vmem:[%s3 + $0xa10] sm:$0xff]
  %v1490 = vld [vmem:[%s3 + $0xa18] sm:$0xff]
  %v1491 = vld [vmem:[%s3 + $0xa20] sm:$0xff]
  %v1492 = vld [vmem:[%s3 + $0xa28] sm:$0xff]
  %v1493 = vld [vmem:[%s3 + $0xa30] sm:$0xff]
  %v1494 = vld [vmem:[%s3 + $0xa38] sm:$0xff]
  %v1495 = vld [vmem:[%s3 + $0xa40] sm:$0xff]
  %v1496 = vld [vmem:[%s3 + $0xa48] sm:$0xff]
  %v1497 = vld [vmem:[%s3 + $0xa50] sm:$0xff]
  %v1498 = vld [vmem:[%s3 + $0xa58] sm:$0xff]
  %v1499 = vld [vmem:[%s3 + $0xa60] sm:$0xff]
  %v1500 = vld [vmem:[%s3 + $0xa68] sm:$0xff]
  %v1501 = vld [vmem:[%s3 + $0xa70] sm:$0xff]
  %v1502 = vld [vmem:[%s3 + $0xa78] sm:$0xff]
  %v1503 = vld [vmem:[%s3 + $0xa80] sm:$0xff]
  %v1504 = vld [vmem:[%s3 + $0xa88] sm:$0xff]
  %v1505 = vld [vmem:[%s3 + $0xa90] sm:$0xff]
  %v1506 = vld [vmem:[%s3 + $0xa98] sm:$0xff]
  %v1507 = vld [vmem:[%s3 + $0xaa0] sm:$0xff]
  %v1508 = vld [vmem:[%s3 + $0xaa8] sm:$0xff]
  %v1509 = vld [vmem:[%s3 + $0xab0] sm:$0xff]
  %v1510 = vld [vmem:[%s3 + $0xab8] sm:$0xff]
  %v1511 = vld [vmem:[%s3 + $0xac0] sm:$0xff]
  %v1512 = vld [vmem:[%s3 + $0xac8] sm:$0xff]
  %v1513 = vld [vmem:[%s3 + $0xad0] sm:$0xff]
  %v1514 = vld [vmem:[%s3 + $0xad8] sm:$0xff]
  %v1515 = vld [vmem:[%s3 + $0xae0] sm:$0xff]
  %v1516 = vld [vmem:[%s3 + $0xae8] sm:$0xff]
  %v1517 = vld [vmem:[%s3 + $0xaf0] sm:$0xff]
  %v1518 = vld [vmem:[%s3 + $0xaf8] sm:$0xff]
  %v1519 = vld [vmem:[%s3 + $0xb00] sm:$0xff]
  %v1520 = vld [vmem:[%s3 + $0xb08] sm:$0xff]
  %v1521 = vld [vmem:[%s3 + $0xb10] sm:$0xff]
  %v1522 = vld [vmem:[%s3 + $0xb18] sm:$0xff]
  %v1523 = vld [vmem:[%s3 + $0xb20] sm:$0xff]
  %v1524 = vld [vmem:[%s3 + $0xb28] sm:$0xff]
  %v1525 = vld [vmem:[%s3 + $0xb30] sm:$0xff]
  %v1526 = vld [vmem:[%s3 + $0xb38] sm:$0xff]
  %v1527 = vld [vmem:[%s3 + $0xb40] sm:$0xff]
  %v1528 = vld [vmem:[%s3 + $0xb48] sm:$0xff]
  %v1529 = vld [vmem:[%s3 + $0xb50] sm:$0xff]
  %v1530 = vld [vmem:[%s3 + $0xb58] sm:$0xff]
  %v1531 = vld [vmem:[%s3 + $0xb60] sm:$0xff]
  %v1532 = vld [vmem:[%s3 + $0xb68] sm:$0xff]
  %v1533 = vld [vmem:[%s3 + $0xb70] sm:$0xff]
  %v1534 = vld [vmem:[%s3 + $0xb78] sm:$0xff]
  %v1535 = vld [vmem:[%s3 + $0xb80] sm:$0xff]
  %v1536 = vld [vmem:[%s3 + $0xb88] sm:$0xff]
  %v1537 = vld [vmem:[%s3 + $0xb90] sm:$0xff]
  %v1538 = vld [vmem:[%s3 + $0xb98] sm:$0xff]
  %v1539 = vld [vmem:[%s3 + $0xba0] sm:$0xff]
  %v1540 = vld [vmem:[%s3 + $0xba8] sm:$0xff]
  %v1541 = vld [vmem:[%s3 + $0xbb0] sm:$0xff]
  %v1542 = vld [vmem:[%s3 + $0xbb8] sm:$0xff]
  %v1543 = vld [vmem:[%s3 + $0xbc0] sm:$0xff]
  %v1544 = vld [vmem:[%s3 + $0xbc8] sm:$0xff]
  %v1545 = vld [vmem:[%s3 + $0xbd0] sm:$0xff]
  %v1546 = vld [vmem:[%s3 + $0xbd8] sm:$0xff]
  %v1547 = vld [vmem:[%s3 + $0xbe0] sm:$0xff]
  %v1548 = vld [vmem:[%s3 + $0xbe8] sm:$0xff]
  %v1549 = vld [vmem:[%s3 + $0xbf0] sm:$0xff]
  %v1550 = vld [vmem:[%s3 + $0xbf8] sm:$0xff]
  %v1551 = vld [vmem:[%s3 + $0xc00] sm:$0xff]
  %v1552 = vld [vmem:[%s3 + $0xc08] sm:$0xff]
  %v1553 = vld [vmem:[%s3 + $0xc10] sm:$0xff]
  %v1554 = vld [vmem:[%s3 + $0xc18] sm:$0xff]
  %v1555 = vld [vmem:[%s3 + $0xc20] sm:$0xff]
  %v1556 = vld [vmem:[%s3 + $0xc28] sm:$0xff]
  %v1557 = vld [vmem:[%s3 + $0xc30] sm:$0xff]
  %v1558 = vld [vmem:[%s3 + $0xc38] sm:$0xff]
  %v1559 = vld [vmem:[%s3 + $0xc40] sm:$0xff]
  %v1560 = vld [vmem:[%s3 + $0xc48] sm:$0xff]
  %v1561 = vld [vmem:[%s3 + $0xc50] sm:$0xff]
  %v1562 = vld [vmem:[%s3 + $0xc58] sm:$0xff]
  %v1563 = vld [vmem:[%s3 + $0xc60] sm:$0xff]
  %v1564 = vld [vmem:[%s3 + $0xc68] sm:$0xff]
  %v1565 = vld [vmem:[%s3 + $0xc70] sm:$0xff]
  %v1566 = vld [vmem:[%s3 + $0xc78] sm:$0xff]
  %v1567 = vld [vmem:[%s3 + $0xc80] sm:$0xff]
  %v1568 = vld [vmem:[%s3 + $0xc88] sm:$0xff]
  %v1569 = vld [vmem:[%s3 + $0xc90] sm:$0xff]
  %v1570 = vld [vmem:[%s3 + $0xc98] sm:$0xff]
  %v1571 = vld [vmem:[%s3 + $0xca0] sm:$0xff]
  %v1572 = vld [vmem:[%s3 + $0xca8] sm:$0xff]
  %v1573 = vld [vmem:[%s3 + $0xcb0] sm:$0xff]
  %v1574 = vld [vmem:[%s3 + $0xcb8] sm:$0xff]
  %v1575 = vld [vmem:[%s3 + $0xcc0] sm:$0xff]
  %v1576 = vld [vmem:[%s3 + $0xcc8] sm:$0xff]
  %v1577 = vld [vmem:[%s3 + $0xcd0] sm:$0xff]
  %v1578 = vld [vmem:[%s3 + $0xcd8] sm:$0xff]
  %v1579 = vld [vmem:[%s3 + $0xce0] sm:$0xff]
  %v1580 = vld [vmem:[%s3 + $0xce8] sm:$0xff]
  %v1581 = vld [vmem:[%s3 + $0xcf0] sm:$0xff]
  %v1582 = vld [vmem:[%s3 + $0xcf8] sm:$0xff]
  %v1583 = vld [vmem:[%s3 + $0xd00] sm:$0xff]
  %v1584 = vld [vmem:[%s3 + $0xd08] sm:$0xff]
  %v1585 = vld [vmem:[%s3 + $0xd10] sm:$0xff]
  %v1586 = vld [vmem:[%s3 + $0xd18] sm:$0xff]
  %v1587 = vld [vmem:[%s3 + $0xd20] sm:$0xff]
  %v1588 = vld [vmem:[%s3 + $0xd28] sm:$0xff]
  %v1589 = vld [vmem:[%s3 + $0xd30] sm:$0xff]
  %v1590 = vld [vmem:[%s3 + $0xd38] sm:$0xff]
  %v1591 = vld [vmem:[%s3 + $0xd40] sm:$0xff]
  %v1592 = vld [vmem:[%s3 + $0xd48] sm:$0xff]
  %v1593 = vld [vmem:[%s3 + $0xd50] sm:$0xff]
  %v1594 = vld [vmem:[%s3 + $0xd58] sm:$0xff]
  %v1595 = vld [vmem:[%s3 + $0xd60] sm:$0xff]
  %v1596 = vld [vmem:[%s3 + $0xd68] sm:$0xff]
  %v1597 = vld [vmem:[%s3 + $0xd70] sm:$0xff]
  %v1598 = vld [vmem:[%s3 + $0xd78] sm:$0xff]
  %v1599 = vld [vmem:[%s3 + $0xd80] sm:$0xff]
  %v1600 = vld [vmem:[%s3 + $0xd88] sm:$0xff]
  %v1601 = vld [vmem:[%s3 + $0xd90] sm:$0xff]
  %v1602 = vld [vmem:[%s3 + $0xd98] sm:$0xff]
  %v1603 = vld [vmem:[%s3 + $0xda0] sm:$0xff]
  %v1604 = vld [vmem:[%s3 + $0xda8] sm:$0xff]
  %v1605 = vld [vmem:[%s3 + $0xdb0] sm:$0xff]
  %v1606 = vld [vmem:[%s3 + $0xdb8] sm:$0xff]
  %v1607 = vld [vmem:[%s3 + $0xdc0] sm:$0xff]
  %v1608 = vld [vmem:[%s3 + $0xdc8] sm:$0xff]
  %v1609 = vld [vmem:[%s3 + $0xdd0] sm:$0xff]
  %v1610 = vld [vmem:[%s3 + $0xdd8] sm:$0xff]
  %v1611 = vld [vmem:[%s3 + $0xde0] sm:$0xff]
  %v1612 = vld [vmem:[%s3 + $0xde8] sm:$0xff]
  %v1613 = vld [vmem:[%s3 + $0xdf0] sm:$0xff]
  %v1614 = vld [vmem:[%s3 + $0xdf8] sm:$0xff]
  %v1615 = vld [vmem:[%s3 + $0xe00] sm:$0xff]
  %v1616 = vld [vmem:[%s3 + $0xe08] sm:$0xff]
  %v1617 = vld [vmem:[%s3 + $0xe10] sm:$0xff]
  %v1618 = vld [vmem:[%s3 + $0xe18] sm:$0xff]
  %v1619 = vld [vmem:[%s3 + $0xe20] sm:$0xff]
  %v1620 = vld [vmem:[%s3 + $0xe28] sm:$0xff]
  %v1621 = vld [vmem:[%s3 + $0xe30] sm:$0xff]
  %v1622 = vld [vmem:[%s3 + $0xe38] sm:$0xff]
  %v1623 = vld [vmem:[%s3 + $0xe40] sm:$0xff]
  %v1624 = vld [vmem:[%s3 + $0xe48] sm:$0xff]
  %v1625 = vld [vmem:[%s3 + $0xe50] sm:$0xff]
  %v1626 = vld [vmem:[%s3 + $0xe58] sm:$0xff]
  %v1627 = vld [vmem:[%s3 + $0xe60] sm:$0xff]
  %v1628 = vld [vmem:[%s3 + $0xe68] sm:$0xff]
  %v1629 = vld [vmem:[%s3 + $0xe70] sm:$0xff]
  %v1630 = vld [vmem:[%s3 + $0xe78] sm:$0xff]
  %v1631 = vld [vmem:[%s3 + $0xe80] sm:$0xff]
  %v1632 = vld [vmem:[%s3 + $0xe88] sm:$0xff]
  %v1633 = vld [vmem:[%s3 + $0xe90] sm:$0xff]
  %v1634 = vld [vmem:[%s3 + $0xe98] sm:$0xff]
  %v1635 = vld [vmem:[%s3 + $0xea0] sm:$0xff]
  %v1636 = vld [vmem:[%s3 + $0xea8] sm:$0xff]
  %v1637 = vld [vmem:[%s3 + $0xeb0] sm:$0xff]
  %v1638 = vld [vmem:[%s3 + $0xeb8] sm:$0xff]
  %v1639 = vld [vmem:[%s3 + $0xec0] sm:$0xff]
  %v1640 = vld [vmem:[%s3 + $0xec8] sm:$0xff]
  %v1641 = vld [vmem:[%s3 + $0xed0] sm:$0xff]
  %v1642 = vld [vmem:[%s3 + $0xed8] sm:$0xff]
  %v1643 = vld [vmem:[%s3 + $0xee0] sm:$0xff]
  %v1644 = vld [vmem:[%s3 + $0xee8] sm:$0xff]
  %v1645 = vld [vmem:[%s3 + $0xef0] sm:$0xff]
  %v1646 = vld [vmem:[%s3 + $0xef8] sm:$0xff]
  %v1647 = vld [vmem:[%s3 + $0xf00] sm:$0xff]
  %v1648 = vld [vmem:[%s3 + $0xf08] sm:$0xff]
  %v1649 = vld [vmem:[%s3 + $0xf10] sm:$0xff]
  %v1650 = vld [vmem:[%s3 + $0xf18] sm:$0xff]
  %v1651 = vld [vmem:[%s3 + $0xf20] sm:$0xff]
  %v1652 = vld [vmem:[%s3 + $0xf28] sm:$0xff]
  %v1653 = vld [vmem:[%s3 + $0xf30] sm:$0xff]
  %v1654 = vld [vmem:[%s3 + $0xf38] sm:$0xff]
  %v1655 = vld [vmem:[%s3 + $0xf40] sm:$0xff]
  %v1656 = vld [vmem:[%s3 + $0xf48] sm:$0xff]
  %v1657 = vld [vmem:[%s3 + $0xf50] sm:$0xff]
  %v1658 = vld [vmem:[%s3 + $0xf58] sm:$0xff]
  %v1659 = vld [vmem:[%s3 + $0xf60] sm:$0xff]
  %v1660 = vld [vmem:[%s3 + $0xf68] sm:$0xff]
  %v1661 = vld [vmem:[%s3 + $0xf70] sm:$0xff]
  %v1662 = vld [vmem:[%s3 + $0xf78] sm:$0xff]
  %v1663 = vld [vmem:[%s3 + $0xf80] sm:$0xff]
  %v1664 = vld [vmem:[%s3 + $0xf88] sm:$0xff]
  %v1665 = vld [vmem:[%s3 + $0xf90] sm:$0xff]
  %v1666 = vld [vmem:[%s3 + $0xf98] sm:$0xff]
  %v1667 = vld [vmem:[%s3 + $0xfa0] sm:$0xff]
  %v1668 = vld [vmem:[%s3 + $0xfa8] sm:$0xff]
  %v1669 = vld [vmem:[%s3 + $0xfb0] sm:$0xff]
  %v1670 = vld [vmem:[%s3 + $0xfb8] sm:$0xff]
  %v1671 = vld [vmem:[%s3 + $0xfc0] sm:$0xff]
  %v1672 = vld [vmem:[%s3 + $0xfc8] sm:$0xff]
  %v1673 = vld [vmem:[%s3 + $0xfd0] sm:$0xff]
  %v1674 = vld [vmem:[%s3 + $0xfd8] sm:$0xff]
  %v1675 = vld [vmem:[%s3 + $0xfe0] sm:$0xff]
  %v1676 = vld [vmem:[%s3 + $0xfe8] sm:$0xff]
  %v1677 = vld [vmem:[%s3 + $0xff0] sm:$0xff]
  %v1678 = vld [vmem:[%s3 + $0xff8] sm:$0xff]
  %v1679 = vld [vmem:[%s4] sm:$0xf]
  %v1681 = vlaneseq
  %v1682 = vshrl.u32 %v1681, 7
  %v1683 = vsub.s32 0, %v1682
  %v1684 = vrot.slane %v1679, %v1683
  %v1685 = vlaneseq
  %v1686 = vshrl.u32 %v1685, 7
  %v1687 = vsub.s32 1, %v1686
  %v1688 = vrot.slane %v1679, %v1687
  %v1689 = vlaneseq
  %v1690 = vshrl.u32 %v1689, 7
  %v1691 = vsub.s32 2, %v1690
  %v1692 = vrot.slane %v1679, %v1691
  %v1693 = vlaneseq
  %v1694 = vshrl.u32 %v1693, 7
  %v1695 = vsub.s32 3, %v1694
  %v1696 = vrot.slane %v1679, %v1695
  %1701 = vmatprep.subr.mxu0 %v1168
  %1702 = vmatpush1.msra.mxu0 %v1167
  %1703 = vmatprep.subr.mxu0 %v1172
  %1704 = vmatpush1.msra.mxu0 %v1171
  %1705 = vmatprep.subr.mxu0 %v1176
  %1706 = vmatpush1.msra.mxu0 %v1175
  %1707 = vmatprep.subr.mxu0 %v1180
  %1708 = vmatpush1.msra.mxu0 %v1179
  %1709 = vmatprep.subr.mxu0 %v1184
  %1710 = vmatpush1.msra.mxu0 %v1183
  %1711 = vmatprep.subr.mxu0 %v1188
  %1712 = vmatpush1.msra.mxu0 %v1187
  %1713 = vmatprep.subr.mxu0 %v1192
  %1714 = vmatpush1.msra.mxu0 %v1191
  %1715 = vmatprep.subr.mxu0 %v1196
  %1716 = vmatpush1.msra.mxu0 %v1195
  %1717 = vmatprep.subr.mxu0 %v1200
  %1718 = vmatpush1.msra.mxu0 %v1199
  %1719 = vmatprep.subr.mxu0 %v1204
  %1720 = vmatpush1.msra.mxu0 %v1203
  %1721 = vmatprep.subr.mxu0 %v1208
  %1722 = vmatpush1.msra.mxu0 %v1207
  %1723 = vmatprep.subr.mxu0 %v1212
  %1724 = vmatpush1.msra.mxu0 %v1211
  %1725 = vmatprep.subr.mxu0 %v1216
  %1726 = vmatpush1.msra.mxu0 %v1215
  %1727 = vmatprep.subr.mxu0 %v1220
  %1728 = vmatpush1.msra.mxu0 %v1219
  %1729 = vmatprep.subr.mxu0 %v1224
  %1730 = vmatpush1.msra.mxu0 %v1223
  %1731 = vmatprep.subr.mxu0 %v1228
  %1732 = vmatpush1.msra.mxu0 %v1227
  %1733 = vmatprep.subr.mxu0 %v1232
  %1734 = vmatpush1.msra.mxu0 %v1231
  %1735 = vmatprep.subr.mxu0 %v1236
  %1736 = vmatpush1.msra.mxu0 %v1235
  %1737 = vmatprep.subr.mxu0 %v1240
  %1738 = vmatpush1.msra.mxu0 %v1239
  %1739 = vmatprep.subr.mxu0 %v1244
  %1740 = vmatpush1.msra.mxu0 %v1243
  %1741 = vmatprep.subr.mxu0 %v1248
  %1742 = vmatpush1.msra.mxu0 %v1247
  %1743 = vmatprep.subr.mxu0 %v1252
  %1744 = vmatpush1.msra.mxu0 %v1251
  %1745 = vmatprep.subr.mxu0 %v1256
  %1746 = vmatpush1.msra.mxu0 %v1255
  %1747 = vmatprep.subr.mxu0 %v1260
  %1748 = vmatpush1.msra.mxu0 %v1259
  %1749 = vmatprep.subr.mxu0 %v1264
  %1750 = vmatpush1.msra.mxu0 %v1263
  %1751 = vmatprep.subr.mxu0 %v1268
  %1752 = vmatpush1.msra.mxu0 %v1267
  %1753 = vmatprep.subr.mxu0 %v1272
  %1754 = vmatpush1.msra.mxu0 %v1271
  %1755 = vmatprep.subr.mxu0 %v1276
  %1756 = vmatpush1.msra.mxu0 %v1275
  %1757 = vmatprep.subr.mxu0 %v1280
  %1758 = vmatpush1.msra.mxu0 %v1279
  %1759 = vmatprep.subr.mxu0 %v1284
  %1760 = vmatpush1.msra.mxu0 %v1283
  %1761 = vmatprep.subr.mxu0 %v1288
  %1762 = vmatpush1.msra.mxu0 %v1287
  %1763 = vmatprep.subr.mxu0 %v1292
  %1764 = vmatpush1.msra.mxu0 %v1291
  %1765 = vmatprep.mubr.f32.mxu0 %v1136
  %1766 = vmatmul.mubr.f32.gmra.mrb[0].mxu0 %v1135
  %v1767 = vpop.f32.mrb[0].mxu0
  %v1768 = vadd.f32 %v1684, %v1767
  %v1769 = vpop.f32.mrb[0].mxu0
  %v1770 = vadd.f32 %v1688, %v1769
  %1771 = vmatprep.mubr.f32.mxu0 %v1144
  %1772 = vmatmul.mubr.f32.gmra.mrb[0].mxu0 %v1143
  %v1773 = vpop.f32.mrb[0].mxu0
  %v1774 = vadd.f32 %v1684, %v1773
  %v1775 = vpop.f32.mrb[0].mxu0
  %v1776 = vadd.f32 %v1688, %v1775
  %1777 = vmatprep.mubr.f32.mxu0 %v1152
  %1778 = vmatmul.mubr.f32.gmra.mrb[0].mxu0 %v1151
  %v1779 = vpop.f32.mrb[0].mxu0
  %v1780 = vadd.f32 %v1684, %v1779
  %v1781 = vpop.f32.mrb[0].mxu0
  %v1782 = vadd.f32 %v1688, %v1781
  %1783 = vmatprep.mubr.f32.mxu0 %v1160
  %1784 = vmatmul.mubr.f32.gmra.mrb[0].mxu0 %v1159
  %v1785 = vpop.f32.mrb[0].mxu0
  %v1786 = vadd.f32 %v1684, %v1785
  %v1787 = vpop.f32.mrb[0].mxu0
  %v1788 = vadd.f32 %v1688, %v1787
  %1789 = vdwg.mxu0
  %1790 = vmatprep.subr.mxu0 %v1296
  %1791 = vmatpush1.msra.mxu0 %v1295
  %1792 = vmatprep.subr.mxu0 %v1300
  %1793 = vmatpush1.msra.mxu0 %v1299
  %1794 = vmatprep.subr.mxu0 %v1304
  %1795 = vmatpush1.msra.mxu0 %v1303
  %1796 = vmatprep.subr.mxu0 %v1308
  %1797 = vmatpush1.msra.mxu0 %v1307
  %1798 = vmatprep.subr.mxu0 %v1312
  %1799 = vmatpush1.msra.mxu0 %v1311
  %1800 = vmatprep.subr.mxu0 %v1316
  %1801 = vmatpush1.msra.mxu0 %v1315
  %1802 = vmatprep.subr.mxu0 %v1320
  %1803 = vmatpush1.msra.mxu0 %v1319
  %1804 = vmatprep.subr.mxu0 %v1324
  %1805 = vmatpush1.msra.mxu0 %v1323
  %1806 = vmatprep.subr.mxu0 %v1328
  %1807 = vmatpush1.msra.mxu0 %v1327
  %1808 = vmatprep.subr.mxu0 %v1332
  %1809 = vmatpush1.msra.mxu0 %v1331
  %1810 = vmatprep.subr.mxu0 %v1336
  %1811 = vmatpush1.msra.mxu0 %v1335
  %1812 = vmatprep.subr.mxu0 %v1340
  %1813 = vmatpush1.msra.mxu0 %v1339
  %1814 = vmatprep.subr.mxu0 %v1344
  %1815 = vmatpush1.msra.mxu0 %v1343
  %1816 = vmatprep.subr.mxu0 %v1348
  %1817 = vmatpush1.msra.mxu0 %v1347
  %1818 = vmatprep.subr.mxu0 %v1352
  %1819 = vmatpush1.msra.mxu0 %v1351
  %1820 = vmatprep.subr.mxu0 %v1356
  %1821 = vmatpush1.msra.mxu0 %v1355
  %1822 = vmatprep.subr.mxu0 %v1360
  %1823 = vmatpush1.msra.mxu0 %v1359
  %1824 = vmatprep.subr.mxu0 %v1364
  %1825 = vmatpush1.msra.mxu0 %v1363
  %1826 = vmatprep.subr.mxu0 %v1368
  %1827 = vmatpush1.msra.mxu0 %v1367
  %1828 = vmatprep.subr.mxu0 %v1372
  %1829 = vmatpush1.msra.mxu0 %v1371
  %1830 = vmatprep.subr.mxu0 %v1376
  %1831 = vmatpush1.msra.mxu0 %v1375
  %1832 = vmatprep.subr.mxu0 %v1380
  %1833 = vmatpush1.msra.mxu0 %v1379
  %1834 = vmatprep.subr.mxu0 %v1384
  %1835 = vmatpush1.msra.mxu0 %v1383
  %1836 = vmatprep.subr.mxu0 %v1388
  %1837 = vmatpush1.msra.mxu0 %v1387
  %1838 = vmatprep.subr.mxu0 %v1392
  %1839 = vmatpush1.msra.mxu0 %v1391
  %1840 = vmatprep.subr.mxu0 %v1396
  %1841 = vmatpush1.msra.mxu0 %v1395
  %1842 = vmatprep.subr.mxu0 %v1400
  %1843 = vmatpush1.msra.mxu0 %v1399
  %1844 = vmatprep.subr.mxu0 %v1404
  %1845 = vmatpush1.msra.mxu0 %v1403
  %1846 = vmatprep.subr.mxu0 %v1408
  %1847 = vmatpush1.msra.mxu0 %v1407
  %1848 = vmatprep.subr.mxu0 %v1412
  %1849 = vmatpush1.msra.mxu0 %v1411
  %1850 = vmatprep.subr.mxu0 %v1416
  %1851 = vmatpush1.msra.mxu0 %v1415
  %1852 = vmatprep.subr.mxu0 %v1420
  %1853 = vmatpush1.msra.mxu0 %v1419
  %1854 = vmatprep.mubr.f32.mxu0 %v1138
  %1855 = vmatmul.mubr.f32.gmra.mrb[0].mxu0 %v1137
  %v1856 = vpop.f32.mrb[0].mxu0
  %v1857 = vadd.f32 %v1768, %v1856
  %v1858 = vpop.f32.mrb[0].mxu0
  %v1859 = vadd.f32 %v1770, %v1858
  %1860 = vmatprep.mubr.f32.mxu0 %v1146
  %1861 = vmatmul.mubr.f32.gmra.mrb[0].mxu0 %v1145
  %v1862 = vpop.f32.mrb[0].mxu0
  %v1863 = vadd.f32 %v1774, %v1862
  %v1864 = vpop.f32.mrb[0].mxu0
  %v1865 = vadd.f32 %v1776, %v1864
  %1866 = vmatprep.mubr.f32.mxu0 %v1154
  %1867 = vmatmul.mubr.f32.gmra.mrb[0].mxu0 %v1153
  %v1868 = vpop.f32.mrb[0].mxu0
  %v1869 = vadd.f32 %v1780, %v1868
  %v1870 = vpop.f32.mrb[0].mxu0
  %v1871 = vadd.f32 %v1782, %v1870
  %1872 = vmatprep.mubr.f32.mxu0 %v1162
  %1873 = vmatmul.mubr.f32.gmra.mrb[0].mxu0 %v1161
  %v1874 = vpop.f32.mrb[0].mxu0
  %v1875 = vadd.f32 %v1786, %v1874
  %v1876 = vpop.f32.mrb[0].mxu0
  %v1877 = vadd.f32 %v1788, %v1876
  %1878 = vdwg.mxu0
  %1879 = vmatprep.subr.mxu0 %v1424
  %1880 = vmatpush1.msra.mxu0 %v1423
  %1881 = vmatprep.subr.mxu0 %v1428
  %1882 = vmatpush1.msra.mxu0 %v1427
  %1883 = vmatprep.subr.mxu0 %v1432
  %1884 = vmatpush1.msra.mxu0 %v1431
  %1885 = vmatprep.subr.mxu0 %v1436
  %1886 = vmatpush1.msra.mxu0 %v1435
  %1887 = vmatprep.subr.mxu0 %v1440
  %1888 = vmatpush1.msra.mxu0 %v1439
  %1889 = vmatprep.subr.mxu0 %v1444
  %1890 = vmatpush1.msra.mxu0 %v1443
  %1891 = vmatprep.subr.mxu0 %v1448
  %1892 = vmatpush1.msra.mxu0 %v1447
  %1893 = vmatprep.subr.mxu0 %v1452
  %1894 = vmatpush1.msra.mxu0 %v1451
  %1895 = vmatprep.subr.mxu0 %v1456
  %1896 = vmatpush1.msra.mxu0 %v1455
  %1897 = vmatprep.subr.mxu0 %v1460
  %1898 = vmatpush1.msra.mxu0 %v1459
  %1899 = vmatprep.subr.mxu0 %v1464
  %1900 = vmatpush1.msra.mxu0 %v1463
  %1901 = vmatprep.subr.mxu0 %v1468
  %1902 = vmatpush1.msra.mxu0 %v1467
  %1903 = vmatprep.subr.mxu0 %v1472
  %1904 = vmatpush1.msra.mxu0 %v1471
  %1905 = vmatprep.subr.mxu0 %v1476
  %1906 = vmatpush1.msra.mxu0 %v1475
  %1907 = vmatprep.subr.mxu0 %v1480
  %1908 = vmatpush1.msra.mxu0 %v1479
  %1909 = vmatprep.subr.mxu0 %v1484
  %1910 = vmatpush1.msra.mxu0 %v1483
  %1911 = vmatprep.subr.mxu0 %v1488
  %1912 = vmatpush1.msra.mxu0 %v1487
  %1913 = vmatprep.subr.mxu0 %v1492
  %1914 = vmatpush1.msra.mxu0 %v1491
  %1915 = vmatprep.subr.mxu0 %v1496
  %1916 = vmatpush1.msra.mxu0 %v1495
  %1917 = vmatprep.subr.mxu0 %v1500
  %1918 = vmatpush1.msra.mxu0 %v1499
  %1919 = vmatprep.subr.mxu0 %v1504
  %1920 = vmatpush1.msra.mxu0 %v1503
  %1921 = vmatprep.subr.mxu0 %v1508
  %1922 = vmatpush1.msra.mxu0 %v1507
  %1923 = vmatprep.subr.mxu0 %v1512
  %1924 = vmatpush1.msra.mxu0 %v1511
  %1925 = vmatprep.subr.mxu0 %v1516
  %1926 = vmatpush1.msra.mxu0 %v1515
  %1927 = vmatprep.subr.mxu0 %v1520
  %1928 = vmatpush1.msra.mxu0 %v1519
  %1929 = vmatprep.subr.mxu0 %v1524
  %1930 = vmatpush1.msra.mxu0 %v1523
  %1931 = vmatprep.subr.mxu0 %v1528
  %1932 = vmatpush1.msra.mxu0 %v1527
  %1933 = vmatprep.subr.mxu0 %v1532
  %1934 = vmatpush1.msra.mxu0 %v1531
  %1935 = vmatprep.subr.mxu0 %v1536
  %1936 = vmatpush1.msra.mxu0 %v1535
  %1937 = vmatprep.subr.mxu0 %v1540
  %1938 = vmatpush1.msra.mxu0 %v1539
  %1939 = vmatprep.subr.mxu0 %v1544
  %1940 = vmatpush1.msra.mxu0 %v1543
  %1941 = vmatprep.subr.mxu0 %v1548
  %1942 = vmatpush1.msra.mxu0 %v1547
  %1943 = vmatprep.mubr.f32.mxu0 %v1140
  %1944 = vmatmul.mubr.f32.gmra.mrb[0].mxu0 %v1139
  %v1945 = vpop.f32.mrb[0].mxu0
  %v1946 = vadd.f32 %v1857, %v1945
  %v1947 = vpop.f32.mrb[0].mxu0
  %v1948 = vadd.f32 %v1859, %v1947
  %1949 = vmatprep.mubr.f32.mxu0 %v1148
  %1950 = vmatmul.mubr.f32.gmra.mrb[0].mxu0 %v1147
  %v1951 = vpop.f32.mrb[0].mxu0
  %v1952 = vadd.f32 %v1863, %v1951
  %v1953 = vpop.f32.mrb[0].mxu0
  %v1954 = vadd.f32 %v1865, %v1953
  %1955 = vmatprep.mubr.f32.mxu0 %v1156
  %1956 = vmatmul.mubr.f32.gmra.mrb[0].mxu0 %v1155
  %v1957 = vpop.f32.mrb[0].mxu0
  %v1958 = vadd.f32 %v1869, %v1957
  %v1959 = vpop.f32.mrb[0].mxu0
  %v1960 = vadd.f32 %v1871, %v1959
  %1961 = vmatprep.mubr.f32.mxu0 %v1164
  %1962 = vmatmul.mubr.f32.gmra.mrb[0].mxu0 %v1163
  %v1963 = vpop.f32.mrb[0].mxu0
  %v1964 = vadd.f32 %v1875, %v1963
  %v1965 = vpop.f32.mrb[0].mxu0
  %v1966 = vadd.f32 %v1877, %v1965
  %1967 = vdwg.mxu0
  %1968 = vmatprep.subr.mxu0 %v1552
  %1969 = vmatpush1.msra.mxu0 %v1551
  %1970 = vmatprep.subr.mxu0 %v1556
  %1971 = vmatpush1.msra.mxu0 %v1555
  %1972 = vmatprep.subr.mxu0 %v1560
  %1973 = vmatpush1.msra.mxu0 %v1559
  %1974 = vmatprep.subr.mxu0 %v1564
  %1975 = vmatpush1.msra.mxu0 %v1563
  %1976 = vmatprep.subr.mxu0 %v1568
  %1977 = vmatpush1.msra.mxu0 %v1567
  %1978 = vmatprep.subr.mxu0 %v1572
  %1979 = vmatpush1.msra.mxu0 %v1571
  %1980 = vmatprep.subr.mxu0 %v1576
  %1981 = vmatpush1.msra.mxu0 %v1575
  %1982 = vmatprep.subr.mxu0 %v1580
  %1983 = vmatpush1.msra.mxu0 %v1579
  %1984 = vmatprep.subr.mxu0 %v1584
  %1985 = vmatpush1.msra.mxu0 %v1583
  %1986 = vmatprep.subr.mxu0 %v1588
  %1987 = vmatpush1.msra.mxu0 %v1587
  %1988 = vmatprep.subr.mxu0 %v1592
  %1989 = vmatpush1.msra.mxu0 %v1591
  %1990 = vmatprep.subr.mxu0 %v1596
  %1991 = vmatpush1.msra.mxu0 %v1595
  %1992 = vmatprep.subr.mxu0 %v1600
  %1993 = vmatpush1.msra.mxu0 %v1599
  %1994 = vmatprep.subr.mxu0 %v1604
  %1995 = vmatpush1.msra.mxu0 %v1603
  %1996 = vmatprep.subr.mxu0 %v1608
  %1997 = vmatpush1.msra.mxu0 %v1607
  %1998 = vmatprep.subr.mxu0 %v1612
  %1999 = vmatpush1.msra.mxu0 %v1611
  %2000 = vmatprep.subr.mxu0 %v1616
  %2001 = vmatpush1.msra.mxu0 %v1615
  %2002 = vmatprep.subr.mxu0 %v1620
  %2003 = vmatpush1.msra.mxu0 %v1619
  %2004 = vmatprep.subr.mxu0 %v1624
  %2005 = vmatpush1.msra.mxu0 %v1623
  %2006 = vmatprep.subr.mxu0 %v1628
  %2007 = vmatpush1.msra.mxu0 %v1627
  %2008 = vmatprep.subr.mxu0 %v1632
  %2009 = vmatpush1.msra.mxu0 %v1631
  %2010 = vmatprep.subr.mxu0 %v1636
  %2011 = vmatpush1.msra.mxu0 %v1635
  %2012 = vmatprep.subr.mxu0 %v1640
  %2013 = vmatpush1.msra.mxu0 %v1639
  %2014 = vmatprep.subr.mxu0 %v1644
  %2015 = vmatpush1.msra.mxu0 %v1643
  %2016 = vmatprep.subr.mxu0 %v1648
  %2017 = vmatpush1.msra.mxu0 %v1647
  %2018 = vmatprep.subr.mxu0 %v1652
  %2019 = vmatpush1.msra.mxu0 %v1651
  %2020 = vmatprep.subr.mxu0 %v1656
  %2021 = vmatpush1.msra.mxu0 %v1655
  %2022 = vmatprep.subr.mxu0 %v1660
  %2023 = vmatpush1.msra.mxu0 %v1659
  %2024 = vmatprep.subr.mxu0 %v1664
  %2025 = vmatpush1.msra.mxu0 %v1663
  %2026 = vmatprep.subr.mxu0 %v1668
  %2027 = vmatpush1.msra.mxu0 %v1667
  %2028 = vmatprep.subr.mxu0 %v1672
  %2029 = vmatpush1.msra.mxu0 %v1671
  %2030 = vmatprep.subr.mxu0 %v1676
  %2031 = vmatpush1.msra.mxu0 %v1675
  %2032 = vmatprep.mubr.f32.mxu0 %v1142
  %2033 = vmatmul.mubr.f32.gmra.mrb[0].mxu0 %v1141
  %v2034 = vpop.f32.mrb[0].mxu0
  %v2035 = vadd.f32 %v1946, %v2034
  %v2036 = vpop.f32.mrb[0].mxu0
  %v2037 = vadd.f32 %v1948, %v2036
  %2038 = vmatprep.mubr.f32.mxu0 %v1150
  %2039 = vmatmul.mubr.f32.gmra.mrb[0].mxu0 %v1149
  %v2040 = vpop.f32.mrb[0].mxu0
  %v2041 = vadd.f32 %v1952, %v2040
  %v2042 = vpop.f32.mrb[0].mxu0
  %v2043 = vadd.f32 %v1954, %v2042
  %2044 = vmatprep.mubr.f32.mxu0 %v1158
  %2045 = vmatmul.mubr.f32.gmra.mrb[0].mxu0 %v1157
  %v2046 = vpop.f32.mrb[0].mxu0
  %v2047 = vadd.f32 %v1958, %v2046
  %v2048 = vpop.f32.mrb[0].mxu0
  %v2049 = vadd.f32 %v1960, %v2048
  %2050 = vmatprep.mubr.f32.mxu0 %v1166
  %2051 = vmatmul.mubr.f32.gmra.mrb[0].mxu0 %v1165
  %v2052 = vpop.f32.mrb[0].mxu0
  %v2053 = vadd.f32 %v1964, %v2052
  %v2054 = vpop.f32.mrb[0].mxu0
  %v2055 = vadd.f32 %v1966, %v2054
  %2056 = vdwg.mxu0
  %2057 = vmatprep.subr.mxu0 %v1170
  %2058 = vmatpush1.msra.mxu0 %v1169
  %2059 = vmatprep.subr.mxu0 %v1174
  %2060 = vmatpush1.msra.mxu0 %v1173
  %2061 = vmatprep.subr.mxu0 %v1178
  %2062 = vmatpush1.msra.mxu0 %v1177
  %2063 = vmatprep.subr.mxu0 %v1182
  %2064 = vmatpush1.msra.mxu0 %v1181
  %2065 = vmatprep.subr.mxu0 %v1186
  %2066 = vmatpush1.msra.mxu0 %v1185
  %2067 = vmatprep.subr.mxu0 %v1190
  %2068 = vmatpush1.msra.mxu0 %v1189
  %2069 = vmatprep.subr.mxu0 %v1194
  %2070 = vmatpush1.msra.mxu0 %v1193
  %2071 = vmatprep.subr.mxu0 %v1198
  %2072 = vmatpush1.msra.mxu0 %v1197
  %2073 = vmatprep.subr.mxu0 %v1202
  %2074 = vmatpush1.msra.mxu0 %v1201
  %2075 = vmatprep.subr.mxu0 %v1206
  %2076 = vmatpush1.msra.mxu0 %v1205
  %2077 = vmatprep.subr.mxu0 %v1210
  %2078 = vmatpush1.msra.mxu0 %v1209
  %2079 = vmatprep.subr.mxu0 %v1214
  %2080 = vmatpush1.msra.mxu0 %v1213
  %2081 = vmatprep.subr.mxu0 %v1218
  %2082 = vmatpush1.msra.mxu0 %v1217
  %2083 = vmatprep.subr.mxu0 %v1222
  %2084 = vmatpush1.msra.mxu0 %v1221
  %2085 = vmatprep.subr.mxu0 %v1226
  %2086 = vmatpush1.msra.mxu0 %v1225
  %2087 = vmatprep.subr.mxu0 %v1230
  %2088 = vmatpush1.msra.mxu0 %v1229
  %2089 = vmatprep.subr.mxu0 %v1234
  %2090 = vmatpush1.msra.mxu0 %v1233
  %2091 = vmatprep.subr.mxu0 %v1238
  %2092 = vmatpush1.msra.mxu0 %v1237
  %2093 = vmatprep.subr.mxu0 %v1242
  %2094 = vmatpush1.msra.mxu0 %v1241
  %2095 = vmatprep.subr.mxu0 %v1246
  %2096 = vmatpush1.msra.mxu0 %v1245
  %2097 = vmatprep.subr.mxu0 %v1250
  %2098 = vmatpush1.msra.mxu0 %v1249
  %2099 = vmatprep.subr.mxu0 %v1254
  %2100 = vmatpush1.msra.mxu0 %v1253
  %2101 = vmatprep.subr.mxu0 %v1258
  %2102 = vmatpush1.msra.mxu0 %v1257
  %2103 = vmatprep.subr.mxu0 %v1262
  %2104 = vmatpush1.msra.mxu0 %v1261
  %2105 = vmatprep.subr.mxu0 %v1266
  %2106 = vmatpush1.msra.mxu0 %v1265
  %2107 = vmatprep.subr.mxu0 %v1270
  %2108 = vmatpush1.msra.mxu0 %v1269
  %2109 = vmatprep.subr.mxu0 %v1274
  %2110 = vmatpush1.msra.mxu0 %v1273
  %2111 = vmatprep.subr.mxu0 %v1278
  %2112 = vmatpush1.msra.mxu0 %v1277
  %2113 = vmatprep.subr.mxu0 %v1282
  %2114 = vmatpush1.msra.mxu0 %v1281
  %2115 = vmatprep.subr.mxu0 %v1286
  %2116 = vmatpush1.msra.mxu0 %v1285
  %2117 = vmatprep.subr.mxu0 %v1290
  %2118 = vmatpush1.msra.mxu0 %v1289
  %2119 = vmatprep.subr.mxu0 %v1294
  %2120 = vmatpush1.msra.mxu0 %v1293
  %2121 = vmatprep.mubr.f32.mxu0 %v1136
  %2122 = vmatmul.mubr.f32.gmra.mrb[0].mxu0 %v1135
  %v2123 = vpop.f32.mrb[0].mxu0
  %v2124 = vadd.f32 %v1692, %v2123
  %v2125 = vpop.f32.mrb[0].mxu0
  %v2126 = vadd.f32 %v1696, %v2125
  %2127 = vmatprep.mubr.f32.mxu0 %v1144
  %2128 = vmatmul.mubr.f32.gmra.mrb[0].mxu0 %v1143
  %v2129 = vpop.f32.mrb[0].mxu0
  %v2130 = vadd.f32 %v1692, %v2129
  %v2131 = vpop.f32.mrb[0].mxu0
  %v2132 = vadd.f32 %v1696, %v2131
  %2133 = vmatprep.mubr.f32.mxu0 %v1152
  %2134 = vmatmul.mubr.f32.gmra.mrb[0].mxu0 %v1151
  %v2135 = vpop.f32.mrb[0].mxu0
  %v2136 = vadd.f32 %v1692, %v2135
  %v2137 = vpop.f32.mrb[0].mxu0
  %v2138 = vadd.f32 %v1696, %v2137
  %2139 = vmatprep.mubr.f32.mxu0 %v1160
  %2140 = vmatmul.mubr.f32.gmra.mrb[0].mxu0 %v1159
  %v2141 = vpop.f32.mrb[0].mxu0
  %v2142 = vadd.f32 %v1692, %v2141
  %v2143 = vpop.f32.mrb[0].mxu0
  %v2144 = vadd.f32 %v1696, %v2143
  %2145 = vdwg.mxu0
  %2146 = vmatprep.subr.mxu0 %v1298
  %2147 = vmatpush1.msra.mxu0 %v1297
  %2148 = vmatprep.subr.mxu0 %v1302
  %2149 = vmatpush1.msra.mxu0 %v1301
  %2150 = vmatprep.subr.mxu0 %v1306
  %2151 = vmatpush1.msra.mxu0 %v1305
  %2152 = vmatprep.subr.mxu0 %v1310
  %2153 = vmatpush1.msra.mxu0 %v1309
  %2154 = vmatprep.subr.mxu0 %v1314
  %2155 = vmatpush1.msra.mxu0 %v1313
  %2156 = vmatprep.subr.mxu0 %v1318
  %2157 = vmatpush1.msra.mxu0 %v1317
  %2158 = vmatprep.subr.mxu0 %v1322
  %2159 = vmatpush1.msra.mxu0 %v1321
  %2160 = vmatprep.subr.mxu0 %v1326
  %2161 = vmatpush1.msra.mxu0 %v1325
  %2162 = vmatprep.subr.mxu0 %v1330
  %2163 = vmatpush1.msra.mxu0 %v1329
  %2164 = vmatprep.subr.mxu0 %v1334
  %2165 = vmatpush1.msra.mxu0 %v1333
  %2166 = vmatprep.subr.mxu0 %v1338
  %2167 = vmatpush1.msra.mxu0 %v1337
  %2168 = vmatprep.subr.mxu0 %v1342
  %2169 = vmatpush1.msra.mxu0 %v1341
  %2170 = vmatprep.subr.mxu0 %v1346
  %2171 = vmatpush1.msra.mxu0 %v1345
  %2172 = vmatprep.subr.mxu0 %v1350
  %2173 = vmatpush1.msra.mxu0 %v1349
  %2174 = vmatprep.subr.mxu0 %v1354
  %2175 = vmatpush1.msra.mxu0 %v1353
  %2176 = vmatprep.subr.mxu0 %v1358
  %2177 = vmatpush1.msra.mxu0 %v1357
  %2178 = vmatprep.subr.mxu0 %v1362
  %2179 = vmatpush1.msra.mxu0 %v1361
  %2180 = vmatprep.subr.mxu0 %v1366
  %2181 = vmatpush1.msra.mxu0 %v1365
  %2182 = vmatprep.subr.mxu0 %v1370
  %2183 = vmatpush1.msra.mxu0 %v1369
  %2184 = vmatprep.subr.mxu0 %v1374
  %2185 = vmatpush1.msra.mxu0 %v1373
  %2186 = vmatprep.subr.mxu0 %v1378
  %2187 = vmatpush1.msra.mxu0 %v1377
  %2188 = vmatprep.subr.mxu0 %v1382
  %2189 = vmatpush1.msra.mxu0 %v1381
  %2190 = vmatprep.subr.mxu0 %v1386
  %2191 = vmatpush1.msra.mxu0 %v1385
  %2192 = vmatprep.subr.mxu0 %v1390
  %2193 = vmatpush1.msra.mxu0 %v1389
  %2194 = vmatprep.subr.mxu0 %v1394
  %2195 = vmatpush1.msra.mxu0 %v1393
  %2196 = vmatprep.subr.mxu0 %v1398
  %2197 = vmatpush1.msra.mxu0 %v1397
  %2198 = vmatprep.subr.mxu0 %v1402
  %2199 = vmatpush1.msra.mxu0 %v1401
  %2200 = vmatprep.subr.mxu0 %v1406
  %2201 = vmatpush1.msra.mxu0 %v1405
  %2202 = vmatprep.subr.mxu0 %v1410
  %2203 = vmatpush1.msra.mxu0 %v1409
  %2204 = vmatprep.subr.mxu0 %v1414
  %2205 = vmatpush1.msra.mxu0 %v1413
  %2206 = vmatprep.subr.mxu0 %v1418
  %2207 = vmatpush1.msra.mxu0 %v1417
  %2208 = vmatprep.subr.mxu0 %v1422
  %2209 = vmatpush1.msra.mxu0 %v1421
  %2210 = vmatprep.mubr.f32.mxu0 %v1138
  %2211 = vmatmul.mubr.f32.gmra.mrb[0].mxu0 %v1137
  %v2212 = vpop.f32.mrb[0].mxu0
  %v2213 = vadd.f32 %v2124, %v2212
  %v2214 = vpop.f32.mrb[0].mxu0
  %v2215 = vadd.f32 %v2126, %v2214
  %2216 = vmatprep.mubr.f32.mxu0 %v1146
  %2217 = vmatmul.mubr.f32.gmra.mrb[0].mxu0 %v1145
  %v2218 = vpop.f32.mrb[0].mxu0
  %v2219 = vadd.f32 %v2130, %v2218
  %v2220 = vpop.f32.mrb[0].mxu0
  %v2221 = vadd.f32 %v2132, %v2220
  %2222 = vmatprep.mubr.f32.mxu0 %v1154
  %2223 = vmatmul.mubr.f32.gmra.mrb[0].mxu0 %v1153
  %v2224 = vpop.f32.mrb[0].mxu0
  %v2225 = vadd.f32 %v2136, %v2224
  %v2226 = vpop.f32.mrb[0].mxu0
  %v2227 = vadd.f32 %v2138, %v2226
  %2228 = vmatprep.mubr.f32.mxu0 %v1162
  %2229 = vmatmul.mubr.f32.gmra.mrb[0].mxu0 %v1161
  %v2230 = vpop.f32.mrb[0].mxu0
  %v2231 = vadd.f32 %v2142, %v2230
  %v2232 = vpop.f32.mrb[0].mxu0
  %v2233 = vadd.f32 %v2144, %v2232
  %2234 = vdwg.mxu0
  %2235 = vmatprep.subr.mxu0 %v1426
  %2236 = vmatpush1.msra.mxu0 %v1425
  %2237 = vmatprep.subr.mxu0 %v1430
  %2238 = vmatpush1.msra.mxu0 %v1429
  %2239 = vmatprep.subr.mxu0 %v1434
  %2240 = vmatpush1.msra.mxu0 %v1433
  %2241 = vmatprep.subr.mxu0 %v1438
  %2242 = vmatpush1.msra.mxu0 %v1437
  %2243 = vmatprep.subr.mxu0 %v1442
  %2244 = vmatpush1.msra.mxu0 %v1441
  %2245 = vmatprep.subr.mxu0 %v1446
  %2246 = vmatpush1.msra.mxu0 %v1445
  %2247 = vmatprep.subr.mxu0 %v1450
  %2248 = vmatpush1.msra.mxu0 %v1449
  %2249 = vmatprep.subr.mxu0 %v1454
  %2250 = vmatpush1.msra.mxu0 %v1453
  %2251 = vmatprep.subr.mxu0 %v1458
  %2252 = vmatpush1.msra.mxu0 %v1457
  %2253 = vmatprep.subr.mxu0 %v1462
  %2254 = vmatpush1.msra.mxu0 %v1461
  %2255 = vmatprep.subr.mxu0 %v1466
  %2256 = vmatpush1.msra.mxu0 %v1465
  %2257 = vmatprep.subr.mxu0 %v1470
  %2258 = vmatpush1.msra.mxu0 %v1469
  %2259 = vmatprep.subr.mxu0 %v1474
  %2260 = vmatpush1.msra.mxu0 %v1473
  %2261 = vmatprep.subr.mxu0 %v1478
  %2262 = vmatpush1.msra.mxu0 %v1477
  %2263 = vmatprep.subr.mxu0 %v1482
  %2264 = vmatpush1.msra.mxu0 %v1481
  %2265 = vmatprep.subr.mxu0 %v1486
  %2266 = vmatpush1.msra.mxu0 %v1485
  %2267 = vmatprep.subr.mxu0 %v1490
  %2268 = vmatpush1.msra.mxu0 %v1489
  %2269 = vmatprep.subr.mxu0 %v1494
  %2270 = vmatpush1.msra.mxu0 %v1493
  %2271 = vmatprep.subr.mxu0 %v1498
  %2272 = vmatpush1.msra.mxu0 %v1497
  %2273 = vmatprep.subr.mxu0 %v1502
  %2274 = vmatpush1.msra.mxu0 %v1501
  %2275 = vmatprep.subr.mxu0 %v1506
  %2276 = vmatpush1.msra.mxu0 %v1505
  %2277 = vmatprep.subr.mxu0 %v1510
  %2278 = vmatpush1.msra.mxu0 %v1509
  %2279 = vmatprep.subr.mxu0 %v1514
  %2280 = vmatpush1.msra.mxu0 %v1513
  %2281 = vmatprep.subr.mxu0 %v1518
  %2282 = vmatpush1.msra.mxu0 %v1517
  %2283 = vmatprep.subr.mxu0 %v1522
  %2284 = vmatpush1.msra.mxu0 %v1521
  %2285 = vmatprep.subr.mxu0 %v1526
  %2286 = vmatpush1.msra.mxu0 %v1525
  %2287 = vmatprep.subr.mxu0 %v1530
  %2288 = vmatpush1.msra.mxu0 %v1529
  %2289 = vmatprep.subr.mxu0 %v1534
  %2290 = vmatpush1.msra.mxu0 %v1533
  %2291 = vmatprep.subr.mxu0 %v1538
  %2292 = vmatpush1.msra.mxu0 %v1537
  %2293 = vmatprep.subr.mxu0 %v1542
  %2294 = vmatpush1.msra.mxu0 %v1541
  %2295 = vmatprep.subr.mxu0 %v1546
  %2296 = vmatpush1.msra.mxu0 %v1545
  %2297 = vmatprep.subr.mxu0 %v1550
  %2298 = vmatpush1.msra.mxu0 %v1549
  %2299 = vmatprep.mubr.f32.mxu0 %v1140
  %2300 = vmatmul.mubr.f32.gmra.mrb[0].mxu0 %v1139
  %v2301 = vpop.f32.mrb[0].mxu0
  %v2302 = vadd.f32 %v2213, %v2301
  %v2303 = vpop.f32.mrb[0].mxu0
  %v2304 = vadd.f32 %v2215, %v2303
  %2305 = vmatprep.mubr.f32.mxu0 %v1148
  %2306 = vmatmul.mubr.f32.gmra.mrb[0].mxu0 %v1147
  %v2307 = vpop.f32.mrb[0].mxu0
  %v2308 = vadd.f32 %v2219, %v2307
  %v2309 = vpop.f32.mrb[0].mxu0
  %v2310 = vadd.f32 %v2221, %v2309
  %2311 = vmatprep.mubr.f32.mxu0 %v1156
  %2312 = vmatmul.mubr.f32.gmra.mrb[0].mxu0 %v1155
  %v2313 = vpop.f32.mrb[0].mxu0
  %v2314 = vadd.f32 %v2225, %v2313
  %v2315 = vpop.f32.mrb[0].mxu0
  %v2316 = vadd.f32 %v2227, %v2315
  %2317 = vmatprep.mubr.f32.mxu0 %v1164
  %2318 = vmatmul.mubr.f32.gmra.mrb[0].mxu0 %v1163
  %v2319 = vpop.f32.mrb[0].mxu0
  %v2320 = vadd.f32 %v2231, %v2319
  %v2321 = vpop.f32.mrb[0].mxu0
  %v2322 = vadd.f32 %v2233, %v2321
  %2323 = vdwg.mxu0
  %2324 = vmatprep.subr.mxu0 %v1554
  %2325 = vmatpush1.msra.mxu0 %v1553
  %2326 = vmatprep.subr.mxu0 %v1558
  %2327 = vmatpush1.msra.mxu0 %v1557
  %2328 = vmatprep.subr.mxu0 %v1562
  %2329 = vmatpush1.msra.mxu0 %v1561
  %2330 = vmatprep.subr.mxu0 %v1566
  %2331 = vmatpush1.msra.mxu0 %v1565
  %2332 = vmatprep.subr.mxu0 %v1570
  %2333 = vmatpush1.msra.mxu0 %v1569
  %2334 = vmatprep.subr.mxu0 %v1574
  %2335 = vmatpush1.msra.mxu0 %v1573
  %2336 = vmatprep.subr.mxu0 %v1578
  %2337 = vmatpush1.msra.mxu0 %v1577
  %2338 = vmatprep.subr.mxu0 %v1582
  %2339 = vmatpush1.msra.mxu0 %v1581
  %2340 = vmatprep.subr.mxu0 %v1586
  %2341 = vmatpush1.msra.mxu0 %v1585
  %2342 = vmatprep.subr.mxu0 %v1590
  %2343 = vmatpush1.msra.mxu0 %v1589
  %2344 = vmatprep.subr.mxu0 %v1594
  %2345 = vmatpush1.msra.mxu0 %v1593
  %2346 = vmatprep.subr.mxu0 %v1598
  %2347 = vmatpush1.msra.mxu0 %v1597
  %2348 = vmatprep.subr.mxu0 %v1602
  %2349 = vmatpush1.msra.mxu0 %v1601
  %2350 = vmatprep.subr.mxu0 %v1606
  %2351 = vmatpush1.msra.mxu0 %v1605
  %2352 = vmatprep.subr.mxu0 %v1610
  %2353 = vmatpush1.msra.mxu0 %v1609
  %2354 = vmatprep.subr.mxu0 %v1614
  %2355 = vmatpush1.msra.mxu0 %v1613
  %2356 = vmatprep.subr.mxu0 %v1618
  %2357 = vmatpush1.msra.mxu0 %v1617
  %2358 = vmatprep.subr.mxu0 %v1622
  %2359 = vmatpush1.msra.mxu0 %v1621
  %2360 = vmatprep.subr.mxu0 %v1626
  %2361 = vmatpush1.msra.mxu0 %v1625
  %2362 = vmatprep.subr.mxu0 %v1630
  %2363 = vmatpush1.msra.mxu0 %v1629
  %2364 = vmatprep.subr.mxu0 %v1634
  %2365 = vmatpush1.msra.mxu0 %v1633
  %2366 = vmatprep.subr.mxu0 %v1638
  %2367 = vmatpush1.msra.mxu0 %v1637
  %2368 = vmatprep.subr.mxu0 %v1642
  %2369 = vmatpush1.msra.mxu0 %v1641
  %2370 = vmatprep.subr.mxu0 %v1646
  %2371 = vmatpush1.msra.mxu0 %v1645
  %2372 = vmatprep.subr.mxu0 %v1650
  %2373 = vmatpush1.msra.mxu0 %v1649
  %2374 = vmatprep.subr.mxu0 %v1654
  %2375 = vmatpush1.msra.mxu0 %v1653
  %2376 = vmatprep.subr.mxu0 %v1658
  %2377 = vmatpush1.msra.mxu0 %v1657
  %2378 = vmatprep.subr.mxu0 %v1662
  %2379 = vmatpush1.msra.mxu0 %v1661
  %2380 = vmatprep.subr.mxu0 %v1666
  %2381 = vmatpush1.msra.mxu0 %v1665
  %2382 = vmatprep.subr.mxu0 %v1670
  %2383 = vmatpush1.msra.mxu0 %v1669
  %2384 = vmatprep.subr.mxu0 %v1674
  %2385 = vmatpush1.msra.mxu0 %v1673
  %2386 = vmatprep.subr.mxu0 %v1678
  %2387 = vmatpush1.msra.mxu0 %v1677
  %2388 = vmatprep.mubr.f32.mxu0 %v1142
  %2389 = vmatmul.mubr.f32.gmra.mrb[0].mxu0 %v1141
  %v2390 = vpop.f32.mrb[0].mxu0
  %v2391 = vadd.f32 %v2302, %v2390
  %v2392 = vpop.f32.mrb[0].mxu0
  %v2393 = vadd.f32 %v2304, %v2392
  %2394 = vmatprep.mubr.f32.mxu0 %v1150
  %2395 = vmatmul.mubr.f32.gmra.mrb[0].mxu0 %v1149
  %v2396 = vpop.f32.mrb[0].mxu0
  %v2397 = vadd.f32 %v2308, %v2396
  %v2398 = vpop.f32.mrb[0].mxu0
  %v2399 = vadd.f32 %v2310, %v2398
  %2400 = vmatprep.mubr.f32.mxu0 %v1158
  %2401 = vmatmul.mubr.f32.gmra.mrb[0].mxu0 %v1157
  %v2402 = vpop.f32.mrb[0].mxu0
  %v2403 = vadd.f32 %v2314, %v2402
  %v2404 = vpop.f32.mrb[0].mxu0
  %v2405 = vadd.f32 %v2316, %v2404
  %2406 = vmatprep.mubr.f32.mxu0 %v1166
  %2407 = vmatmul.mubr.f32.gmra.mrb[0].mxu0 %v1165
  %v2408 = vpop.f32.mrb[0].mxu0
  %v2409 = vadd.f32 %v2320, %v2408
  %v2410 = vpop.f32.mrb[0].mxu0
  %v2411 = vadd.f32 %v2322, %v2410
  %2412 = vdwg.mxu0
  %v2413 = vmax.f32 %v2035, 0.0
  %v2414 = vmax.f32 %v2037, 0.0
  %v2415 = vmax.f32 %v2391, 0.0
  %v2416 = vmax.f32 %v2393, 0.0
  %v2417 = vmax.f32 %v2041, 0.0
  %v2418 = vmax.f32 %v2043, 0.0
  %v2419 = vmax.f32 %v2397, 0.0
  %v2420 = vmax.f32 %v2399, 0.0
  %v2421 = vmax.f32 %v2047, 0.0
  %v2422 = vmax.f32 %v2049, 0.0
  %v2423 = vmax.f32 %v2403, 0.0
  %v2424 = vmax.f32 %v2405, 0.0
  %v2425 = vmax.f32 %v2053, 0.0
  %v2426 = vmax.f32 %v2055, 0.0
  %v2427 = vmax.f32 %v2409, 0.0
  %v2428 = vmax.f32 %v2411, 0.0
  %v2429 = vmax.f32 %v2413, %v2417
  %v2430 = vmax.f32 %v2414, %v2418
  %v2431 = vmax.f32 %v2415, %v2419
  %v2432 = vmax.f32 %v2416, %v2420
  %v2433 = vmax.f32 %v2421, %v2425
  %v2434 = vmax.f32 %v2422, %v2426
  %v2435 = vmax.f32 %v2423, %v2427
  %v2436 = vmax.f32 %v2424, %v2428
  %v2437 = vmax.f32 %v2429, %v2433
  %v2438 = vmax.f32 %v2430, %v2434
  %v2439 = vmax.f32 %v2431, %v2435
  %v2440 = vmax.f32 %v2432, %v2436
  %v2441 = vld [vmem:[%s5] sm:$0xff]
  %v2442 = vld [vmem:[%s5 + $0x8] sm:$0xff]
  %v2443 = vld [vmem:[%s5 + $0x10] sm:$0xff]
  %v2444 = vld [vmem:[%s5 + $0x18] sm:$0xff]
  %v2445 = vld [vmem:[%s5 + $0x20] sm:$0xff]
  %v2446 = vld [vmem:[%s5 + $0x28] sm:$0xff]
  %v2447 = vld [vmem:[%s5 + $0x30] sm:$0xff]
  %v2448 = vld [vmem:[%s5 + $0x38] sm:$0xff]
  %v2449 = vld [vmem:[%s5 + $0x40] sm:$0xff]
  %v2450 = vld [vmem:[%s5 + $0x48] sm:$0xff]
  %v2451 = vld [vmem:[%s5 + $0x50] sm:$0xff]
  %v2452 = vld [vmem:[%s5 + $0x58] sm:$0xff]
  %v2453 = vld [vmem:[%s5 + $0x60] sm:$0xff]
  %v2454 = vld [vmem:[%s5 + $0x68] sm:$0xff]
  %v2455 = vld [vmem:[%s5 + $0x70] sm:$0xff]
  %v2456 = vld [vmem:[%s5 + $0x78] sm:$0xff]
  %v2457 = vld [vmem:[%s5 + $0x80] sm:$0xff]
  %v2458 = vld [vmem:[%s5 + $0x88] sm:$0xff]
  %v2459 = vld [vmem:[%s5 + $0x90] sm:$0xff]
  %v2460 = vld [vmem:[%s5 + $0x98] sm:$0xff]
  %v2461 = vld [vmem:[%s5 + $0xa0] sm:$0xff]
  %v2462 = vld [vmem:[%s5 + $0xa8] sm:$0xff]
  %v2463 = vld [vmem:[%s5 + $0xb0] sm:$0xff]
  %v2464 = vld [vmem:[%s5 + $0xb8] sm:$0xff]
  %v2465 = vld [vmem:[%s5 + $0xc0] sm:$0xff]
  %v2466 = vld [vmem:[%s5 + $0xc8] sm:$0xff]
  %v2467 = vld [vmem:[%s5 + $0xd0] sm:$0xff]
  %v2468 = vld [vmem:[%s5 + $0xd8] sm:$0xff]
  %v2469 = vld [vmem:[%s5 + $0xe0] sm:$0xff]
  %v2470 = vld [vmem:[%s5 + $0xe8] sm:$0xff]
  %v2471 = vld [vmem:[%s5 + $0xf0] sm:$0xff]
  %v2472 = vld [vmem:[%s5 + $0xf8] sm:$0xff]
  %v2473 = vld [vmem:[%s5 + $0x100] sm:$0xff]
  %v2474 = vld [vmem:[%s5 + $0x108] sm:$0xff]
  %v2475 = vld [vmem:[%s5 + $0x110] sm:$0xff]
  %v2476 = vld [vmem:[%s5 + $0x118] sm:$0xff]
  %v2477 = vld [vmem:[%s5 + $0x120] sm:$0xff]
  %v2478 = vld [vmem:[%s5 + $0x128] sm:$0xff]
  %v2479 = vld [vmem:[%s5 + $0x130] sm:$0xff]
  %v2480 = vld [vmem:[%s5 + $0x138] sm:$0xff]
  %v2481 = vld [vmem:[%s5 + $0x140] sm:$0xff]
  %v2482 = vld [vmem:[%s5 + $0x148] sm:$0xff]
  %v2483 = vld [vmem:[%s5 + $0x150] sm:$0xff]
  %v2484 = vld [vmem:[%s5 + $0x158] sm:$0xff]
  %v2485 = vld [vmem:[%s5 + $0x160] sm:$0xff]
  %v2486 = vld [vmem:[%s5 + $0x168] sm:$0xff]
  %v2487 = vld [vmem:[%s5 + $0x170] sm:$0xff]
  %v2488 = vld [vmem:[%s5 + $0x178] sm:$0xff]
  %v2489 = vld [vmem:[%s5 + $0x180] sm:$0xff]
  %v2490 = vld [vmem:[%s5 + $0x188] sm:$0xff]
  %v2491 = vld [vmem:[%s5 + $0x190] sm:$0xff]
  %v2492 = vld [vmem:[%s5 + $0x198] sm:$0xff]
  %v2493 = vld [vmem:[%s5 + $0x1a0] sm:$0xff]
  %v2494 = vld [vmem:[%s5 + $0x1a8] sm:$0xff]
  %v2495 = vld [vmem:[%s5 + $0x1b0] sm:$0xff]
  %v2496 = vld [vmem:[%s5 + $0x1b8] sm:$0xff]
  %v2497 = vld [vmem:[%s5 + $0x1c0] sm:$0xff]
  %v2498 = vld [vmem:[%s5 + $0x1c8] sm:$0xff]
  %v2499 = vld [vmem:[%s5 + $0x1d0] sm:$0xff]
  %v2500 = vld [vmem:[%s5 + $0x1d8] sm:$0xff]
  %v2501 = vld [vmem:[%s5 + $0x1e0] sm:$0xff]
  %v2502 = vld [vmem:[%s5 + $0x1e8] sm:$0xff]
  %v2503 = vld [vmem:[%s5 + $0x1f0] sm:$0xff]
  %v2504 = vld [vmem:[%s5 + $0x1f8] sm:$0xff]
  %v2505 = vld [vmem:[%s5 + $0x200] sm:$0xff]
  %v2506 = vld [vmem:[%s5 + $0x208] sm:$0xff]
  %v2507 = vld [vmem:[%s5 + $0x210] sm:$0xff]
  %v2508 = vld [vmem:[%s5 + $0x218] sm:$0xff]
  %v2509 = vld [vmem:[%s5 + $0x220] sm:$0xff]
  %v2510 = vld [vmem:[%s5 + $0x228] sm:$0xff]
  %v2511 = vld [vmem:[%s5 + $0x230] sm:$0xff]
  %v2512 = vld [vmem:[%s5 + $0x238] sm:$0xff]
  %v2513 = vld [vmem:[%s5 + $0x240] sm:$0xff]
  %v2514 = vld [vmem:[%s5 + $0x248] sm:$0xff]
  %v2515 = vld [vmem:[%s5 + $0x250] sm:$0xff]
  %v2516 = vld [vmem:[%s5 + $0x258] sm:$0xff]
  %v2517 = vld [vmem:[%s5 + $0x260] sm:$0xff]
  %v2518 = vld [vmem:[%s5 + $0x268] sm:$0xff]
  %v2519 = vld [vmem:[%s5 + $0x270] sm:$0xff]
  %v2520 = vld [vmem:[%s5 + $0x278] sm:$0xff]
  %v2521 = vld [vmem:[%s5 + $0x280] sm:$0xff]
  %v2522 = vld [vmem:[%s5 + $0x288] sm:$0xff]
  %v2523 = vld [vmem:[%s5 + $0x290] sm:$0xff]
  %v2524 = vld [vmem:[%s5 + $0x298] sm:$0xff]
  %v2525 = vld [vmem:[%s5 + $0x2a0] sm:$0xff]
  %v2526 = vld [vmem:[%s5 + $0x2a8] sm:$0xff]
  %v2527 = vld [vmem:[%s5 + $0x2b0] sm:$0xff]
  %v2528 = vld [vmem:[%s5 + $0x2b8] sm:$0xff]
  %v2529 = vld [vmem:[%s5 + $0x2c0] sm:$0xff]
  %v2530 = vld [vmem:[%s5 + $0x2c8] sm:$0xff]
  %v2531 = vld [vmem:[%s5 + $0x2d0] sm:$0xff]
  %v2532 = vld [vmem:[%s5 + $0x2d8] sm:$0xff]
  %v2533 = vld [vmem:[%s5 + $0x2e0] sm:$0xff]
  %v2534 = vld [vmem:[%s5 + $0x2e8] sm:$0xff]
  %v2535 = vld [vmem:[%s5 + $0x2f0] sm:$0xff]
  %v2536 = vld [vmem:[%s5 + $0x2f8] sm:$0xff]
  %v2537 = vld [vmem:[%s5 + $0x300] sm:$0xff]
  %v2538 = vld [vmem:[%s5 + $0x308] sm:$0xff]
  %v2539 = vld [vmem:[%s5 + $0x310] sm:$0xff]
  %v2540 = vld [vmem:[%s5 + $0x318] sm:$0xff]
  %v2541 = vld [vmem:[%s5 + $0x320] sm:$0xff]
  %v2542 = vld [vmem:[%s5 + $0x328] sm:$0xff]
  %v2543 = vld [vmem:[%s5 + $0x330] sm:$0xff]
  %v2544 = vld [vmem:[%s5 + $0x338] sm:$0xff]
  %v2545 = vld [vmem:[%s5 + $0x340] sm:$0xff]
  %v2546 = vld [vmem:[%s5 + $0x348] sm:$0xff]
  %v2547 = vld [vmem:[%s5 + $0x350] sm:$0xff]
  %v2548 = vld [vmem:[%s5 + $0x358] sm:$0xff]
  %v2549 = vld [vmem:[%s5 + $0x360] sm:$0xff]
  %v2550 = vld [vmem:[%s5 + $0x368] sm:$0xff]
  %v2551 = vld [vmem:[%s5 + $0x370] sm:$0xff]
  %v2552 = vld [vmem:[%s5 + $0x378] sm:$0xff]
  %v2553 = vld [vmem:[%s5 + $0x380] sm:$0xff]
  %v2554 = vld [vmem:[%s5 + $0x388] sm:$0xff]
  %v2555 = vld [vmem:[%s5 + $0x390] sm:$0xff]
  %v2556 = vld [vmem:[%s5 + $0x398] sm:$0xff]
  %v2557 = vld [vmem:[%s5 + $0x3a0] sm:$0xff]
  %v2558 = vld [vmem:[%s5 + $0x3a8] sm:$0xff]
  %v2559 = vld [vmem:[%s5 + $0x3b0] sm:$0xff]
  %v2560 = vld [vmem:[%s5 + $0x3b8] sm:$0xff]
  %v2561 = vld [vmem:[%s5 + $0x3c0] sm:$0xff]
  %v2562 = vld [vmem:[%s5 + $0x3c8] sm:$0xff]
  %v2563 = vld [vmem:[%s5 + $0x3d0] sm:$0xff]
  %v2564 = vld [vmem:[%s5 + $0x3d8] sm:$0xff]
  %v2565 = vld [vmem:[%s5 + $0x3e0] sm:$0xff]
  %v2566 = vld [vmem:[%s5 + $0x3e8] sm:$0xff]
  %v2567 = vld [vmem:[%s5 + $0x3f0] sm:$0xff]
  %v2568 = vld [vmem:[%s5 + $0x3f8] sm:$0xff]
  %v2569 = vld [vmem:[%s6] sm:$0x3]
  %v2571 = vlaneseq
  %v2572 = vshrl.u32 %v2571, 7
  %v2573 = vsub.s32 0, %v2572
  %v2574 = vrot.slane %v2569, %v2573
  %v2575 = vlaneseq
  %v2576 = vshrl.u32 %v2575, 7
  %v2577 = vsub.s32 1, %v2576
  %v2578 = vrot.slane %v2569, %v2577
  %2581 = vmatprep.subr.mxu0 %v2442
  %2582 = vmatpush1.msra.mxu0 %v2441
  %2583 = vmatprep.subr.mxu0 %v2444
  %2584 = vmatpush1.msra.mxu0 %v2443
  %2585 = vmatprep.subr.mxu0 %v2446
  %2586 = vmatpush1.msra.mxu0 %v2445
  %2587 = vmatprep.subr.mxu0 %v2448
  %2588 = vmatpush1.msra.mxu0 %v2447
  %2589 = vmatprep.subr.mxu0 %v2450
  %2590 = vmatpush1.msra.mxu0 %v2449
  %2591 = vmatprep.subr.mxu0 %v2452
  %2592 = vmatpush1.msra.mxu0 %v2451
  %2593 = vmatprep.subr.mxu0 %v2454
  %2594 = vmatpush1.msra.mxu0 %v2453
  %2595 = vmatprep.subr.mxu0 %v2456
  %2596 = vmatpush1.msra.mxu0 %v2455
  %2597 = vmatprep.subr.mxu0 %v2458
  %2598 = vmatpush1.msra.mxu0 %v2457
  %2599 = vmatprep.subr.mxu0 %v2460
  %2600 = vmatpush1.msra.mxu0 %v2459
  %2601 = vmatprep.subr.mxu0 %v2462
  %2602 = vmatpush1.msra.mxu0 %v2461
  %2603 = vmatprep.subr.mxu0 %v2464
  %2604 = vmatpush1.msra.mxu0 %v2463
  %2605 = vmatprep.subr.mxu0 %v2466
  %2606 = vmatpush1.msra.mxu0 %v2465
  %2607 = vmatprep.subr.mxu0 %v2468
  %2608 = vmatpush1.msra.mxu0 %v2467
  %2609 = vmatprep.subr.mxu0 %v2470
  %2610 = vmatpush1.msra.mxu0 %v2469
  %2611 = vmatprep.subr.mxu0 %v2472
  %2612 = vmatpush1.msra.mxu0 %v2471
  %2613 = vmatprep.subr.mxu0 %v2474
  %2614 = vmatpush1.msra.mxu0 %v2473
  %2615 = vmatprep.subr.mxu0 %v2476
  %2616 = vmatpush1.msra.mxu0 %v2475
  %2617 = vmatprep.subr.mxu0 %v2478
  %2618 = vmatpush1.msra.mxu0 %v2477
  %2619 = vmatprep.subr.mxu0 %v2480
  %2620 = vmatpush1.msra.mxu0 %v2479
  %2621 = vmatprep.subr.mxu0 %v2482
  %2622 = vmatpush1.msra.mxu0 %v2481
  %2623 = vmatprep.subr.mxu0 %v2484
  %2624 = vmatpush1.msra.mxu0 %v2483
  %2625 = vmatprep.subr.mxu0 %v2486
  %2626 = vmatpush1.msra.mxu0 %v2485
  %2627 = vmatprep.subr.mxu0 %v2488
  %2628 = vmatpush1.msra.mxu0 %v2487
  %2629 = vmatprep.subr.mxu0 %v2490
  %2630 = vmatpush1.msra.mxu0 %v2489
  %2631 = vmatprep.subr.mxu0 %v2492
  %2632 = vmatpush1.msra.mxu0 %v2491
  %2633 = vmatprep.subr.mxu0 %v2494
  %2634 = vmatpush1.msra.mxu0 %v2493
  %2635 = vmatprep.subr.mxu0 %v2496
  %2636 = vmatpush1.msra.mxu0 %v2495
  %2637 = vmatprep.subr.mxu0 %v2498
  %2638 = vmatpush1.msra.mxu0 %v2497
  %2639 = vmatprep.subr.mxu0 %v2500
  %2640 = vmatpush1.msra.mxu0 %v2499
  %2641 = vmatprep.subr.mxu0 %v2502
  %2642 = vmatpush1.msra.mxu0 %v2501
  %2643 = vmatprep.subr.mxu0 %v2504
  %2644 = vmatpush1.msra.mxu0 %v2503
  %2645 = vmatprep.mubr.f32.mxu0 %v2438
  %2646 = vmatmul.mubr.f32.gmra.mrb[0].mxu0 %v2437
  %v2647 = vpop.f32.mrb[0].mxu0
  %v2648 = vadd.f32 %v2574, %v2647
  %v2649 = vpop.f32.mrb[0].mxu0
  %v2650 = vadd.f32 %v2578, %v2649
  %2651 = vdwg.mxu0
  %2652 = vmatprep.subr.mxu0 %v2506
  %2653 = vmatpush1.msra.mxu0 %v2505
  %2654 = vmatprep.subr.mxu0 %v2508
  %2655 = vmatpush1.msra.mxu0 %v2507
  %2656 = vmatprep.subr.mxu0 %v2510
  %2657 = vmatpush1.msra.mxu0 %v2509
  %2658 = vmatprep.subr.mxu0 %v2512
  %2659 = vmatpush1.msra.mxu0 %v2511
  %2660 = vmatprep.subr.mxu0 %v2514
  %2661 = vmatpush1.msra.mxu0 %v2513
  %2662 = vmatprep.subr.mxu0 %v2516
  %2663 = vmatpush1.msra.mxu0 %v2515
  %2664 = vmatprep.subr.mxu0 %v2518
  %2665 = vmatpush1.msra.mxu0 %v2517
  %2666 = vmatprep.subr.mxu0 %v2520
  %2667 = vmatpush1.msra.mxu0 %v2519
  %2668 = vmatprep.subr.mxu0 %v2522
  %2669 = vmatpush1.msra.mxu0 %v2521
  %2670 = vmatprep.subr.mxu0 %v2524
  %2671 = vmatpush1.msra.mxu0 %v2523
  %2672 = vmatprep.subr.mxu0 %v2526
  %2673 = vmatpush1.msra.mxu0 %v2525
  %2674 = vmatprep.subr.mxu0 %v2528
  %2675 = vmatpush1.msra.mxu0 %v2527
  %2676 = vmatprep.subr.mxu0 %v2530
  %2677 = vmatpush1.msra.mxu0 %v2529
  %2678 = vmatprep.subr.mxu0 %v2532
  %2679 = vmatpush1.msra.mxu0 %v2531
  %2680 = vmatprep.subr.mxu0 %v2534
  %2681 = vmatpush1.msra.mxu0 %v2533
  %2682 = vmatprep.subr.mxu0 %v2536
  %2683 = vmatpush1.msra.mxu0 %v2535
  %2684 = vmatprep.subr.mxu0 %v2538
  %2685 = vmatpush1.msra.mxu0 %v2537
  %2686 = vmatprep.subr.mxu0 %v2540
  %2687 = vmatpush1.msra.mxu0 %v2539
  %2688 = vmatprep.subr.mxu0 %v2542
  %2689 = vmatpush1.msra.mxu0 %v2541
  %2690 = vmatprep.subr.mxu0 %v2544
  %2691 = vmatpush1.msra.mxu0 %v2543
  %2692 = vmatprep.subr.mxu0 %v2546
  %2693 = vmatpush1.msra.mxu0 %v2545
  %2694 = vmatprep.subr.mxu0 %v2548
  %2695 = vmatpush1.msra.mxu0 %v2547
  %2696 = vmatprep.subr.mxu0 %v2550
  %2697 = vmatpush1.msra.mxu0 %v2549
  %2698 = vmatprep.subr.mxu0 %v2552
  %2699 = vmatpush1.msra.mxu0 %v2551
  %2700 = vmatprep.subr.mxu0 %v2554
  %2701 = vmatpush1.msra.mxu0 %v2553
  %2702 = vmatprep.subr.mxu0 %v2556
  %2703 = vmatpush1.msra.mxu0 %v2555
  %2704 = vmatprep.subr.mxu0 %v2558
  %2705 = vmatpush1.msra.mxu0 %v2557
  %2706 = vmatprep.subr.mxu0 %v2560
  %2707 = vmatpush1.msra.mxu0 %v2559
  %2708 = vmatprep.subr.mxu0 %v2562
  %2709 = vmatpush1.msra.mxu0 %v2561
  %2710 = vmatprep.subr.mxu0 %v2564
  %2711 = vmatpush1.msra.mxu0 %v2563
  %2712 = vmatprep.subr.mxu0 %v2566
  %2713 = vmatpush1.msra.mxu0 %v2565
  %2714 = vmatprep.subr.mxu0 %v2568
  %2715 = vmatpush1.msra.mxu0 %v2567
  %2716 = vmatprep.mubr.f32.mxu0 %v2440
  %2717 = vmatmul.mubr.f32.gmra.mrb[0].mxu0 %v2439
  %v2718 = vpop.f32.mrb[0].mxu0
  %v2719 = vadd.f32 %v2648, %v2718
  %v2720 = vpop.f32.mrb[0].mxu0
  %v2721 = vadd.f32 %v2650, %v2720
  %2722 = vdwg.mxu0
  %v2723 = vmax.f32 %v2719, 0.0
  %v2724 = vmax.f32 %v2721, 0.0
  %v2725 = vld [vmem:[%s7] sm:$0xff]
  %v2726 = vld [vmem:[%s7 + $0x8] sm:$0xff]
  %v2727 = vld [vmem:[%s7 + $0x10] sm:$0xff]
  %v2728 = vld [vmem:[%s7 + $0x18] sm:$0xff]
  %v2729 = vld [vmem:[%s7 + $0x20] sm:$0xff]
  %v2730 = vld [vmem:[%s7 + $0x28] sm:$0xff]
  %v2731 = vld [vmem:[%s7 + $0x30] sm:$0xff]
  %v2732 = vld [vmem:[%s7 + $0x38] sm:$0xff]
  %v2733 = vld [vmem:[%s7 + $0x40] sm:$0xff]
  %v2734 = vld [vmem:[%s7 + $0x48] sm:$0xff]
  %v2735 = vld [vmem:[%s7 + $0x50] sm:$0xff]
  %v2736 = vld [vmem:[%s7 + $0x58] sm:$0xff]
  %v2737 = vld [vmem:[%s7 + $0x60] sm:$0xff]
  %v2738 = vld [vmem:[%s7 + $0x68] sm:$0xff]
  %v2739 = vld [vmem:[%s7 + $0x70] sm:$0xff]
  %v2740 = vld [vmem:[%s7 + $0x78] sm:$0xff]
  %v2741 = vld [vmem:[%s7 + $0x80] sm:$0xff]
  %v2742 = vld [vmem:[%s7 + $0x88] sm:$0xff]
  %v2743 = vld [vmem:[%s7 + $0x90] sm:$0xff]
  %v2744 = vld [vmem:[%s7 + $0x98] sm:$0xff]
  %v2745 = vld [vmem:[%s7 + $0xa0] sm:$0xff]
  %v2746 = vld [vmem:[%s7 + $0xa8] sm:$0xff]
  %v2747 = vld [vmem:[%s7 + $0xb0] sm:$0xff]
  %v2748 = vld [vmem:[%s7 + $0xb8] sm:$0xff]
  %v2749 = vld [vmem:[%s7 + $0xc0] sm:$0xff]
  %v2750 = vld [vmem:[%s7 + $0xc8] sm:$0xff]
  %v2751 = vld [vmem:[%s7 + $0xd0] sm:$0xff]
  %v2752 = vld [vmem:[%s7 + $0xd8] sm:$0xff]
  %v2753 = vld [vmem:[%s7 + $0xe0] sm:$0xff]
  %v2754 = vld [vmem:[%s7 + $0xe8] sm:$0xff]
  %v2755 = vld [vmem:[%s7 + $0xf0] sm:$0xff]
  %v2756 = vld [vmem:[%s7 + $0xf8] sm:$0xff]
  %v2757 = vld [vmem:[%s8] sm:$0x1]
  %v2759 = vlaneseq
  %v2760 = vshrl.u32 %v2759, 7
  %v2761 = vsub.s32 0, %v2760
  %v2762 = vrot.slane %v2757, %v2761
  %2764 = vmatprep.subr.mxu0 0.0
  %2765 = vmatpush1.msra.mxu0 %v2725
  %2766 = vmatprep.subr.mxu0 0.0
  %2767 = vmatpush1.msra.mxu0 %v2726
  %2768 = vmatprep.subr.mxu0 0.0
  %2769 = vmatpush1.msra.mxu0 %v2727
  %2770 = vmatprep.subr.mxu0 0.0
  %2771 = vmatpush1.msra.mxu0 %v2728
  %2772 = vmatprep.subr.mxu0 0.0
  %2773 = vmatpush1.msra.mxu0 %v2729
  %2774 = vmatprep.subr.mxu0 0.0
  %2775 = vmatpush1.msra.mxu0 %v2730
  %2776 = vmatprep.subr.mxu0 0.0
  %2777 = vmatpush1.msra.mxu0 %v2731
  %2778 = vmatprep.subr.mxu0 0.0
  %2779 = vmatpush1.msra.mxu0 %v2732
  %2780 = vmatprep.subr.mxu0 0.0
  %2781 = vmatpush1.msra.mxu0 %v2733
  %2782 = vmatprep.subr.mxu0 0.0
  %2783 = vmatpush1.msra.mxu0 %v2734
  %2784 = vmatprep.subr.mxu0 0.0
  %2785 = vmatpush1.msra.mxu0 %v2735
  %2786 = vmatprep.subr.mxu0 0.0
  %2787 = vmatpush1.msra.mxu0 %v2736
  %2788 = vmatprep.subr.mxu0 0.0
  %2789 = vmatpush1.msra.mxu0 %v2737
  %2790 = vmatprep.subr.mxu0 0.0
  %2791 = vmatpush1.msra.mxu0 %v2738
  %2792 = vmatprep.subr.mxu0 0.0
  %2793 = vmatpush1.msra.mxu0 %v2739
  %2794 = vmatprep.subr.mxu0 0.0
  %2795 = vmatpush1.msra.mxu0 %v2740
  %2796 = vmatprep.subr.mxu0 0.0
  %2797 = vmatpush1.msra.mxu0 %v2741
  %2798 = vmatprep.subr.mxu0 0.0
  %2799 = vmatpush1.msra.mxu0 %v2742
  %2800 = vmatprep.subr.mxu0 0.0
  %2801 = vmatpush1.msra.mxu0 %v2743
  %2802 = vmatprep.subr.mxu0 0.0
  %2803 = vmatpush1.msra.mxu0 %v2744
  %2804 = vmatprep.subr.mxu0 0.0
  %2805 = vmatpush1.msra.mxu0 %v2745
  %2806 = vmatprep.subr.mxu0 0.0
  %2807 = vmatpush1.msra.mxu0 %v2746
  %2808 = vmatprep.subr.mxu0 0.0
  %2809 = vmatpush1.msra.mxu0 %v2747
  %2810 = vmatprep.subr.mxu0 0.0
  %2811 = vmatpush1.msra.mxu0 %v2748
  %2812 = vmatprep.subr.mxu0 0.0
  %2813 = vmatpush1.msra.mxu0 %v2749
  %2814 = vmatprep.subr.mxu0 0.0
  %2815 = vmatpush1.msra.mxu0 %v2750
  %2816 = vmatprep.subr.mxu0 0.0
  %2817 = vmatpush1.msra.mxu0 %v2751
  %2818 = vmatprep.subr.mxu0 0.0
  %2819 = vmatpush1.msra.mxu0 %v2752
  %2820 = vmatprep.subr.mxu0 0.0
  %2821 = vmatpush1.msra.mxu0 %v2753
  %2822 = vmatprep.subr.mxu0 0.0
  %2823 = vmatpush1.msra.mxu0 %v2754
  %2824 = vmatprep.subr.mxu0 0.0
  %2825 = vmatpush1.msra.mxu0 %v2755
  %2826 = vmatprep.subr.mxu0 0.0
  %2827 = vmatpush1.msra.mxu0 %v2756
  %2828 = vmatprep.mubr.f32.mxu0 %v2724
  %2829 = vmatmul.mubr.f32.gmra.mrb[0].mxu0 %v2723
  %v2830 = vpop.f32.mrb[0].mxu0
  %v2831 = vadd.f32 %v2762, %v2830
  %v2832 = vpop.f32.mrb[0].mxu0
  %2833 = vdwg.mxu0
  %2834 = vmax.xlane.f32.xlu0 %v2831
  %v2835 = vpop.xlane.xlu0 %2834
  %v2836 = vsub.f32 %v2831, %v2835
  %v2837 = vmul.f32 %v2836, 1.442695
  %v2838 = vpow.pop %v2837
  %2839 = vadd.xlane.f32.xlu0 %v2838
  %v2840 = vpop.xlane.xlu0 %2839
  %v2841 = vlog2.pop %v2840
  %v2842 = vmul.f32 %v2841, 0.6931472
  %v2843 = vadd.f32 %v2842, %v2835
  %v2844 = vsub.f32 %v2831, %v2843
  %2845 = vst [vmem:[%s9] sm:$0xff] %v2844
  // Predicated region
  $region38: #{forward.1} parent=0 // pred_check
    _
  $region39: #{forward.1} parent=0 // pred_check_branch
    %2847 = sbr.rel (0) target = $region41
  $region40: #{forward.1} parent=0 // pred_region
    _
  $region41: #{forward.1} parent=0 // pred_fallthru
    _
  // Predicated region
  $region42: #{forward.1} parent=0 // pred_check
    _
  $region43: #{forward.1} parent=0 // pred_check_branch
    %2849 = sbr.rel (0) target = $region45
  $region44: #{forward.1} parent=0 // pred_region
    _
  $region45: #{forward.1} parent=0 // pred_fallthru
    _

</llo_original>
